<compile_context>
chip_gen: v5e
topology: v5e:2x2
jax: 0.10.0
libtpu: 0.0.40
codegen_flags: <defaults>
</compile_context>

<pallas_src>
import math

import numpy as np

import jax
import jax.numpy as jnp
from jax import lax
from jax.experimental import pallas as pl
from jax.experimental.pallas import tpu as pltpu

_LANE = 128


def _round_up(v, m):
    return ((v + m - 1) // m) * m


def _build_kernel(L, T, beta, param_dtype):
    """L = number of synapses (= len(archi) - 1); nB = L - 1 feedback matrices."""
    nB = L - 1
    use_y = (beta != 0.0)
    narrow = np.dtype(param_dtype) != np.dtype(np.float32)

    def kernel(*refs):
        # ref order: x, n_0..n_{L-1}, Wt_0..Wt_{L-1}, b_0..b_{L-1},
        #            Bt_0..Bt_{nB-1}, [y], out_0..out_{L-1}
        i = 0
        x_ref = refs[i]; i += 1
        n_refs = refs[i:i + L]; i += L
        w_refs = refs[i:i + L]; i += L
        b_refs = refs[i:i + L]; i += L
        B_refs = refs[i:i + nB]; i += nB
        if use_y:
            y_ref = refs[i]; i += 1
        out_refs = refs[i:i + L]

        tile_m = x_ref.shape[0]
        cast = (lambda v: v.astype(param_dtype)) if narrow else (lambda v: v)

        x = x_ref[...]
        x_c = cast(x)
        Ws = [w_refs[k][...] for k in range(L)]        # (a_p[k], a_p[k+1])
        Bs = [B_refs[k][...] for k in range(nB)]       # (a_p[k+2], a_p[k+1])

        # Hoist bias broadcasts out of the unrolled time loop (JAX does not
        # CSE broadcast_in_dim; this removes T*L redundant VPU broadcasts).
        bs_b = [jnp.broadcast_to(b_refs[k][...], (tile_m, b_refs[k].shape[1]))
                for k in range(L)]

        if use_y:
            nc_p = n_refs[L - 1].shape[1]
            yoh = (lax.broadcasted_iota(jnp.int32, (tile_m, nc_p), 1)
                   == y_ref[...]).astype(jnp.float32)

        neurons = [n_refs[k][...] for k in range(L)]

        # T is a compile-time constant -> fully unroll so the LLO scheduler
        # can interleave MXU pushes, EUP tanh and VPU adds across layers/steps.
        for _ in range(T):
            layers = [x] + neurons                      # f32 (elementwise path)
            layers_c = [x_c] + [cast(n) for n in neurons]   # MXU operands
            new = []
            # hidden layers: grad of phi_k wrt n_k (bilinear -> closed form)
            for k in range(L - 1):
                g = (jnp.dot(layers_c[k], Ws[k],
                             preferred_element_type=jnp.float32)
                     + bs_b[k]
                     + jnp.dot(layers_c[k + 2], Bs[k],
                               preferred_element_type=jnp.float32))
                new.append(jnp.tanh(g))
            # output layer
            g = (jnp.dot(layers_c[L - 1], Ws[L - 1],
                         preferred_element_type=jnp.float32) + bs_b[L - 1])
            if use_y:
                # MSE nudge term: -beta * d/dn [0.5*||n - onehot(y)||^2]
                g = g - beta * (layers[L] - yoh)
            # default criterion is MSE -> activation applied to last layer too
            # TODO(synk): non-MSE (cross-entropy) criterion path not implemented.
            new.append(jnp.tanh(g))
            neurons = new

        for k in range(L):
            out_refs[k][...] = neurons[k]

    return kernel


def prepare_params(Ws, bs, Bs, archi, param_dtype=jnp.float32):
    """One-time parameter prep (do NOT call per forward): transpose torch-layout
    weights to (in, out), zero-pad every feature dim to a multiple of 128 and
    cast the matmul operands to param_dtype (biases stay f32 for the VPU add).

    Ws[i]: (archi[i+1], archi[i]) torch Linear layout; bs[i]: (archi[i+1],);
    Bs[j]: (archi[j+1], archi[j+2]) torch layout."""
    L = len(archi) - 1
    a_p = [_round_up(a, _LANE) for a in archi]
    Wts, b2s, Bts = [], [], []
    for k in range(L):
        Wt = jnp.asarray(Ws[k], jnp.float32).T                 # (archi[k], archi[k+1])
        Wp = jnp.zeros((a_p[k], a_p[k + 1]), jnp.float32)
        Wp = Wp.at[:archi[k], :archi[k + 1]].set(Wt)
        Wts.append(Wp.astype(param_dtype))
        bp = jnp.zeros((1, a_p[k + 1]), jnp.float32)
        bp = bp.at[0, :archi[k + 1]].set(jnp.asarray(bs[k], jnp.float32))
        b2s.append(bp)
    for j in range(L - 1):
        Bt = jnp.asarray(Bs[j], jnp.float32).T                 # (archi[j+2], archi[j+1])
        Bp = jnp.zeros((a_p[j + 2], a_p[j + 1]), jnp.float32)
        Bp = Bp.at[:archi[j + 2], :archi[j + 1]].set(Bt)
        Bts.append(Bp.astype(param_dtype))
    return dict(Wts=Wts, bs=b2s, Bts=Bts, archi=tuple(archi), a_p=tuple(a_p),
                param_dtype=param_dtype)


def vf_mlp_forward(params, x, y, neurons, T, beta=0.0, tile_m=None):
    """Pallas wrapper. params from prepare_params(); x any shape (B, ...),
    y int labels (B,), neurons[k]: (B, archi[k+1])."""
    archi, a_p = params["archi"], params["a_p"]
    L = len(archi) - 1
    mbs = x.shape[0]

    # Batch tile: per-grid-step overhead ~0.35us -> don't go below ~128 rows
    # unless the batch itself is tiny.
    if tile_m is None:
        if mbs >= 1024:
            tile_m = 256
        elif mbs >= 128:
            tile_m = 128
        else:
            tile_m = _round_up(max(mbs, 8), 8)
    mbs_p = _round_up(mbs, tile_m)

    xf = x.reshape(mbs, -1).astype(jnp.float32)
    x_p = jnp.zeros((mbs_p, a_p[0]), jnp.float32).at[:mbs, :archi[0]].set(xf)
    n_p = [jnp.zeros((mbs_p, a_p[k + 1]), jnp.float32)
              .at[:mbs, :archi[k + 1]].set(jnp.asarray(neurons[k], jnp.float32))
           for k in range(L)]

    inputs = [x_p] + n_p + list(params["Wts"]) + list(params["bs"]) + list(params["Bts"])
    in_specs = (
        [pl.BlockSpec((tile_m, a_p[0]), lambda i: (i, 0))]
        + [pl.BlockSpec((tile_m, a_p[k + 1]), lambda i: (i, 0)) for k in range(L)]
        # parameters: same block for every grid step -> stay VMEM-resident
        + [pl.BlockSpec((a_p[k], a_p[k + 1]), lambda i: (0, 0)) for k in range(L)]
        + [pl.BlockSpec((1, a_p[k + 1]), lambda i: (0, 0)) for k in range(L)]
        + [pl.BlockSpec((a_p[j + 2], a_p[j + 1]), lambda i: (0, 0)) for j in range(L - 1)]
    )
    if beta != 0.0:
        y_p = jnp.zeros((mbs_p, 1), jnp.int32).at[:mbs, 0].set(jnp.asarray(y, jnp.int32))
        inputs.append(y_p)
        in_specs.append(pl.BlockSpec((tile_m, 1), lambda i: (i, 0)))

    out_shape = tuple(jax.ShapeDtypeStruct((mbs_p, a_p[k + 1]), jnp.float32)
                      for k in range(L))
    out_specs = tuple(pl.BlockSpec((tile_m, a_p[k + 1]), lambda i: (i, 0))
                      for k in range(L))

    fn = pl.pallas_call(
        _build_kernel(L, T, beta, params["param_dtype"]),
        out_shape=out_shape,
        grid=(mbs_p // tile_m,),
        in_specs=in_specs,
        out_specs=out_specs,
        compiler_params=pltpu.CompilerParams(
            dimension_semantics=("parallel",)),   # batch axis -> both TCs on v7x
    )
    outs = fn(*inputs)
    # strip batch / lane padding
    return [outs[k][:mbs, :archi[k + 1]] for k in range(L)]


def ref_forward(x, y, neurons, Ws, bs, Bs, archi, T, beta=0.0):
    """Pure-JAX reference mirroring the PyTorch semantics (closed-form grads)."""
    mbs = x.shape[0]
    xf = x.reshape(mbs, -1).astype(jnp.float32)
    yoh = jax.nn.one_hot(y, archi[-1], dtype=jnp.float32)
    L = len(Ws)
    neurons = [jnp.asarray(n, jnp.float32) for n in neurons]
    for _ in range(T):
        layers = [xf] + neurons
        new = []
        for k in range(L - 1):
            g = layers[k] @ Ws[k].T + bs[k] + layers[k + 2] @ Bs[k].T
            new.append(jnp.tanh(g))
        g = layers[L - 1] @ Ws[L - 1].T + bs[L - 1]
        if beta != 0.0:
            g = g - beta * (layers[L] - yoh)
        new.append(jnp.tanh(g))
        neurons = new
    return neurons


if __name__ == "__main__":
    archi = [32, 64, 48, 10]   # archi[0] = flattened input dim, archi[-1] = num classes
    mbs = 256                  # 2 batch tiles of 128 -> exercises the grid / pipelining
    T = 5
    beta = 0.5

    key = jax.random.PRNGKey(0)
    keys = iter(jax.random.split(key, 16))

    # Deterministic parameter init (torch.nn.Linear-style uniform bounds).
    Ws, bs, Bs = [], [], []
    for i in range(len(archi) - 1):
        bound = 1.0 / math.sqrt(archi[i])
        Ws.append(jax.random.uniform(next(keys), (archi[i + 1], archi[i]),
                                     minval=-bound, maxval=bound, dtype=jnp.float32))
        bs.append(jax.random.uniform(next(keys), (archi[i + 1],),
                                     minval=-bound, maxval=bound, dtype=jnp.float32))
    for j in range(len(archi) - 2):
        bound = 1.0 / math.sqrt(archi[j + 2])
        Bs.append(jax.random.uniform(next(keys), (archi[j + 1], archi[j + 2]),
                                     minval=-bound, maxval=bound, dtype=jnp.float32))

    # Inputs: x like an image batch (flattened inside), y integer labels,
    # neurons initialized to zeros (as in init_neurons).
    x = jax.random.normal(next(keys), (mbs, 1, 4, 8), dtype=jnp.float32)
    y = jax.random.randint(next(keys), (mbs,), 0, archi[-1])
    neurons0 = [jnp.zeros((mbs, archi[i + 1]), jnp.float32)
                for i in range(len(archi) - 1)]

    # --- f32 path (exact vs reference) --------------------------------------
    params = prepare_params(Ws, bs, Bs, archi, param_dtype=jnp.float32)
    out = jax.block_until_ready(vf_mlp_forward(params, x, y, neurons0, T=T, beta=beta))
    ref = ref_forward(x, y, neurons0, Ws, bs, Bs, archi, T=T, beta=beta)
    for o, r in zip(out, ref):
        np.testing.assert_allclose(np.asarray(o), np.asarray(r), rtol=1e-5, atol=1e-5)

    # --- free phase (beta == 0: y neither shipped nor read) -----------------
    out0 = jax.block_until_ready(vf_mlp_forward(params, x, y, neurons0, T=T, beta=0.0))
    ref0 = ref_forward(x, y, neurons0, Ws, bs, Bs, archi, T=T, beta=0.0)
    for o, r in zip(out0, ref0):
        np.testing.assert_allclose(np.asarray(o), np.asarray(r), rtol=1e-5, atol=1e-5)

    # --- bf16 matmul operands (native MXU dtype on v6e/v7x), f32 accumulate --
    params_bf16 = prepare_params(Ws, bs, Bs, archi, param_dtype=jnp.bfloat16)
    outb = jax.block_until_ready(vf_mlp_forward(params_bf16, x, y, neurons0, T=T, beta=beta))
    for o, r in zip(outb, ref):
        np.testing.assert_allclose(np.asarray(o), np.asarray(r), rtol=5e-2, atol=5e-2)

    print("KERNEL_OK")
</pallas_src>

<mosaic_0001>
module attributes {stable_mosaic.version = 11 : i64} {
  func.func @kernel(%arg0: i32, %arg1: memref<128x128xf32, #tpu.memory_space<vmem>>, %arg2: memref<128x128xf32, #tpu.memory_space<vmem>>, %arg3: memref<128x128xf32, #tpu.memory_space<vmem>>, %arg4: memref<128x128xf32, #tpu.memory_space<vmem>>, %arg5: memref<128x128xf32, #tpu.memory_space<vmem>>, %arg6: memref<128x128xf32, #tpu.memory_space<vmem>>, %arg7: memref<128x128xf32, #tpu.memory_space<vmem>>, %arg8: memref<1x128xf32, #tpu.memory_space<vmem>>, %arg9: memref<1x128xf32, #tpu.memory_space<vmem>>, %arg10: memref<1x128xf32, #tpu.memory_space<vmem>>, %arg11: memref<128x128xf32, #tpu.memory_space<vmem>>, %arg12: memref<128x128xf32, #tpu.memory_space<vmem>>, %arg13: memref<128x1xi32, #tpu.memory_space<vmem>>, %arg14: memref<128x128xf32, #tpu.memory_space<vmem>>, %arg15: memref<128x128xf32, #tpu.memory_space<vmem>>, %arg16: memref<128x128xf32, #tpu.memory_space<vmem>>) attributes {dimension_semantics = [#tpu.dimension_semantics<parallel>], iteration_bounds = array<i64: 2>, scalar_prefetch = 0 : i64, scratch_operands = 0 : i64, tpu.core_type = #tpu.core_type<tc>, window_params = [{transform_indices = @transform_0, window_bounds = array<i64: 128, 128>}, {transform_indices = @transform_1, window_bounds = array<i64: 128, 128>}, {transform_indices = @transform_2, window_bounds = array<i64: 128, 128>}, {transform_indices = @transform_3, window_bounds = array<i64: 128, 128>}, {pipeline_mode = #tpu.pipeline_mode<synchronous>, transform_indices = @transform_4, window_bounds = array<i64: 128, 128>}, {pipeline_mode = #tpu.pipeline_mode<synchronous>, transform_indices = @transform_5, window_bounds = array<i64: 128, 128>}, {pipeline_mode = #tpu.pipeline_mode<synchronous>, transform_indices = @transform_6, window_bounds = array<i64: 128, 128>}, {pipeline_mode = #tpu.pipeline_mode<synchronous>, transform_indices = @transform_7, window_bounds = array<i64: 1, 128>}, {pipeline_mode = #tpu.pipeline_mode<synchronous>, transform_indices = @transform_8, window_bounds = array<i64: 1, 128>}, {pipeline_mode = #tpu.pipeline_mode<synchronous>, transform_indices = @transform_9, window_bounds = array<i64: 1, 128>}, {pipeline_mode = #tpu.pipeline_mode<synchronous>, transform_indices = @transform_10, window_bounds = array<i64: 128, 128>}, {pipeline_mode = #tpu.pipeline_mode<synchronous>, transform_indices = @transform_11, window_bounds = array<i64: 128, 128>}, {transform_indices = @transform_12, window_bounds = array<i64: 128, 1>}, {transform_indices = @transform_13, window_bounds = array<i64: 128, 128>}, {transform_indices = @transform_14, window_bounds = array<i64: 128, 128>}, {transform_indices = @transform_15, window_bounds = array<i64: 128, 128>}]} {
    %c0 = arith.constant 0 : index
    %c0_0 = arith.constant 0 : index
    %0 = vector.load %arg1[%c0, %c0_0] : memref<128x128xf32, #tpu.memory_space<vmem>>, vector<128x128xf32>
    %c0_1 = arith.constant 0 : index
    %c0_2 = arith.constant 0 : index
    %1 = vector.load %arg5[%c0_1, %c0_2] : memref<128x128xf32, #tpu.memory_space<vmem>>, vector<128x128xf32>
    %c0_3 = arith.constant 0 : index
    %c0_4 = arith.constant 0 : index
    %2 = vector.load %arg6[%c0_3, %c0_4] : memref<128x128xf32, #tpu.memory_space<vmem>>, vector<128x128xf32>
    %c0_5 = arith.constant 0 : index
    %c0_6 = arith.constant 0 : index
    %3 = vector.load %arg7[%c0_5, %c0_6] : memref<128x128xf32, #tpu.memory_space<vmem>>, vector<128x128xf32>
    %c0_7 = arith.constant 0 : index
    %c0_8 = arith.constant 0 : index
    %4 = vector.load %arg11[%c0_7, %c0_8] : memref<128x128xf32, #tpu.memory_space<vmem>>, vector<128x128xf32>
    %c0_9 = arith.constant 0 : index
    %c0_10 = arith.constant 0 : index
    %5 = vector.load %arg12[%c0_9, %c0_10] : memref<128x128xf32, #tpu.memory_space<vmem>>, vector<128x128xf32>
    %c0_11 = arith.constant 0 : index
    %c0_12 = arith.constant 0 : index
    %6 = vector.load %arg8[%c0_11, %c0_12] : memref<1x128xf32, #tpu.memory_space<vmem>>, vector<1x128xf32>
    %7 = vector.shape_cast %6 : vector<1x128xf32> to vector<1x128xf32>
    %8 = vector.broadcast %7 : vector<1x128xf32> to vector<128x128xf32>
    %c0_13 = arith.constant 0 : index
    %c0_14 = arith.constant 0 : index
    %9 = vector.load %arg9[%c0_13, %c0_14] : memref<1x128xf32, #tpu.memory_space<vmem>>, vector<1x128xf32>
    %10 = vector.shape_cast %9 : vector<1x128xf32> to vector<1x128xf32>
    %11 = vector.broadcast %10 : vector<1x128xf32> to vector<128x128xf32>
    %c0_15 = arith.constant 0 : index
    %c0_16 = arith.constant 0 : index
    %12 = vector.load %arg10[%c0_15, %c0_16] : memref<1x128xf32, #tpu.memory_space<vmem>>, vector<1x128xf32>
    %13 = vector.shape_cast %12 : vector<1x128xf32> to vector<1x128xf32>
    %14 = vector.broadcast %13 : vector<1x128xf32> to vector<128x128xf32>
    %15 = tpu.iota {dimensions = array<i32: 1>} : vector<128x128xi32>
    %c0_17 = arith.constant 0 : index
    %c0_18 = arith.constant 0 : index
    %16 = vector.load %arg13[%c0_17, %c0_18] : memref<128x1xi32, #tpu.memory_space<vmem>>, vector<128x1xi32>
    %17 = vector.broadcast %16 : vector<128x1xi32> to vector<128x128xi32>
    %18 = arith.cmpi eq, %15, %17 : vector<128x128xi32>
    %19 = arith.extui %18 : vector<128x128xi1> to vector<128x128xi32>
    %20 = arith.sitofp %19 : vector<128x128xi32> to vector<128x128xf32>
    %c0_19 = arith.constant 0 : index
    %c0_20 = arith.constant 0 : index
    %21 = vector.load %arg2[%c0_19, %c0_20] : memref<128x128xf32, #tpu.memory_space<vmem>>, vector<128x128xf32>
    %c0_21 = arith.constant 0 : index
    %c0_22 = arith.constant 0 : index
    %22 = vector.load %arg3[%c0_21, %c0_22] : memref<128x128xf32, #tpu.memory_space<vmem>>, vector<128x128xf32>
    %c0_23 = arith.constant 0 : index
    %c0_24 = arith.constant 0 : index
    %23 = vector.load %arg4[%c0_23, %c0_24] : memref<128x128xf32, #tpu.memory_space<vmem>>, vector<128x128xf32>
    %cst = arith.constant dense<0.000000e+00> : vector<128x128xf32>
    %24 = tpu.matmul %0, %1, %cst {dimension_numbers = #tpu.dot_dimension_numbers<[1], [0], [0], [1], [0, 0, 1, 1], [], []>} : vector<128x128xf32>, vector<128x128xf32>, vector<128x128xf32> -> vector<128x128xf32>
    %25 = arith.addf %24, %8 : vector<128x128xf32>
    %cst_25 = arith.constant dense<0.000000e+00> : vector<128x128xf32>
    %26 = tpu.matmul %22, %4, %cst_25 {dimension_numbers = #tpu.dot_dimension_numbers<[1], [0], [0], [1], [0, 0, 1, 1], [], []>} : vector<128x128xf32>, vector<128x128xf32>, vector<128x128xf32> -> vector<128x128xf32>
    %27 = arith.addf %25, %26 : vector<128x128xf32>
    %28 = math.tanh %27 : vector<128x128xf32>
    %cst_26 = arith.constant dense<0.000000e+00> : vector<128x128xf32>
    %29 = tpu.matmul %21, %2, %cst_26 {dimension_numbers = #tpu.dot_dimension_numbers<[1], [0], [0], [1], [0, 0, 1, 1], [], []>} : vector<128x128xf32>, vector<128x128xf32>, vector<128x128xf32> -> vector<128x128xf32>
    %30 = arith.addf %29, %11 : vector<128x128xf32>
    %cst_27 = arith.constant dense<0.000000e+00> : vector<128x128xf32>
    %31 = tpu.matmul %23, %5, %cst_27 {dimension_numbers = #tpu.dot_dimension_numbers<[1], [0], [0], [1], [0, 0, 1, 1], [], []>} : vector<128x128xf32>, vector<128x128xf32>, vector<128x128xf32> -> vector<128x128xf32>
    %32 = arith.addf %30, %31 : vector<128x128xf32>
    %33 = math.tanh %32 : vector<128x128xf32>
    %cst_28 = arith.constant dense<0.000000e+00> : vector<128x128xf32>
    %34 = tpu.matmul %22, %3, %cst_28 {dimension_numbers = #tpu.dot_dimension_numbers<[1], [0], [0], [1], [0, 0, 1, 1], [], []>} : vector<128x128xf32>, vector<128x128xf32>, vector<128x128xf32> -> vector<128x128xf32>
    %35 = arith.addf %34, %14 : vector<128x128xf32>
    %36 = arith.subf %23, %20 : vector<128x128xf32>
    %cst_29 = arith.constant 5.000000e-01 : f32
    %37 = vector.broadcast %cst_29 : f32 to vector<128x128xf32>
    %38 = arith.mulf %37, %36 : vector<128x128xf32>
    %39 = arith.subf %35, %38 : vector<128x128xf32>
    %40 = math.tanh %39 : vector<128x128xf32>
    %cst_30 = arith.constant dense<0.000000e+00> : vector<128x128xf32>
    %41 = tpu.matmul %0, %1, %cst_30 {dimension_numbers = #tpu.dot_dimension_numbers<[1], [0], [0], [1], [0, 0, 1, 1], [], []>} : vector<128x128xf32>, vector<128x128xf32>, vector<128x128xf32> -> vector<128x128xf32>
    %42 = arith.addf %41, %8 : vector<128x128xf32>
    %cst_31 = arith.constant dense<0.000000e+00> : vector<128x128xf32>
    %43 = tpu.matmul %33, %4, %cst_31 {dimension_numbers = #tpu.dot_dimension_numbers<[1], [0], [0], [1], [0, 0, 1, 1], [], []>} : vector<128x128xf32>, vector<128x128xf32>, vector<128x128xf32> -> vector<128x128xf32>
    %44 = arith.addf %42, %43 : vector<128x128xf32>
    %45 = math.tanh %44 : vector<128x128xf32>
    %cst_32 = arith.constant dense<0.000000e+00> : vector<128x128xf32>
    %46 = tpu.matmul %28, %2, %cst_32 {dimension_numbers = #tpu.dot_dimension_numbers<[1], [0], [0], [1], [0, 0, 1, 1], [], []>} : vector<128x128xf32>, vector<128x128xf32>, vector<128x128xf32> -> vector<128x128xf32>
    %47 = arith.addf %46, %11 : vector<128x128xf32>
    %cst_33 = arith.constant dense<0.000000e+00> : vector<128x128xf32>
    %48 = tpu.matmul %40, %5, %cst_33 {dimension_numbers = #tpu.dot_dimension_numbers<[1], [0], [0], [1], [0, 0, 1, 1], [], []>} : vector<128x128xf32>, vector<128x128xf32>, vector<128x128xf32> -> vector<128x128xf32>
    %49 = arith.addf %47, %48 : vector<128x128xf32>
    %50 = math.tanh %49 : vector<128x128xf32>
    %cst_34 = arith.constant dense<0.000000e+00> : vector<128x128xf32>
    %51 = tpu.matmul %33, %3, %cst_34 {dimension_numbers = #tpu.dot_dimension_numbers<[1], [0], [0], [1], [0, 0, 1, 1], [], []>} : vector<128x128xf32>, vector<128x128xf32>, vector<128x128xf32> -> vector<128x128xf32>
    %52 = arith.addf %51, %14 : vector<128x128xf32>
    %53 = arith.subf %40, %20 : vector<128x128xf32>
    %cst_35 = arith.constant 5.000000e-01 : f32
    %54 = vector.broadcast %cst_35 : f32 to vector<128x128xf32>
    %55 = arith.mulf %54, %53 : vector<128x128xf32>
    %56 = arith.subf %52, %55 : vector<128x128xf32>
    %57 = math.tanh %56 : vector<128x128xf32>
    %cst_36 = arith.constant dense<0.000000e+00> : vector<128x128xf32>
    %58 = tpu.matmul %0, %1, %cst_36 {dimension_numbers = #tpu.dot_dimension_numbers<[1], [0], [0], [1], [0, 0, 1, 1], [], []>} : vector<128x128xf32>, vector<128x128xf32>, vector<128x128xf32> -> vector<128x128xf32>
    %59 = arith.addf %58, %8 : vector<128x128xf32>
    %cst_37 = arith.constant dense<0.000000e+00> : vector<128x128xf32>
    %60 = tpu.matmul %50, %4, %cst_37 {dimension_numbers = #tpu.dot_dimension_numbers<[1], [0], [0], [1], [0, 0, 1, 1], [], []>} : vector<128x128xf32>, vector<128x128xf32>, vector<128x128xf32> -> vector<128x128xf32>
    %61 = arith.addf %59, %60 : vector<128x128xf32>
    %62 = math.tanh %61 : vector<128x128xf32>
    %cst_38 = arith.constant dense<0.000000e+00> : vector<128x128xf32>
    %63 = tpu.matmul %45, %2, %cst_38 {dimension_numbers = #tpu.dot_dimension_numbers<[1], [0], [0], [1], [0, 0, 1, 1], [], []>} : vector<128x128xf32>, vector<128x128xf32>, vector<128x128xf32> -> vector<128x128xf32>
    %64 = arith.addf %63, %11 : vector<128x128xf32>
    %cst_39 = arith.constant dense<0.000000e+00> : vector<128x128xf32>
    %65 = tpu.matmul %57, %5, %cst_39 {dimension_numbers = #tpu.dot_dimension_numbers<[1], [0], [0], [1], [0, 0, 1, 1], [], []>} : vector<128x128xf32>, vector<128x128xf32>, vector<128x128xf32> -> vector<128x128xf32>
    %66 = arith.addf %64, %65 : vector<128x128xf32>
    %67 = math.tanh %66 : vector<128x128xf32>
    %cst_40 = arith.constant dense<0.000000e+00> : vector<128x128xf32>
    %68 = tpu.matmul %50, %3, %cst_40 {dimension_numbers = #tpu.dot_dimension_numbers<[1], [0], [0], [1], [0, 0, 1, 1], [], []>} : vector<128x128xf32>, vector<128x128xf32>, vector<128x128xf32> -> vector<128x128xf32>
    %69 = arith.addf %68, %14 : vector<128x128xf32>
    %70 = arith.subf %57, %20 : vector<128x128xf32>
    %cst_41 = arith.constant 5.000000e-01 : f32
    %71 = vector.broadcast %cst_41 : f32 to vector<128x128xf32>
    %72 = arith.mulf %71, %70 : vector<128x128xf32>
    %73 = arith.subf %69, %72 : vector<128x128xf32>
    %74 = math.tanh %73 : vector<128x128xf32>
    %cst_42 = arith.constant dense<0.000000e+00> : vector<128x128xf32>
    %75 = tpu.matmul %0, %1, %cst_42 {dimension_numbers = #tpu.dot_dimension_numbers<[1], [0], [0], [1], [0, 0, 1, 1], [], []>} : vector<128x128xf32>, vector<128x128xf32>, vector<128x128xf32> -> vector<128x128xf32>
    %76 = arith.addf %75, %8 : vector<128x128xf32>
    %cst_43 = arith.constant dense<0.000000e+00> : vector<128x128xf32>
    %77 = tpu.matmul %67, %4, %cst_43 {dimension_numbers = #tpu.dot_dimension_numbers<[1], [0], [0], [1], [0, 0, 1, 1], [], []>} : vector<128x128xf32>, vector<128x128xf32>, vector<128x128xf32> -> vector<128x128xf32>
    %78 = arith.addf %76, %77 : vector<128x128xf32>
    %79 = math.tanh %78 : vector<128x128xf32>
    %cst_44 = arith.constant dense<0.000000e+00> : vector<128x128xf32>
    %80 = tpu.matmul %62, %2, %cst_44 {dimension_numbers = #tpu.dot_dimension_numbers<[1], [0], [0], [1], [0, 0, 1, 1], [], []>} : vector<128x128xf32>, vector<128x128xf32>, vector<128x128xf32> -> vector<128x128xf32>
    %81 = arith.addf %80, %11 : vector<128x128xf32>
    %cst_45 = arith.constant dense<0.000000e+00> : vector<128x128xf32>
    %82 = tpu.matmul %74, %5, %cst_45 {dimension_numbers = #tpu.dot_dimension_numbers<[1], [0], [0], [1], [0, 0, 1, 1], [], []>} : vector<128x128xf32>, vector<128x128xf32>, vector<128x128xf32> -> vector<128x128xf32>
    %83 = arith.addf %81, %82 : vector<128x128xf32>
    %84 = math.tanh %83 : vector<128x128xf32>
    %cst_46 = arith.constant dense<0.000000e+00> : vector<128x128xf32>
    %85 = tpu.matmul %67, %3, %cst_46 {dimension_numbers = #tpu.dot_dimension_numbers<[1], [0], [0], [1], [0, 0, 1, 1], [], []>} : vector<128x128xf32>, vector<128x128xf32>, vector<128x128xf32> -> vector<128x128xf32>
    %86 = arith.addf %85, %14 : vector<128x128xf32>
    %87 = arith.subf %74, %20 : vector<128x128xf32>
    %cst_47 = arith.constant 5.000000e-01 : f32
    %88 = vector.broadcast %cst_47 : f32 to vector<128x128xf32>
    %89 = arith.mulf %88, %87 : vector<128x128xf32>
    %90 = arith.subf %86, %89 : vector<128x128xf32>
    %91 = math.tanh %90 : vector<128x128xf32>
    %cst_48 = arith.constant dense<0.000000e+00> : vector<128x128xf32>
    %92 = tpu.matmul %0, %1, %cst_48 {dimension_numbers = #tpu.dot_dimension_numbers<[1], [0], [0], [1], [0, 0, 1, 1], [], []>} : vector<128x128xf32>, vector<128x128xf32>, vector<128x128xf32> -> vector<128x128xf32>
    %93 = arith.addf %92, %8 : vector<128x128xf32>
    %cst_49 = arith.constant dense<0.000000e+00> : vector<128x128xf32>
    %94 = tpu.matmul %84, %4, %cst_49 {dimension_numbers = #tpu.dot_dimension_numbers<[1], [0], [0], [1], [0, 0, 1, 1], [], []>} : vector<128x128xf32>, vector<128x128xf32>, vector<128x128xf32> -> vector<128x128xf32>
    %95 = arith.addf %93, %94 : vector<128x128xf32>
    %96 = math.tanh %95 : vector<128x128xf32>
    %cst_50 = arith.constant dense<0.000000e+00> : vector<128x128xf32>
    %97 = tpu.matmul %79, %2, %cst_50 {dimension_numbers = #tpu.dot_dimension_numbers<[1], [0], [0], [1], [0, 0, 1, 1], [], []>} : vector<128x128xf32>, vector<128x128xf32>, vector<128x128xf32> -> vector<128x128xf32>
    %98 = arith.addf %97, %11 : vector<128x128xf32>
    %cst_51 = arith.constant dense<0.000000e+00> : vector<128x128xf32>
    %99 = tpu.matmul %91, %5, %cst_51 {dimension_numbers = #tpu.dot_dimension_numbers<[1], [0], [0], [1], [0, 0, 1, 1], [], []>} : vector<128x128xf32>, vector<128x128xf32>, vector<128x128xf32> -> vector<128x128xf32>
    %100 = arith.addf %98, %99 : vector<128x128xf32>
    %101 = math.tanh %100 : vector<128x128xf32>
    %cst_52 = arith.constant dense<0.000000e+00> : vector<128x128xf32>
    %102 = tpu.matmul %84, %3, %cst_52 {dimension_numbers = #tpu.dot_dimension_numbers<[1], [0], [0], [1], [0, 0, 1, 1], [], []>} : vector<128x128xf32>, vector<128x128xf32>, vector<128x128xf32> -> vector<128x128xf32>
    %103 = arith.addf %102, %14 : vector<128x128xf32>
    %104 = arith.subf %91, %20 : vector<128x128xf32>
    %cst_53 = arith.constant 5.000000e-01 : f32
    %105 = vector.broadcast %cst_53 : f32 to vector<128x128xf32>
    %106 = arith.mulf %105, %104 : vector<128x128xf32>
    %107 = arith.subf %103, %106 : vector<128x128xf32>
    %108 = math.tanh %107 : vector<128x128xf32>
    %c0_54 = arith.constant 0 : index
    %c0_55 = arith.constant 0 : index
    %109 = vector.load %arg14[%c0_54, %c0_55] : memref<128x128xf32, #tpu.memory_space<vmem>>, vector<128x128xf32>
    tpu.vector_store %arg14[%c0_54, %c0_55], %96 {strides = array<i32>} : memref<128x128xf32, #tpu.memory_space<vmem>>, vector<128x128xf32>,
    %c0_56 = arith.constant 0 : index
    %c0_57 = arith.constant 0 : index
    %110 = vector.load %arg15[%c0_56, %c0_57] : memref<128x128xf32, #tpu.memory_space<vmem>>, vector<128x128xf32>
    tpu.vector_store %arg15[%c0_56, %c0_57], %101 {strides = array<i32>} : memref<128x128xf32, #tpu.memory_space<vmem>>, vector<128x128xf32>,
    %c0_58 = arith.constant 0 : index
    %c0_59 = arith.constant 0 : index
    %111 = vector.load %arg16[%c0_58, %c0_59] : memref<128x128xf32, #tpu.memory_space<vmem>>, vector<128x128xf32>
    tpu.vector_store %arg16[%c0_58, %c0_59], %108 {strides = array<i32>} : memref<128x128xf32, #tpu.memory_space<vmem>>, vector<128x128xf32>,
    return
  }
  func.func @transform_0(%arg0: i32) -> (i32, i32) {
    %c0_i32 = arith.constant 0 : i32
    %c0_i32_0 = arith.constant 0 : i32
    return %arg0, %c0_i32 : i32, i32
  }
  func.func @transform_1(%arg0: i32) -> (i32, i32) {
    %c0_i32 = arith.constant 0 : i32
    %c0_i32_0 = arith.constant 0 : i32
    return %arg0, %c0_i32 : i32, i32
  }
  func.func @transform_2(%arg0: i32) -> (i32, i32) {
    %c0_i32 = arith.constant 0 : i32
    %c0_i32_0 = arith.constant 0 : i32
    return %arg0, %c0_i32 : i32, i32
  }
  func.func @transform_3(%arg0: i32) -> (i32, i32) {
    %c0_i32 = arith.constant 0 : i32
    %c0_i32_0 = arith.constant 0 : i32
    return %arg0, %c0_i32 : i32, i32
  }
  func.func @transform_4(%arg0: i32) -> (i32, i32) {
    %c0_i32 = arith.constant 0 : i32
    %c0_i32_0 = arith.constant 0 : i32
    %c0_i32_1 = arith.constant 0 : i32
    return %c0_i32, %c0_i32_0 : i32, i32
  }
  func.func @transform_5(%arg0: i32) -> (i32, i32) {
    %c0_i32 = arith.constant 0 : i32
    %c0_i32_0 = arith.constant 0 : i32
    %c0_i32_1 = arith.constant 0 : i32
    return %c0_i32, %c0_i32_0 : i32, i32
  }
  func.func @transform_6(%arg0: i32) -> (i32, i32) {
    %c0_i32 = arith.constant 0 : i32
    %c0_i32_0 = arith.constant 0 : i32
    %c0_i32_1 = arith.constant 0 : i32
    return %c0_i32, %c0_i32_0 : i32, i32
  }
  func.func @transform_7(%arg0: i32) -> (i32, i32) {
    %c0_i32 = arith.constant 0 : i32
    %c0_i32_0 = arith.constant 0 : i32
    %c0_i32_1 = arith.constant 0 : i32
    return %c0_i32, %c0_i32_0 : i32, i32
  }
  func.func @transform_8(%arg0: i32) -> (i32, i32) {
    %c0_i32 = arith.constant 0 : i32
    %c0_i32_0 = arith.constant 0 : i32
    %c0_i32_1 = arith.constant 0 : i32
    return %c0_i32, %c0_i32_0 : i32, i32
  }
  func.func @transform_9(%arg0: i32) -> (i32, i32) {
    %c0_i32 = arith.constant 0 : i32
    %c0_i32_0 = arith.constant 0 : i32
    %c0_i32_1 = arith.constant 0 : i32
    return %c0_i32, %c0_i32_0 : i32, i32
  }
  func.func @transform_10(%arg0: i32) -> (i32, i32) {
    %c0_i32 = arith.constant 0 : i32
    %c0_i32_0 = arith.constant 0 : i32
    %c0_i32_1 = arith.constant 0 : i32
    return %c0_i32, %c0_i32_0 : i32, i32
  }
  func.func @transform_11(%arg0: i32) -> (i32, i32) {
    %c0_i32 = arith.constant 0 : i32
    %c0_i32_0 = arith.constant 0 : i32
    %c0_i32_1 = arith.constant 0 : i32
    return %c0_i32, %c0_i32_0 : i32, i32
  }
  func.func @transform_12(%arg0: i32) -> (i32, i32) {
    %c0_i32 = arith.constant 0 : i32
    %c0_i32_0 = arith.constant 0 : i32
    return %arg0, %c0_i32 : i32, i32
  }
  func.func @transform_13(%arg0: i32) -> (i32, i32) {
    %c0_i32 = arith.constant 0 : i32
    %c0_i32_0 = arith.constant 0 : i32
    return %arg0, %c0_i32 : i32, i32
  }
  func.func @transform_14(%arg0: i32) -> (i32, i32) {
    %c0_i32 = arith.constant 0 : i32
    %c0_i32_0 = arith.constant 0 : i32
    return %arg0, %c0_i32 : i32, i32
  }
  func.func @transform_15(%arg0: i32) -> (i32, i32) {
    %c0_i32 = arith.constant 0 : i32
    %c0_i32_0 = arith.constant 0 : i32
    return %arg0, %c0_i32 : i32, i32
  }
}

</mosaic_0001>

<llo_original>
// kernel: tpu_custom_call.1
$region0: #{tpu_custom_call.1}
  #allocation0 [shape = 'u32[]', space=smem, size = 0x4, offset = 0x4, fixed_abs, tag = 'smem constant byte address 0x4 - core index']
  #allocation1 [shape = 'u32[72,128]{1,0:T(1,128)}', space=vmem, size = 0x9000, scoped, tag = 'internal scratch']
  %s0 = inlined_call_operand.vmem [shape: f32[256,128], index: 0, kind: input, shape index: {}]
  %s1 = inlined_call_operand.hbm [shape: f32[256,128], index: 1, kind: input, shape index: {}]
  %s2 = inlined_call_operand.hbm [shape: f32[256,128], index: 2, kind: input, shape index: {}]
  %s3 = inlined_call_operand.hbm [shape: f32[256,128], index: 3, kind: input, shape index: {}]
  %s4 = inlined_call_operand.hbm [shape: f32[128,128], index: 4, kind: input, shape index: {}]
  %s5 = inlined_call_operand.hbm [shape: f32[128,128], index: 5, kind: input, shape index: {}]
  %s6 = inlined_call_operand.hbm [shape: f32[128,128], index: 6, kind: input, shape index: {}]
  %s7 = inlined_call_operand.vmem [shape: f32[1,128], index: 7, kind: input, shape index: {}]
  %s8 = inlined_call_operand.vmem [shape: f32[1,128], index: 8, kind: input, shape index: {}]
  %s9 = inlined_call_operand.vmem [shape: f32[1,128], index: 9, kind: input, shape index: {}]
  %s10 = inlined_call_operand.hbm [shape: f32[128,128], index: 10, kind: input, shape index: {}]
  %s11 = inlined_call_operand.hbm [shape: f32[128,128], index: 11, kind: input, shape index: {}]
  %s12 = inlined_call_operand.vmem [shape: s32[256,1], index: 12, kind: input, shape index: {}]
  %s13 = inlined_call_operand.hbm [shape: f32[256,128], index: 13, kind: output, shape index: {0}]
  %s14 = inlined_call_operand.hbm [shape: f32[256,128], index: 14, kind: output, shape index: {1}]
  %s15 = inlined_call_operand.hbm [shape: f32[256,128], index: 15, kind: output, shape index: {2}]
  %16 = xla_tuple %s13, %s14, %s15
  %s17 = sld [smem:[#allocation0]]
  $region133: #{tpu_custom_call.1} parent=0
    _
  %s19 = ssub.s32 1, %s17
  %s20 = scalar_select 0, %s19, %s17
  $region1: #{tpu_custom_call.1} parent=0
    #allocation2 [shape = 'u8[131072]{0}', space=vmem, size = 0x20000, scoped, tag = 'input window, operand 1']
    #allocation3 [shape = 's32[2]{0}', space=sflag, size = 0x8, scoped, tag = 'scoped memory for tpu_custom_call.1']
    #allocation4 [shape = 's32[2]{0}', space=sflag, size = 0x8, scoped, tag = 'scoped memory for tpu_custom_call.1']
    #allocation5 [shape = 'u8[131072]{0}', space=vmem, size = 0x20000, scoped, tag = 'input window, operand 2']
    #allocation6 [shape = 's32[2]{0}', space=sflag, size = 0x8, scoped, tag = 'scoped memory for tpu_custom_call.1']
    #allocation7 [shape = 'u8[131072]{0}', space=vmem, size = 0x20000, scoped, tag = 'input window, operand 3']
    #allocation8 [shape = 'u8[65536]{0}', space=vmem, size = 0x10000, scoped, tag = 'input window, operand 4, single buffered']
    #allocation9 [shape = 's32[1]{0}', space=sflag, size = 0x4, scoped, tag = 'scoped memory for tpu_custom_call.1']
    #allocation10 [shape = 'u8[65536]{0}', space=vmem, size = 0x10000, scoped, tag = 'input window, operand 5, single buffered']
    #allocation11 [shape = 'u8[65536]{0}', space=vmem, size = 0x10000, scoped, tag = 'input window, operand 6, single buffered']
    #allocation12 [shape = 's32[1]{0}', space=sflag, size = 0x4, scoped, tag = 'scoped memory for tpu_custom_call.1']
    #allocation13 [shape = 'u8[65536]{0}', space=vmem, size = 0x10000, scoped, tag = 'input window, operand 10, single buffered']
    #allocation14 [shape = 'u8[65536]{0}', space=vmem, size = 0x10000, scoped, tag = 'input window, operand 11, single buffered']
    #allocation15 [shape = 's32[1]{0}', space=sflag, size = 0x4, scoped, tag = 'scoped memory for tpu_custom_call.1']
    #allocation16 [shape = 'u8[131072]{0}', space=vmem, size = 0x20000, scoped, tag = 'output window, operand 0']
    #allocation17 [shape = 'u8[131072]{0}', space=vmem, size = 0x20000, scoped, tag = 'output window, operand 1']
    #allocation18 [shape = 's32[2]{0}', space=sflag, size = 0x8, scoped, tag = 'scoped memory for tpu_custom_call.1']
    #allocation19 [shape = 'u8[131072]{0}', space=vmem, size = 0x20000, scoped, tag = 'output window, operand 2']
    %21 = vsyncpa [#allocation3], 0
    %s22 = scalar_lea.sflag [#allocation3], 1
    %23 = vsyncpa %s22, 0
    %24 = vsyncpa [#allocation6], 0
    %s25 = scalar_lea.sflag [#allocation6], 1
    %26 = vsyncpa %s25, 0
    %27 = vsyncpa [#allocation9], 0
    %28 = vsyncpa [#allocation12], 0
    %29 = vsyncpa [#allocation15], 0
    %30 = vsyncpa [#allocation4], 0
    %s31 = scalar_lea.sflag [#allocation4], 1
    %32 = vsyncpa %s31, 0
    %33 = vsyncpa [#allocation18], 0
    %s34 = scalar_lea.sflag [#allocation18], 1
    %35 = vsyncpa %s34, 0
    loop: start=0, step=1, limit=4
    $region2: #{tpu_custom_call.1} parent=1 // loop_pre_header
      _
    $region3: #{tpu_custom_call.1} parent=1 // loop_header
      %s37 = sphi 0, %s41
      %p38 = scmp.ge.s32.totalorder %s37, 4
      %s47 = sphi 0, %s49
      %s50 = sphi 0, %s47
      %s51 = sphi 0, %s50
      %s67 = sphi 0, %s51
      %s73 = sphi 0, %s75
      %s76 = sphi 0, %s73
      %s77 = sphi 0, %s76
      %s93 = sphi 0, %s77
      %s99 = sphi 0, %s101
      %s102 = sphi 0, %s99
      %s103 = sphi 0, %s102
      %s119 = sphi 0, %s103
      %s125 = sphi 0, %s127
      %s128 = sphi 0, %s125
      %s129 = sphi 0, %s128
      %s145 = sphi 0, %s129
      %s149 = sphi 0, %s149
      %s151 = sphi 0, %s149
      %s152 = sphi 0, %s151
      %s166 = sphi 0, %s152
      %s170 = sphi 0, %s170
      %s172 = sphi 0, %s170
      %s173 = sphi 0, %s172
      %s187 = sphi 0, %s173
      %s191 = sphi 0, %s191
      %s193 = sphi 0, %s191
      %s194 = sphi 0, %s193
      %s208 = sphi 0, %s194
      %s212 = sphi 0, %s212
      %s214 = sphi 0, %s212
      %s215 = sphi 0, %s214
      %s229 = sphi 0, %s215
      %s233 = sphi 0, %s233
      %s235 = sphi 0, %s233
      %s236 = sphi 0, %s235
      %s250 = sphi 0, %s236
      %s254 = sphi 0, %s254
      %s256 = sphi 0, %s254
      %s257 = sphi 0, %s256
      %s271 = sphi 0, %s257
      %s275 = sphi 0, %s275
      %s277 = sphi 0, %s275
      %s278 = sphi 0, %s277
      %s292 = sphi 0, %s278
      %s296 = sphi 0, %s296
      %s298 = sphi 0, %s296
      %s299 = sphi 0, %s298
      %s313 = sphi 0, %s299
      %s319 = sphi 0, %s321
      %s322 = sphi 0, %s319
      %s323 = sphi 0, %s322
      %s339 = sphi 0, %s323
      %s345 = sphi 0, %s347
      %s348 = sphi 0, %s345
      %s349 = sphi 0, %s348
      %s365 = sphi 0, %s349
      %s371 = sphi 0, %s373
      %s374 = sphi 0, %s371
      %s375 = sphi 0, %s374
      %s391 = sphi 0, %s375
      %s397 = sphi 0, %s399
      %s400 = sphi 0, %s397
      %s401 = sphi 0, %s400
      %s417 = sphi 0, %s401
    $region4: #{tpu_custom_call.1} parent=1 // loop_header_branch
      %40 = sbr.rel (%p38) target = $region8
    $region5: #{tpu_custom_call.1} parent=1 // loop_body
      %s42 = ssub.s32 %s37, 1
      %s43 = ssub.s32 %s37, 2
      %s44 = sadd.s32 %s37, 1
      %s45 = ssub.s32 %s37, %s44
      %p46 = scmp.eq.s32.totalorder %s45, 0
      %s48 = sadd.s32 %s47, 1
      %s49 = scalar_select %p46, %s47, %s48
      %p52 = pneg %p46
      %p53 = scmp.eq.s32.totalorder %s37, 1
      %p54 = por %p52, %p53
      %p55 = scmp.ne.s32.totalorder %s47, %s50
      %p56 = scmp.eq.s32.totalorder %s37, 0
      %p57 = por %p55, %p56
      %p58 = scmp.ne.s32.totalorder %s47, %s50
      %p59 = scmp.eq.s32.totalorder %s42, 1
      %p60 = por %p58, %p59
      %p61 = scmp.ne.s32.totalorder %s50, %s51
      %p62 = scmp.eq.s32.totalorder %s42, 0
      %p63 = por %p61, %p62
      %p64 = scmp.ne.s32.totalorder %s50, %s51
      %p65 = scmp.eq.s32.totalorder %s43, 1
      %p66 = por %p64, %p65
      %p68 = scmp.ne.s32.totalorder %s51, %s67
      %p69 = scmp.eq.s32.totalorder %s43, 0
      %p70 = por %p68, %p69
      %s71 = ssub.s32 %s37, %s44
      %p72 = scmp.eq.s32.totalorder %s71, 0
      %s74 = sadd.s32 %s73, 1
      %s75 = scalar_select %p72, %s73, %s74
      %p78 = pneg %p72
      %p79 = scmp.eq.s32.totalorder %s37, 1
      %p80 = por %p78, %p79
      %p81 = scmp.ne.s32.totalorder %s73, %s76
      %p82 = scmp.eq.s32.totalorder %s37, 0
      %p83 = por %p81, %p82
      %p84 = scmp.ne.s32.totalorder %s73, %s76
      %p85 = scmp.eq.s32.totalorder %s42, 1
      %p86 = por %p84, %p85
      %p87 = scmp.ne.s32.totalorder %s76, %s77
      %p88 = scmp.eq.s32.totalorder %s42, 0
      %p89 = por %p87, %p88
      %p90 = scmp.ne.s32.totalorder %s76, %s77
      %p91 = scmp.eq.s32.totalorder %s43, 1
      %p92 = por %p90, %p91
      %p94 = scmp.ne.s32.totalorder %s77, %s93
      %p95 = scmp.eq.s32.totalorder %s43, 0
      %p96 = por %p94, %p95
      %s97 = ssub.s32 %s37, %s44
      %p98 = scmp.eq.s32.totalorder %s97, 0
      %s100 = sadd.s32 %s99, 1
      %s101 = scalar_select %p98, %s99, %s100
      %p104 = pneg %p98
      %p105 = scmp.eq.s32.totalorder %s37, 1
      %p106 = por %p104, %p105
      %p107 = scmp.ne.s32.totalorder %s99, %s102
      %p108 = scmp.eq.s32.totalorder %s37, 0
      %p109 = por %p107, %p108
      %p110 = scmp.ne.s32.totalorder %s99, %s102
      %p111 = scmp.eq.s32.totalorder %s42, 1
      %p112 = por %p110, %p111
      %p113 = scmp.ne.s32.totalorder %s102, %s103
      %p114 = scmp.eq.s32.totalorder %s42, 0
      %p115 = por %p113, %p114
      %p116 = scmp.ne.s32.totalorder %s102, %s103
      %p117 = scmp.eq.s32.totalorder %s43, 1
      %p118 = por %p116, %p117
      %p120 = scmp.ne.s32.totalorder %s103, %s119
      %p121 = scmp.eq.s32.totalorder %s43, 0
      %p122 = por %p120, %p121
      %s123 = ssub.s32 %s37, %s44
      %p124 = scmp.eq.s32.totalorder %s123, 0
      %s126 = sadd.s32 %s125, 1
      %s127 = scalar_select %p124, %s125, %s126
      %p130 = pneg %p124
      %p131 = scmp.eq.s32.totalorder %s37, 1
      %p132 = por %p130, %p131
      %p133 = scmp.ne.s32.totalorder %s125, %s128
      %p134 = scmp.eq.s32.totalorder %s37, 0
      %p135 = por %p133, %p134
      %p136 = scmp.ne.s32.totalorder %s125, %s128
      %p137 = scmp.eq.s32.totalorder %s42, 1
      %p138 = por %p136, %p137
      %p139 = scmp.ne.s32.totalorder %s128, %s129
      %p140 = scmp.eq.s32.totalorder %s42, 0
      %p141 = por %p139, %p140
      %p142 = scmp.ne.s32.totalorder %s128, %s129
      %p143 = scmp.eq.s32.totalorder %s43, 1
      %p144 = por %p142, %p143
      %p146 = scmp.ne.s32.totalorder %s129, %s145
      %p147 = scmp.eq.s32.totalorder %s43, 0
      %p148 = por %p146, %p147
      %s150 = sadd.s32 %s149, 1
      %p153 = scmp.eq.s32.totalorder %s37, 1
      %p154 = scmp.ne.s32.totalorder %s149, %s151
      %p155 = scmp.eq.s32.totalorder %s37, 0
      %p156 = por %p154, %p155
      %p157 = scmp.ne.s32.totalorder %s149, %s151
      %p158 = scmp.eq.s32.totalorder %s42, 1
      %p159 = por %p157, %p158
      %p160 = scmp.ne.s32.totalorder %s151, %s152
      %p161 = scmp.eq.s32.totalorder %s42, 0
      %p162 = por %p160, %p161
      %p163 = scmp.ne.s32.totalorder %s151, %s152
      %p164 = scmp.eq.s32.totalorder %s43, 1
      %p165 = por %p163, %p164
      %p167 = scmp.ne.s32.totalorder %s152, %s166
      %p168 = scmp.eq.s32.totalorder %s43, 0
      %p169 = por %p167, %p168
      %s171 = sadd.s32 %s170, 1
      %p174 = scmp.eq.s32.totalorder %s37, 1
      %p175 = scmp.ne.s32.totalorder %s170, %s172
      %p176 = scmp.eq.s32.totalorder %s37, 0
      %p177 = por %p175, %p176
      %p178 = scmp.ne.s32.totalorder %s170, %s172
      %p179 = scmp.eq.s32.totalorder %s42, 1
      %p180 = por %p178, %p179
      %p181 = scmp.ne.s32.totalorder %s172, %s173
      %p182 = scmp.eq.s32.totalorder %s42, 0
      %p183 = por %p181, %p182
      %p184 = scmp.ne.s32.totalorder %s172, %s173
      %p185 = scmp.eq.s32.totalorder %s43, 1
      %p186 = por %p184, %p185
      %p188 = scmp.ne.s32.totalorder %s173, %s187
      %p189 = scmp.eq.s32.totalorder %s43, 0
      %p190 = por %p188, %p189
      %s192 = sadd.s32 %s191, 1
      %p195 = scmp.eq.s32.totalorder %s37, 1
      %p196 = scmp.ne.s32.totalorder %s191, %s193
      %p197 = scmp.eq.s32.totalorder %s37, 0
      %p198 = por %p196, %p197
      %p199 = scmp.ne.s32.totalorder %s191, %s193
      %p200 = scmp.eq.s32.totalorder %s42, 1
      %p201 = por %p199, %p200
      %p202 = scmp.ne.s32.totalorder %s193, %s194
      %p203 = scmp.eq.s32.totalorder %s42, 0
      %p204 = por %p202, %p203
      %p205 = scmp.ne.s32.totalorder %s193, %s194
      %p206 = scmp.eq.s32.totalorder %s43, 1
      %p207 = por %p205, %p206
      %p209 = scmp.ne.s32.totalorder %s194, %s208
      %p210 = scmp.eq.s32.totalorder %s43, 0
      %p211 = por %p209, %p210
      %s213 = sadd.s32 %s212, 1
      %p216 = scmp.eq.s32.totalorder %s37, 1
      %p217 = scmp.ne.s32.totalorder %s212, %s214
      %p218 = scmp.eq.s32.totalorder %s37, 0
      %p219 = por %p217, %p218
      %p220 = scmp.ne.s32.totalorder %s212, %s214
      %p221 = scmp.eq.s32.totalorder %s42, 1
      %p222 = por %p220, %p221
      %p223 = scmp.ne.s32.totalorder %s214, %s215
      %p224 = scmp.eq.s32.totalorder %s42, 0
      %p225 = por %p223, %p224
      %p226 = scmp.ne.s32.totalorder %s214, %s215
      %p227 = scmp.eq.s32.totalorder %s43, 1
      %p228 = por %p226, %p227
      %p230 = scmp.ne.s32.totalorder %s215, %s229
      %p231 = scmp.eq.s32.totalorder %s43, 0
      %p232 = por %p230, %p231
      %s234 = sadd.s32 %s233, 1
      %p237 = scmp.eq.s32.totalorder %s37, 1
      %p238 = scmp.ne.s32.totalorder %s233, %s235
      %p239 = scmp.eq.s32.totalorder %s37, 0
      %p240 = por %p238, %p239
      %p241 = scmp.ne.s32.totalorder %s233, %s235
      %p242 = scmp.eq.s32.totalorder %s42, 1
      %p243 = por %p241, %p242
      %p244 = scmp.ne.s32.totalorder %s235, %s236
      %p245 = scmp.eq.s32.totalorder %s42, 0
      %p246 = por %p244, %p245
      %p247 = scmp.ne.s32.totalorder %s235, %s236
      %p248 = scmp.eq.s32.totalorder %s43, 1
      %p249 = por %p247, %p248
      %p251 = scmp.ne.s32.totalorder %s236, %s250
      %p252 = scmp.eq.s32.totalorder %s43, 0
      %p253 = por %p251, %p252
      %s255 = sadd.s32 %s254, 1
      %p258 = scmp.eq.s32.totalorder %s37, 1
      %p259 = scmp.ne.s32.totalorder %s254, %s256
      %p260 = scmp.eq.s32.totalorder %s37, 0
      %p261 = por %p259, %p260
      %p262 = scmp.ne.s32.totalorder %s254, %s256
      %p263 = scmp.eq.s32.totalorder %s42, 1
      %p264 = por %p262, %p263
      %p265 = scmp.ne.s32.totalorder %s256, %s257
      %p266 = scmp.eq.s32.totalorder %s42, 0
      %p267 = por %p265, %p266
      %p268 = scmp.ne.s32.totalorder %s256, %s257
      %p269 = scmp.eq.s32.totalorder %s43, 1
      %p270 = por %p268, %p269
      %p272 = scmp.ne.s32.totalorder %s257, %s271
      %p273 = scmp.eq.s32.totalorder %s43, 0
      %p274 = por %p272, %p273
      %s276 = sadd.s32 %s275, 1
      %p279 = scmp.eq.s32.totalorder %s37, 1
      %p280 = scmp.ne.s32.totalorder %s275, %s277
      %p281 = scmp.eq.s32.totalorder %s37, 0
      %p282 = por %p280, %p281
      %p283 = scmp.ne.s32.totalorder %s275, %s277
      %p284 = scmp.eq.s32.totalorder %s42, 1
      %p285 = por %p283, %p284
      %p286 = scmp.ne.s32.totalorder %s277, %s278
      %p287 = scmp.eq.s32.totalorder %s42, 0
      %p288 = por %p286, %p287
      %p289 = scmp.ne.s32.totalorder %s277, %s278
      %p290 = scmp.eq.s32.totalorder %s43, 1
      %p291 = por %p289, %p290
      %p293 = scmp.ne.s32.totalorder %s278, %s292
      %p294 = scmp.eq.s32.totalorder %s43, 0
      %p295 = por %p293, %p294
      %s297 = sadd.s32 %s296, 1
      %p300 = scmp.eq.s32.totalorder %s37, 1
      %p301 = scmp.ne.s32.totalorder %s296, %s298
      %p302 = scmp.eq.s32.totalorder %s37, 0
      %p303 = por %p301, %p302
      %p304 = scmp.ne.s32.totalorder %s296, %s298
      %p305 = scmp.eq.s32.totalorder %s42, 1
      %p306 = por %p304, %p305
      %p307 = scmp.ne.s32.totalorder %s298, %s299
      %p308 = scmp.eq.s32.totalorder %s42, 0
      %p309 = por %p307, %p308
      %p310 = scmp.ne.s32.totalorder %s298, %s299
      %p311 = scmp.eq.s32.totalorder %s43, 1
      %p312 = por %p310, %p311
      %p314 = scmp.ne.s32.totalorder %s299, %s313
      %p315 = scmp.eq.s32.totalorder %s43, 0
      %p316 = por %p314, %p315
      %s317 = ssub.s32 %s37, %s44
      %p318 = scmp.eq.s32.totalorder %s317, 0
      %s320 = sadd.s32 %s319, 1
      %s321 = scalar_select %p318, %s319, %s320
      %p324 = pneg %p318
      %p325 = scmp.eq.s32.totalorder %s37, 1
      %p326 = por %p324, %p325
      %p327 = scmp.ne.s32.totalorder %s319, %s322
      %p328 = scmp.eq.s32.totalorder %s37, 0
      %p329 = por %p327, %p328
      %p330 = scmp.ne.s32.totalorder %s319, %s322
      %p331 = scmp.eq.s32.totalorder %s42, 1
      %p332 = por %p330, %p331
      %p333 = scmp.ne.s32.totalorder %s322, %s323
      %p334 = scmp.eq.s32.totalorder %s42, 0
      %p335 = por %p333, %p334
      %p336 = scmp.ne.s32.totalorder %s322, %s323
      %p337 = scmp.eq.s32.totalorder %s43, 1
      %p338 = por %p336, %p337
      %p340 = scmp.ne.s32.totalorder %s323, %s339
      %p341 = scmp.eq.s32.totalorder %s43, 0
      %p342 = por %p340, %p341
      %s343 = ssub.s32 %s37, %s44
      %p344 = scmp.eq.s32.totalorder %s343, 0
      %s346 = sadd.s32 %s345, 1
      %s347 = scalar_select %p344, %s345, %s346
      %p350 = pneg %p344
      %p351 = scmp.eq.s32.totalorder %s37, 1
      %p352 = por %p350, %p351
      %p353 = scmp.ne.s32.totalorder %s345, %s348
      %p354 = scmp.eq.s32.totalorder %s37, 0
      %p355 = por %p353, %p354
      %p356 = scmp.ne.s32.totalorder %s345, %s348
      %p357 = scmp.eq.s32.totalorder %s42, 1
      %p358 = por %p356, %p357
      %p359 = scmp.ne.s32.totalorder %s348, %s349
      %p360 = scmp.eq.s32.totalorder %s42, 0
      %p361 = por %p359, %p360
      %p362 = scmp.ne.s32.totalorder %s348, %s349
      %p363 = scmp.eq.s32.totalorder %s43, 1
      %p364 = por %p362, %p363
      %p366 = scmp.ne.s32.totalorder %s349, %s365
      %p367 = scmp.eq.s32.totalorder %s43, 0
      %p368 = por %p366, %p367
      %s369 = ssub.s32 %s37, %s44
      %p370 = scmp.eq.s32.totalorder %s369, 0
      %s372 = sadd.s32 %s371, 1
      %s373 = scalar_select %p370, %s371, %s372
      %p376 = pneg %p370
      %p377 = scmp.eq.s32.totalorder %s37, 1
      %p378 = por %p376, %p377
      %p379 = scmp.ne.s32.totalorder %s371, %s374
      %p380 = scmp.eq.s32.totalorder %s37, 0
      %p381 = por %p379, %p380
      %p382 = scmp.ne.s32.totalorder %s371, %s374
      %p383 = scmp.eq.s32.totalorder %s42, 1
      %p384 = por %p382, %p383
      %p385 = scmp.ne.s32.totalorder %s374, %s375
      %p386 = scmp.eq.s32.totalorder %s42, 0
      %p387 = por %p385, %p386
      %p388 = scmp.ne.s32.totalorder %s374, %s375
      %p389 = scmp.eq.s32.totalorder %s43, 1
      %p390 = por %p388, %p389
      %p392 = scmp.ne.s32.totalorder %s375, %s391
      %p393 = scmp.eq.s32.totalorder %s43, 0
      %p394 = por %p392, %p393
      %s395 = ssub.s32 %s37, %s44
      %p396 = scmp.eq.s32.totalorder %s395, 0
      %s398 = sadd.s32 %s397, 1
      %s399 = scalar_select %p396, %s397, %s398
      %p402 = pneg %p396
      %p403 = scmp.eq.s32.totalorder %s37, 1
      %p404 = por %p402, %p403
      %p405 = scmp.ne.s32.totalorder %s397, %s400
      %p406 = scmp.eq.s32.totalorder %s37, 0
      %p407 = por %p405, %p406
      %p408 = scmp.ne.s32.totalorder %s397, %s400
      %p409 = scmp.eq.s32.totalorder %s42, 1
      %p410 = por %p408, %p409
      %p411 = scmp.ne.s32.totalorder %s400, %s401
      %p412 = scmp.eq.s32.totalorder %s42, 0
      %p413 = por %p411, %p412
      %p414 = scmp.ne.s32.totalorder %s400, %s401
      %p415 = scmp.eq.s32.totalorder %s43, 1
      %p416 = por %p414, %p415
      %p418 = scmp.ne.s32.totalorder %s401, %s417
      %p419 = scmp.eq.s32.totalorder %s43, 0
      %p420 = por %p418, %p419
      %p421 = scmp.le.s32.totalorder 1, %s37
      %p422 = scmp.lt.s32.totalorder %s37, 3
      %p423 = pnand %p421, %p422
      %p424 = pneg %p423
      // Predicated region
      $region9: #{tpu_custom_call.1} parent=5 // pred_check
        _
      $region10: #{tpu_custom_call.1} parent=5 // pred_check_branch
        %426 = sbr.rel (%p423) target = $region12
      $region11: #{tpu_custom_call.1} parent=5 // pred_region
        %s427 = ssub.s32 %s37, 1
        // Predicated region
        $region13: #{tpu_custom_call.1} parent=11 // pred_check
          %p428 = pneg %p162
        $region14: #{tpu_custom_call.1} parent=11 // pred_check_branch
          %430 = sbr.rel (%p428) target = $region16
        $region15: #{tpu_custom_call.1} parent=11 // pred_region
          %432 = vsyncadd [#allocation9], 0
          %s433 = sshll.u32 %s4, 4
          %s434 = int_to_ptr.hbm [resolvable:$true] %s433
          %s435 = sshll.u32 [#allocation8], 4
          %s436 = int_to_ptr.vmem [resolvable:$true] %s435
          %441 = dma.hbm_to_vmem [thread:$0]  %s434, 2048, %s436, [#allocation9], 128, 128, 8
        $region16: #{tpu_custom_call.1} parent=11 // pred_fallthru
          _
        // Predicated region
        $region17: #{tpu_custom_call.1} parent=11 // pred_check
          %p442 = pneg %p183
        $region18: #{tpu_custom_call.1} parent=11 // pred_check_branch
          %444 = sbr.rel (%p442) target = $region20
        $region19: #{tpu_custom_call.1} parent=11 // pred_region
          %446 = vsyncadd [#allocation9], 0
          %s447 = sshll.u32 %s5, 4
          %s448 = int_to_ptr.hbm [resolvable:$true] %s447
          %s449 = sshll.u32 [#allocation10], 4
          %s450 = int_to_ptr.vmem [resolvable:$true] %s449
          %455 = dma.hbm_to_vmem [thread:$0]  %s448, 2048, %s450, [#allocation9], 128, 128, 8
        $region20: #{tpu_custom_call.1} parent=11 // pred_fallthru
          _
        // Predicated region
        $region21: #{tpu_custom_call.1} parent=11 // pred_check
          %p456 = pneg %p204
        $region22: #{tpu_custom_call.1} parent=11 // pred_check_branch
          %458 = sbr.rel (%p456) target = $region24
        $region23: #{tpu_custom_call.1} parent=11 // pred_region
          %460 = vsyncadd [#allocation12], 0
          %s461 = sshll.u32 %s6, 4
          %s462 = int_to_ptr.hbm [resolvable:$true] %s461
          %s463 = sshll.u32 [#allocation11], 4
          %s464 = int_to_ptr.vmem [resolvable:$true] %s463
          %469 = dma.hbm_to_vmem [thread:$0]  %s462, 2048, %s464, [#allocation12], 128, 128, 8
        $region24: #{tpu_custom_call.1} parent=11 // pred_fallthru
          _
        // Predicated region
        $region25: #{tpu_custom_call.1} parent=11 // pred_check
          %p470 = pneg %p225
        $region26: #{tpu_custom_call.1} parent=11 // pred_check_branch
          %472 = sbr.rel (%p470) target = $region28
        $region27: #{tpu_custom_call.1} parent=11 // pred_region
          _
        $region28: #{tpu_custom_call.1} parent=11 // pred_fallthru
          _
        // Predicated region
        $region29: #{tpu_custom_call.1} parent=11 // pred_check
          %p473 = pneg %p246
        $region30: #{tpu_custom_call.1} parent=11 // pred_check_branch
          %475 = sbr.rel (%p473) target = $region32
        $region31: #{tpu_custom_call.1} parent=11 // pred_region
          _
        $region32: #{tpu_custom_call.1} parent=11 // pred_fallthru
          _
        // Predicated region
        $region33: #{tpu_custom_call.1} parent=11 // pred_check
          %p476 = pneg %p267
        $region34: #{tpu_custom_call.1} parent=11 // pred_check_branch
          %478 = sbr.rel (%p476) target = $region36
        $region35: #{tpu_custom_call.1} parent=11 // pred_region
          _
        $region36: #{tpu_custom_call.1} parent=11 // pred_fallthru
          _
        // Predicated region
        $region37: #{tpu_custom_call.1} parent=11 // pred_check
          %p479 = pneg %p288
        $region38: #{tpu_custom_call.1} parent=11 // pred_check_branch
          %481 = sbr.rel (%p479) target = $region40
        $region39: #{tpu_custom_call.1} parent=11 // pred_region
          %483 = vsyncadd [#allocation12], 0
          %s484 = sshll.u32 %s10, 4
          %s485 = int_to_ptr.hbm [resolvable:$true] %s484
          %s486 = sshll.u32 [#allocation13], 4
          %s487 = int_to_ptr.vmem [resolvable:$true] %s486
          %492 = dma.hbm_to_vmem [thread:$0]  %s485, 2048, %s487, [#allocation12], 128, 128, 8
        $region40: #{tpu_custom_call.1} parent=11 // pred_fallthru
          _
        // Predicated region
        $region41: #{tpu_custom_call.1} parent=11 // pred_check
          %p493 = pneg %p309
        $region42: #{tpu_custom_call.1} parent=11 // pred_check_branch
          %495 = sbr.rel (%p493) target = $region44
        $region43: #{tpu_custom_call.1} parent=11 // pred_region
          %497 = vsyncadd [#allocation15], 0
          %s498 = sshll.u32 %s11, 4
          %s499 = int_to_ptr.hbm [resolvable:$true] %s498
          %s500 = sshll.u32 [#allocation14], 4
          %s501 = int_to_ptr.vmem [resolvable:$true] %s500
          %506 = dma.hbm_to_vmem [thread:$0]  %s499, 2048, %s501, [#allocation15], 128, 128, 8
        $region44: #{tpu_custom_call.1} parent=11 // pred_fallthru
          _
      $region12: #{tpu_custom_call.1} parent=5 // pred_fallthru
        _
      %p507 = scmp.lt.s32.totalorder %s37, 2
      // Predicated region
      $region45: #{tpu_custom_call.1} parent=5 // pred_check
        %p508 = pneg %p507
      $region46: #{tpu_custom_call.1} parent=5 // pred_check_branch
        %510 = sbr.rel (%p508) target = $region48
      $region47: #{tpu_custom_call.1} parent=5 // pred_region
        // Predicated region
        $region49: #{tpu_custom_call.1} parent=47 // pred_check
          %p511 = pneg %p57
        $region50: #{tpu_custom_call.1} parent=47 // pred_check_branch
          %513 = sbr.rel (%p511) target = $region52
        $region51: #{tpu_custom_call.1} parent=47 // pred_region
          %s514 = smul.u32 16, %s37
          %p515 = scmp.lt.s32.totalorder %s514, 31
          %s516 = scalar_select %p515, %s514, 31
          %s517 = smul.addr %s516, 8
          %s518 = scalar_lea.vmem %s0, %s517
          %s519 = smul.u32 16, %s37
        $region52: #{tpu_custom_call.1} parent=47 // pred_fallthru
          _
        // Predicated region
        $region53: #{tpu_custom_call.1} parent=47 // pred_check
          %p520 = pneg %p83
        $region54: #{tpu_custom_call.1} parent=47 // pred_check_branch
          %522 = sbr.rel (%p520) target = $region56
        $region55: #{tpu_custom_call.1} parent=47 // pred_region
          %s523 = sand.u32 %s73, 1
          %s524 = scalar_lea.sflag [#allocation3], %s523
          %s525 = sand.u32 %s73, 1
          %s526 = smul.addr %s525, 128
          %s527 = scalar_lea.vmem [#allocation2], %s526
          %s528 = smul.u32 16, %s37
          %530 = vsyncadd %s524, 0
          %s531 = smul.addr %s528, 8
          %s532 = scalar_lea.hbm %s1, %s531
          %s533 = sshll.u32 %s532, 4
          %s534 = int_to_ptr.hbm [resolvable:$true] %s533
          %s535 = sshll.u32 %s527, 4
          %s536 = int_to_ptr.vmem [resolvable:$true] %s535
          %541 = dma.hbm_to_vmem [thread:$0]  %s534, 2048, %s536, %s524, 128, 128, 8
        $region56: #{tpu_custom_call.1} parent=47 // pred_fallthru
          _
        // Predicated region
        $region57: #{tpu_custom_call.1} parent=47 // pred_check
          %p542 = pneg %p109
        $region58: #{tpu_custom_call.1} parent=47 // pred_check_branch
          %544 = sbr.rel (%p542) target = $region60
        $region59: #{tpu_custom_call.1} parent=47 // pred_region
          %s545 = sand.u32 %s37, 1
          %s546 = scalar_lea.sflag [#allocation6], %s545
          %s547 = sand.u32 %s99, 1
          %s548 = smul.addr %s547, 128
          %s549 = scalar_lea.vmem [#allocation5], %s548
          %s550 = smul.u32 16, %s37
          %552 = vsyncadd %s546, 0
          %s553 = smul.addr %s550, 8
          %s554 = scalar_lea.hbm %s2, %s553
          %s555 = sshll.u32 %s554, 4
          %s556 = int_to_ptr.hbm [resolvable:$true] %s555
          %s557 = sshll.u32 %s549, 4
          %s558 = int_to_ptr.vmem [resolvable:$true] %s557
          %563 = dma.hbm_to_vmem [thread:$0]  %s556, 2048, %s558, %s546, 128, 128, 8
        $region60: #{tpu_custom_call.1} parent=47 // pred_fallthru
          _
        // Predicated region
        $region61: #{tpu_custom_call.1} parent=47 // pred_check
          %p564 = pneg %p135
        $region62: #{tpu_custom_call.1} parent=47 // pred_check_branch
          %566 = sbr.rel (%p564) target = $region64
        $region63: #{tpu_custom_call.1} parent=47 // pred_region
          %s567 = sand.u32 %s37, 1
          %s568 = scalar_lea.sflag [#allocation6], %s567
          %s569 = sand.u32 %s125, 1
          %s570 = smul.addr %s569, 128
          %s571 = scalar_lea.vmem [#allocation7], %s570
          %s572 = smul.u32 16, %s37
          %574 = vsyncadd %s568, 0
          %s575 = smul.addr %s572, 8
          %s576 = scalar_lea.hbm %s3, %s575
          %s577 = sshll.u32 %s576, 4
          %s578 = int_to_ptr.hbm [resolvable:$true] %s577
          %s579 = sshll.u32 %s571, 4
          %s580 = int_to_ptr.vmem [resolvable:$true] %s579
          %585 = dma.hbm_to_vmem [thread:$0]  %s578, 2048, %s580, %s568, 128, 128, 8
        $region64: #{tpu_custom_call.1} parent=47 // pred_fallthru
          _
        // Predicated region
        $region65: #{tpu_custom_call.1} parent=47 // pred_check
          %p586 = pneg %p329
        $region66: #{tpu_custom_call.1} parent=47 // pred_check_branch
          %588 = sbr.rel (%p586) target = $region68
        $region67: #{tpu_custom_call.1} parent=47 // pred_region
          %s589 = smul.u32 16, %s37
          %p590 = scmp.lt.s32.totalorder %s589, 31
          %s591 = scalar_select %p590, %s589, 31
          %s592 = smul.addr %s591, 8
          %s593 = scalar_lea.vmem %s12, %s592
          %s594 = smul.u32 16, %s37
        $region68: #{tpu_custom_call.1} parent=47 // pred_fallthru
          _
      $region48: #{tpu_custom_call.1} parent=5 // pred_fallthru
        _
      %p595 = scmp.le.s32.totalorder 1, %s37
      %p596 = scmp.lt.s32.totalorder %s37, 3
      %p597 = pnand %p595, %p596
      %p598 = pneg %p597
      // Predicated region
      $region69: #{tpu_custom_call.1} parent=5 // pred_check
        _
      $region70: #{tpu_custom_call.1} parent=5 // pred_check_branch
        %600 = sbr.rel (%p597) target = $region72
      $region71: #{tpu_custom_call.1} parent=5 // pred_region
        %s601 = ssub.s32 %s37, 1
        %s602 = sand.u32 %s76, 1
        %s603 = scalar_lea.sflag [#allocation3], %s602
        %s604 = sand.u32 %s76, 1
        %s605 = smul.addr %s604, 128
        %s606 = scalar_lea.vmem [#allocation2], %s605
        // Predicated region
        $region73: #{tpu_custom_call.1} parent=71 // pred_check
          %p607 = pneg %p89
        $region74: #{tpu_custom_call.1} parent=71 // pred_check_branch
          %609 = sbr.rel (%p607) target = $region76
        $region75: #{tpu_custom_call.1} parent=71 // pred_region
          %611 = dma.done %s603, 2048
        $region76: #{tpu_custom_call.1} parent=71 // pred_fallthru
          _
        %s612 = sand.u32 %s42, 1
        %s613 = scalar_lea.sflag [#allocation6], %s612
        %s614 = sand.u32 %s102, 1
        %s615 = smul.addr %s614, 128
        %s616 = scalar_lea.vmem [#allocation5], %s615
        // Predicated region
        $region77: #{tpu_custom_call.1} parent=71 // pred_check
          %p617 = pneg %p115
        $region78: #{tpu_custom_call.1} parent=71 // pred_check_branch
          %619 = sbr.rel (%p617) target = $region80
        $region79: #{tpu_custom_call.1} parent=71 // pred_region
          %621 = dma.done %s613, 2048
        $region80: #{tpu_custom_call.1} parent=71 // pred_fallthru
          _
        %s622 = sand.u32 %s42, 1
        %s623 = scalar_lea.sflag [#allocation6], %s622
        %s624 = sand.u32 %s128, 1
        %s625 = smul.addr %s624, 128
        %s626 = scalar_lea.vmem [#allocation7], %s625
        // Predicated region
        $region81: #{tpu_custom_call.1} parent=71 // pred_check
          %p627 = pneg %p141
        $region82: #{tpu_custom_call.1} parent=71 // pred_check_branch
          %629 = sbr.rel (%p627) target = $region84
        $region83: #{tpu_custom_call.1} parent=71 // pred_region
          %631 = dma.done %s623, 2048
        $region84: #{tpu_custom_call.1} parent=71 // pred_fallthru
          _
        // Predicated region
        $region85: #{tpu_custom_call.1} parent=71 // pred_check
          %p632 = pneg %p162
        $region86: #{tpu_custom_call.1} parent=71 // pred_check_branch
          %634 = sbr.rel (%p632) target = $region88
        $region87: #{tpu_custom_call.1} parent=71 // pred_region
          %636 = dma.done [#allocation9], 2048
        $region88: #{tpu_custom_call.1} parent=71 // pred_fallthru
          _
        // Predicated region
        $region89: #{tpu_custom_call.1} parent=71 // pred_check
          %p637 = pneg %p183
        $region90: #{tpu_custom_call.1} parent=71 // pred_check_branch
          %639 = sbr.rel (%p637) target = $region92
        $region91: #{tpu_custom_call.1} parent=71 // pred_region
          %641 = dma.done [#allocation9], 2048
        $region92: #{tpu_custom_call.1} parent=71 // pred_fallthru
          _
        // Predicated region
        $region93: #{tpu_custom_call.1} parent=71 // pred_check
          %p642 = pneg %p204
        $region94: #{tpu_custom_call.1} parent=71 // pred_check_branch
          %644 = sbr.rel (%p642) target = $region96
        $region95: #{tpu_custom_call.1} parent=71 // pred_region
          %646 = dma.done [#allocation12], 2048
        $region96: #{tpu_custom_call.1} parent=71 // pred_fallthru
          _
        // Predicated region
        $region97: #{tpu_custom_call.1} parent=71 // pred_check
          %p647 = pneg %p288
        $region98: #{tpu_custom_call.1} parent=71 // pred_check_branch
          %649 = sbr.rel (%p647) target = $region100
        $region99: #{tpu_custom_call.1} parent=71 // pred_region
          %651 = dma.done [#allocation12], 2048
        $region100: #{tpu_custom_call.1} parent=71 // pred_fallthru
          _
        // Predicated region
        $region101: #{tpu_custom_call.1} parent=71 // pred_check
          %p652 = pneg %p309
        $region102: #{tpu_custom_call.1} parent=71 // pred_check_branch
          %654 = sbr.rel (%p652) target = $region104
        $region103: #{tpu_custom_call.1} parent=71 // pred_region
          %656 = dma.done [#allocation15], 2048
        $region104: #{tpu_custom_call.1} parent=71 // pred_fallthru
          _
        %s657 = smul.u32 16, %s42
        %p658 = scmp.lt.s32.totalorder %s657, 31
        %s659 = scalar_select %p658, %s657, 31
        %s660 = smul.addr %s659, 8
        %s661 = scalar_lea.vmem %s0, %s660
        %p662 = pneg %p63
        %p663 = pneg %p60
        %s664 = sand.u32 %s76, 1
        %s665 = scalar_lea.sflag [#allocation3], %s664
        %s666 = sand.u32 %s76, 1
        %s667 = smul.addr %s666, 128
        %s668 = scalar_lea.vmem [#allocation2], %s667
        %p669 = pneg %p89
        %p670 = pneg %p86
        %s671 = sand.u32 %s42, 1
        %s672 = scalar_lea.sflag [#allocation6], %s671
        %s673 = sand.u32 %s102, 1
        %s674 = smul.addr %s673, 128
        %s675 = scalar_lea.vmem [#allocation5], %s674
        %p676 = pneg %p115
        %p677 = pneg %p112
        %s678 = sand.u32 %s42, 1
        %s679 = scalar_lea.sflag [#allocation6], %s678
        %s680 = sand.u32 %s128, 1
        %s681 = smul.addr %s680, 128
        %s682 = scalar_lea.vmem [#allocation7], %s681
        %p683 = pneg %p141
        %p684 = pneg %p138
        %p685 = pneg %p162
        %p686 = pneg %p159
        %p687 = pneg %p183
        %p688 = pneg %p180
        %p689 = pneg %p204
        %p690 = pneg %p201
        %p691 = pneg %p225
        %p692 = pneg %p222
        %p693 = pneg %p246
        %p694 = pneg %p243
        %p695 = pneg %p267
        %p696 = pneg %p264
        %p697 = pneg %p288
        %p698 = pneg %p285
        %p699 = pneg %p309
        %p700 = pneg %p306
        %s701 = smul.u32 16, %s42
        %p702 = scmp.lt.s32.totalorder %s701, 31
        %s703 = scalar_select %p702, %s701, 31
        %s704 = smul.addr %s703, 8
        %s705 = scalar_lea.vmem %s12, %s704
        %p706 = pneg %p335
        %p707 = pneg %p332
        %p708 = pneg %p361
        %p709 = pneg %p358
        %s710 = sand.u32 %s348, 1
        %s711 = scalar_lea.sflag [#allocation4], %s710
        %s712 = sand.u32 %s348, 1
        %s713 = smul.addr %s712, 128
        %s714 = scalar_lea.vmem [#allocation16], %s713
        %p715 = pneg %p387
        %p716 = pneg %p384
        %s717 = sand.u32 %s42, 1
        %s718 = scalar_lea.sflag [#allocation18], %s717
        %s719 = sand.u32 %s374, 1
        %s720 = smul.addr %s719, 128
        %s721 = scalar_lea.vmem [#allocation17], %s720
        %p722 = pneg %p413
        %p723 = pneg %p410
        %s724 = sand.u32 %s42, 1
        %s725 = scalar_lea.sflag [#allocation18], %s724
        %s726 = sand.u32 %s400, 1
        %s727 = smul.addr %s726, 128
        %s728 = scalar_lea.vmem [#allocation19], %s727
        %s729 = smul.u32 16, %s42
        %p730 = scmp.lt.s32.totalorder %s729, 31
        %s731 = scalar_select %p730, %s729, 31
        %s732 = smul.addr %s731, 8
        %s733 = scalar_lea.vmem %s0, %s732
        %s734 = smul.u32 16, %s42
        %s735 = smul.u32 16, %s42
        %s736 = smul.u32 16, %s42
        %s737 = smul.u32 16, %s42
        %s738 = smul.u32 16, %s42
        %p739 = scmp.lt.s32.totalorder %s738, 31
        %s740 = scalar_select %p739, %s738, 31
        %s741 = smul.addr %s740, 8
        %s742 = scalar_lea.vmem %s12, %s741
        %s743 = smul.u32 16, %s42
        %s744 = smul.u32 16, %s42
        %s745 = smul.u32 16, %s42
        %s746 = smul.u32 16, %s42
        %v747 = vld [vmem:[%s733] sm:$0xff]
        %v748 = vld [vmem:[%s733 + $0x8] sm:$0xff]
        %v749 = vld [vmem:[%s733 + $0x10] sm:$0xff]
        %v750 = vld [vmem:[%s733 + $0x18] sm:$0xff]
        %v751 = vld [vmem:[%s733 + $0x20] sm:$0xff]
        %v752 = vld [vmem:[%s733 + $0x28] sm:$0xff]
        %v753 = vld [vmem:[%s733 + $0x30] sm:$0xff]
        %v754 = vld [vmem:[%s733 + $0x38] sm:$0xff]
        %v755 = vld [vmem:[%s733 + $0x40] sm:$0xff]
        %v756 = vld [vmem:[%s733 + $0x48] sm:$0xff]
        %v757 = vld [vmem:[%s733 + $0x50] sm:$0xff]
        %v758 = vld [vmem:[%s733 + $0x58] sm:$0xff]
        %v759 = vld [vmem:[%s733 + $0x60] sm:$0xff]
        %v760 = vld [vmem:[%s733 + $0x68] sm:$0xff]
        %v761 = vld [vmem:[%s733 + $0x70] sm:$0xff]
        %v762 = vld [vmem:[%s733 + $0x78] sm:$0xff]
        %v763 = vld [vmem:[#allocation8] sm:$0xff]
        %v764 = vld [vmem:[#allocation8 + $0x8] sm:$0xff]
        %v765 = vld [vmem:[#allocation8 + $0x10] sm:$0xff]
        %v766 = vld [vmem:[#allocation8 + $0x18] sm:$0xff]
        %v767 = vld [vmem:[#allocation8 + $0x20] sm:$0xff]
        %v768 = vld [vmem:[#allocation8 + $0x28] sm:$0xff]
        %v769 = vld [vmem:[#allocation8 + $0x30] sm:$0xff]
        %v770 = vld [vmem:[#allocation8 + $0x38] sm:$0xff]
        %v771 = vld [vmem:[#allocation8 + $0x40] sm:$0xff]
        %v772 = vld [vmem:[#allocation8 + $0x48] sm:$0xff]
        %v773 = vld [vmem:[#allocation8 + $0x50] sm:$0xff]
        %v774 = vld [vmem:[#allocation8 + $0x58] sm:$0xff]
        %v775 = vld [vmem:[#allocation8 + $0x60] sm:$0xff]
        %v776 = vld [vmem:[#allocation8 + $0x68] sm:$0xff]
        %v777 = vld [vmem:[#allocation8 + $0x70] sm:$0xff]
        %v778 = vld [vmem:[#allocation8 + $0x78] sm:$0xff]
        %v779 = vld [vmem:[#allocation10] sm:$0xff]
        %v780 = vld [vmem:[#allocation10 + $0x8] sm:$0xff]
        %v781 = vld [vmem:[#allocation10 + $0x10] sm:$0xff]
        %v782 = vld [vmem:[#allocation10 + $0x18] sm:$0xff]
        %v783 = vld [vmem:[#allocation10 + $0x20] sm:$0xff]
        %v784 = vld [vmem:[#allocation10 + $0x28] sm:$0xff]
        %v785 = vld [vmem:[#allocation10 + $0x30] sm:$0xff]
        %v786 = vld [vmem:[#allocation10 + $0x38] sm:$0xff]
        %v787 = vld [vmem:[#allocation10 + $0x40] sm:$0xff]
        %v788 = vld [vmem:[#allocation10 + $0x48] sm:$0xff]
        %v789 = vld [vmem:[#allocation10 + $0x50] sm:$0xff]
        %v790 = vld [vmem:[#allocation10 + $0x58] sm:$0xff]
        %v791 = vld [vmem:[#allocation10 + $0x60] sm:$0xff]
        %v792 = vld [vmem:[#allocation10 + $0x68] sm:$0xff]
        %v793 = vld [vmem:[#allocation10 + $0x70] sm:$0xff]
        %v794 = vld [vmem:[#allocation10 + $0x78] sm:$0xff]
        %v795 = vld [vmem:[#allocation11] sm:$0xff]
        %v796 = vld [vmem:[#allocation11 + $0x8] sm:$0xff]
        %v797 = vld [vmem:[#allocation11 + $0x10] sm:$0xff]
        %v798 = vld [vmem:[#allocation11 + $0x18] sm:$0xff]
        %v799 = vld [vmem:[#allocation11 + $0x20] sm:$0xff]
        %v800 = vld [vmem:[#allocation11 + $0x28] sm:$0xff]
        %v801 = vld [vmem:[#allocation11 + $0x30] sm:$0xff]
        %v802 = vld [vmem:[#allocation11 + $0x38] sm:$0xff]
        %v803 = vld [vmem:[#allocation11 + $0x40] sm:$0xff]
        %v804 = vld [vmem:[#allocation11 + $0x48] sm:$0xff]
        %v805 = vld [vmem:[#allocation11 + $0x50] sm:$0xff]
        %v806 = vld [vmem:[#allocation11 + $0x58] sm:$0xff]
        %v807 = vld [vmem:[#allocation11 + $0x60] sm:$0xff]
        %v808 = vld [vmem:[#allocation11 + $0x68] sm:$0xff]
        %v809 = vld [vmem:[#allocation11 + $0x70] sm:$0xff]
        %v810 = vld [vmem:[#allocation11 + $0x78] sm:$0xff]
        %v811 = vld [vmem:[#allocation13] sm:$0xff]
        %v812 = vld [vmem:[#allocation13 + $0x8] sm:$0xff]
        %v813 = vld [vmem:[#allocation13 + $0x10] sm:$0xff]
        %v814 = vld [vmem:[#allocation13 + $0x18] sm:$0xff]
        %v815 = vld [vmem:[#allocation13 + $0x20] sm:$0xff]
        %v816 = vld [vmem:[#allocation13 + $0x28] sm:$0xff]
        %v817 = vld [vmem:[#allocation13 + $0x30] sm:$0xff]
        %v818 = vld [vmem:[#allocation13 + $0x38] sm:$0xff]
        %v819 = vld [vmem:[#allocation13 + $0x40] sm:$0xff]
        %v820 = vld [vmem:[#allocation13 + $0x48] sm:$0xff]
        %v821 = vld [vmem:[#allocation13 + $0x50] sm:$0xff]
        %v822 = vld [vmem:[#allocation13 + $0x58] sm:$0xff]
        %v823 = vld [vmem:[#allocation13 + $0x60] sm:$0xff]
        %v824 = vld [vmem:[#allocation13 + $0x68] sm:$0xff]
        %v825 = vld [vmem:[#allocation13 + $0x70] sm:$0xff]
        %v826 = vld [vmem:[#allocation13 + $0x78] sm:$0xff]
        %v827 = vld [vmem:[#allocation14] sm:$0xff]
        %v828 = vld [vmem:[#allocation14 + $0x8] sm:$0xff]
        %v829 = vld [vmem:[#allocation14 + $0x10] sm:$0xff]
        %v830 = vld [vmem:[#allocation14 + $0x18] sm:$0xff]
        %v831 = vld [vmem:[#allocation14 + $0x20] sm:$0xff]
        %v832 = vld [vmem:[#allocation14 + $0x28] sm:$0xff]
        %v833 = vld [vmem:[#allocation14 + $0x30] sm:$0xff]
        %v834 = vld [vmem:[#allocation14 + $0x38] sm:$0xff]
        %v835 = vld [vmem:[#allocation14 + $0x40] sm:$0xff]
        %v836 = vld [vmem:[#allocation14 + $0x48] sm:$0xff]
        %v837 = vld [vmem:[#allocation14 + $0x50] sm:$0xff]
        %v838 = vld [vmem:[#allocation14 + $0x58] sm:$0xff]
        %v839 = vld [vmem:[#allocation14 + $0x60] sm:$0xff]
        %v840 = vld [vmem:[#allocation14 + $0x68] sm:$0xff]
        %v841 = vld [vmem:[#allocation14 + $0x70] sm:$0xff]
        %v842 = vld [vmem:[#allocation14 + $0x78] sm:$0xff]
        %v843 = vld [vmem:[%s7] sm:$0x1]
        %v845 = vperm.slane %v843, 0
        %v847 = vld [vmem:[%s8] sm:$0x1]
        %v849 = vperm.slane %v847, 0
        %v851 = vld [vmem:[%s9] sm:$0x1]
        %v853 = vperm.slane %v851, 0
        %v855 = vlaneseq
        %v856 = vand.u32 %v855, 127
        %v857 = vld [vmem:[%s742] sm:$0xff]
        %v858 = vld [vmem:[%s742 + $0x8] sm:$0xff]
        %v859 = vld [vmem:[%s742 + $0x10] sm:$0xff]
        %v860 = vld [vmem:[%s742 + $0x18] sm:$0xff]
        %v861 = vld [vmem:[%s742 + $0x20] sm:$0xff]
        %v862 = vld [vmem:[%s742 + $0x28] sm:$0xff]
        %v863 = vld [vmem:[%s742 + $0x30] sm:$0xff]
        %v864 = vld [vmem:[%s742 + $0x38] sm:$0xff]
        %v865 = vld [vmem:[%s742 + $0x40] sm:$0xff]
        %v866 = vld [vmem:[%s742 + $0x48] sm:$0xff]
        %v867 = vld [vmem:[%s742 + $0x50] sm:$0xff]
        %v868 = vld [vmem:[%s742 + $0x58] sm:$0xff]
        %v869 = vld [vmem:[%s742 + $0x60] sm:$0xff]
        %v870 = vld [vmem:[%s742 + $0x68] sm:$0xff]
        %v871 = vld [vmem:[%s742 + $0x70] sm:$0xff]
        %v872 = vld [vmem:[%s742 + $0x78] sm:$0xff]
        %873 = vset.pattern.permute.xlu0 0
        %874 = vperm.xlu0 %873, %v857
        %v875 = vpop.permute.xlu0 %874
        %876 = vset.pattern.permute.xlu0 0
        %877 = vperm.xlu0 %876, %v858
        %v878 = vpop.permute.xlu0 %877
        %879 = vset.pattern.permute.xlu0 0
        %880 = vperm.xlu0 %879, %v859
        %v881 = vpop.permute.xlu0 %880
        %882 = vset.pattern.permute.xlu0 0
        %883 = vperm.xlu0 %882, %v860
        %v884 = vpop.permute.xlu0 %883
        %885 = vset.pattern.permute.xlu0 0
        %886 = vperm.xlu0 %885, %v861
        %v887 = vpop.permute.xlu0 %886
        %888 = vset.pattern.permute.xlu0 0
        %889 = vperm.xlu0 %888, %v862
        %v890 = vpop.permute.xlu0 %889
        %891 = vset.pattern.permute.xlu0 0
        %892 = vperm.xlu0 %891, %v863
        %v893 = vpop.permute.xlu0 %892
        %894 = vset.pattern.permute.xlu0 0
        %895 = vperm.xlu0 %894, %v864
        %v896 = vpop.permute.xlu0 %895
        %897 = vset.pattern.permute.xlu0 0
        %898 = vperm.xlu0 %897, %v865
        %v899 = vpop.permute.xlu0 %898
        %900 = vset.pattern.permute.xlu0 0
        %901 = vperm.xlu0 %900, %v866
        %v902 = vpop.permute.xlu0 %901
        %903 = vset.pattern.permute.xlu0 0
        %904 = vperm.xlu0 %903, %v867
        %v905 = vpop.permute.xlu0 %904
        %906 = vset.pattern.permute.xlu0 0
        %907 = vperm.xlu0 %906, %v868
        %v908 = vpop.permute.xlu0 %907
        %909 = vset.pattern.permute.xlu0 0
        %910 = vperm.xlu0 %909, %v869
        %v911 = vpop.permute.xlu0 %910
        %912 = vset.pattern.permute.xlu0 0
        %913 = vperm.xlu0 %912, %v870
        %v914 = vpop.permute.xlu0 %913
        %915 = vset.pattern.permute.xlu0 0
        %916 = vperm.xlu0 %915, %v871
        %v917 = vpop.permute.xlu0 %916
        %918 = vset.pattern.permute.xlu0 0
        %919 = vperm.xlu0 %918, %v872
        %v920 = vpop.permute.xlu0 %919
        %vm921 = vcmp.eq.s32.totalorder %v856, %v875
        %vm922 = vcmp.eq.s32.totalorder %v856, %v878
        %vm923 = vcmp.eq.s32.totalorder %v856, %v881
        %vm924 = vcmp.eq.s32.totalorder %v856, %v884
        %vm925 = vcmp.eq.s32.totalorder %v856, %v887
        %vm926 = vcmp.eq.s32.totalorder %v856, %v890
        %vm927 = vcmp.eq.s32.totalorder %v856, %v893
        %vm928 = vcmp.eq.s32.totalorder %v856, %v896
        %vm929 = vcmp.eq.s32.totalorder %v856, %v899
        %vm930 = vcmp.eq.s32.totalorder %v856, %v902
        %vm931 = vcmp.eq.s32.totalorder %v856, %v905
        %vm932 = vcmp.eq.s32.totalorder %v856, %v908
        %vm933 = vcmp.eq.s32.totalorder %v856, %v911
        %vm934 = vcmp.eq.s32.totalorder %v856, %v914
        %vm935 = vcmp.eq.s32.totalorder %v856, %v917
        %vm936 = vcmp.eq.s32.totalorder %v856, %v920
        %v937 = vsel %vm921, 1, 0
        %v938 = vsel %vm922, 1, 0
        %v939 = vsel %vm923, 1, 0
        %v940 = vsel %vm924, 1, 0
        %v941 = vsel %vm925, 1, 0
        %v942 = vsel %vm926, 1, 0
        %v943 = vsel %vm927, 1, 0
        %v944 = vsel %vm928, 1, 0
        %v945 = vsel %vm929, 1, 0
        %v946 = vsel %vm930, 1, 0
        %v947 = vsel %vm931, 1, 0
        %v948 = vsel %vm932, 1, 0
        %v949 = vsel %vm933, 1, 0
        %v950 = vsel %vm934, 1, 0
        %v951 = vsel %vm935, 1, 0
        %v952 = vsel %vm936, 1, 0
        %v953 = vcvt.s32.f32 %v937
        %v954 = vcvt.s32.f32 %v938
        %v955 = vcvt.s32.f32 %v939
        %v956 = vcvt.s32.f32 %v940
        %v957 = vcvt.s32.f32 %v941
        %v958 = vcvt.s32.f32 %v942
        %v959 = vcvt.s32.f32 %v943
        %v960 = vcvt.s32.f32 %v944
        %v961 = vcvt.s32.f32 %v945
        %v962 = vcvt.s32.f32 %v946
        %v963 = vcvt.s32.f32 %v947
        %v964 = vcvt.s32.f32 %v948
        %v965 = vcvt.s32.f32 %v949
        %v966 = vcvt.s32.f32 %v950
        %v967 = vcvt.s32.f32 %v951
        %v968 = vcvt.s32.f32 %v952
        %v969 = vld [vmem:[%s606] sm:$0xff]
        %v970 = vld [vmem:[%s606 + $0x8] sm:$0xff]
        %v971 = vld [vmem:[%s606 + $0x10] sm:$0xff]
        %v972 = vld [vmem:[%s606 + $0x18] sm:$0xff]
        %v973 = vld [vmem:[%s606 + $0x20] sm:$0xff]
        %v974 = vld [vmem:[%s606 + $0x28] sm:$0xff]
        %v975 = vld [vmem:[%s606 + $0x30] sm:$0xff]
        %v976 = vld [vmem:[%s606 + $0x38] sm:$0xff]
        %v977 = vld [vmem:[%s606 + $0x40] sm:$0xff]
        %v978 = vld [vmem:[%s606 + $0x48] sm:$0xff]
        %v979 = vld [vmem:[%s606 + $0x50] sm:$0xff]
        %v980 = vld [vmem:[%s606 + $0x58] sm:$0xff]
        %v981 = vld [vmem:[%s606 + $0x60] sm:$0xff]
        %v982 = vld [vmem:[%s606 + $0x68] sm:$0xff]
        %v983 = vld [vmem:[%s606 + $0x70] sm:$0xff]
        %v984 = vld [vmem:[%s606 + $0x78] sm:$0xff]
        %v985 = vld [vmem:[%s616] sm:$0xff]
        %v986 = vld [vmem:[%s616 + $0x8] sm:$0xff]
        %v987 = vld [vmem:[%s616 + $0x10] sm:$0xff]
        %v988 = vld [vmem:[%s616 + $0x18] sm:$0xff]
        %v989 = vld [vmem:[%s616 + $0x20] sm:$0xff]
        %v990 = vld [vmem:[%s616 + $0x28] sm:$0xff]
        %v991 = vld [vmem:[%s616 + $0x30] sm:$0xff]
        %v992 = vld [vmem:[%s616 + $0x38] sm:$0xff]
        %v993 = vld [vmem:[%s616 + $0x40] sm:$0xff]
        %v994 = vld [vmem:[%s616 + $0x48] sm:$0xff]
        %v995 = vld [vmem:[%s616 + $0x50] sm:$0xff]
        %v996 = vld [vmem:[%s616 + $0x58] sm:$0xff]
        %v997 = vld [vmem:[%s616 + $0x60] sm:$0xff]
        %v998 = vld [vmem:[%s616 + $0x68] sm:$0xff]
        %v999 = vld [vmem:[%s616 + $0x70] sm:$0xff]
        %v1000 = vld [vmem:[%s616 + $0x78] sm:$0xff]
        %v1001 = vld [vmem:[%s626] sm:$0xff]
        %v1002 = vld [vmem:[%s626 + $0x8] sm:$0xff]
        %v1003 = vld [vmem:[%s626 + $0x10] sm:$0xff]
        %v1004 = vld [vmem:[%s626 + $0x18] sm:$0xff]
        %v1005 = vld [vmem:[%s626 + $0x20] sm:$0xff]
        %v1006 = vld [vmem:[%s626 + $0x28] sm:$0xff]
        %v1007 = vld [vmem:[%s626 + $0x30] sm:$0xff]
        %v1008 = vld [vmem:[%s626 + $0x38] sm:$0xff]
        %v1009 = vld [vmem:[%s626 + $0x40] sm:$0xff]
        %v1010 = vld [vmem:[%s626 + $0x48] sm:$0xff]
        %v1011 = vld [vmem:[%s626 + $0x50] sm:$0xff]
        %v1012 = vld [vmem:[%s626 + $0x58] sm:$0xff]
        %v1013 = vld [vmem:[%s626 + $0x60] sm:$0xff]
        %v1014 = vld [vmem:[%s626 + $0x68] sm:$0xff]
        %v1015 = vld [vmem:[%s626 + $0x70] sm:$0xff]
        %v1016 = vld [vmem:[%s626 + $0x78] sm:$0xff]
        %1017 = vmatpush.msra.mxu0 %v778
        %1018 = vmatpush.msra.mxu0 %v777
        %1019 = vmatpush.msra.mxu0 %v776
        %1020 = vmatpush.msra.mxu0 %v775
        %1021 = vmatpush.msra.mxu0 %v774
        %1022 = vmatpush.msra.mxu0 %v773
        %1023 = vmatpush.msra.mxu0 %v772
        %1024 = vmatpush.msra.mxu0 %v771
        %1025 = vmatpush.msra.mxu0 %v770
        %1026 = vmatpush.msra.mxu0 %v769
        %1027 = vmatpush.msra.mxu0 %v768
        %1028 = vmatpush.msra.mxu0 %v767
        %1029 = vmatpush.msra.mxu0 %v766
        %1030 = vmatpush.msra.mxu0 %v765
        %1031 = vmatpush.msra.mxu0 %v764
        %1032 = vmatpush.msra.mxu0 %v763
        %1033 = vmatmul.f32.gmra.mxu0 %v747
        %v1034 = vpop.f32.mrf.mxu0
        %v1035 = vadd.f32 %v845, %v1034
        %1036 = vmatmul.f32.gmra.mxu0 %v748
        %v1037 = vpop.f32.mrf.mxu0
        %v1038 = vadd.f32 %v845, %v1037
        %1039 = vmatmul.f32.gmra.mxu0 %v749
        %v1040 = vpop.f32.mrf.mxu0
        %v1041 = vadd.f32 %v845, %v1040
        %1042 = vmatmul.f32.gmra.mxu0 %v750
        %v1043 = vpop.f32.mrf.mxu0
        %v1044 = vadd.f32 %v845, %v1043
        %1045 = vmatmul.f32.gmra.mxu0 %v751
        %v1046 = vpop.f32.mrf.mxu0
        %v1047 = vadd.f32 %v845, %v1046
        %1048 = vmatmul.f32.gmra.mxu0 %v752
        %v1049 = vpop.f32.mrf.mxu0
        %v1050 = vadd.f32 %v845, %v1049
        %1051 = vmatmul.f32.gmra.mxu0 %v753
        %v1052 = vpop.f32.mrf.mxu0
        %v1053 = vadd.f32 %v845, %v1052
        %1054 = vmatmul.f32.gmra.mxu0 %v754
        %v1055 = vpop.f32.mrf.mxu0
        %v1056 = vadd.f32 %v845, %v1055
        %1057 = vmatmul.f32.gmra.mxu0 %v755
        %v1058 = vpop.f32.mrf.mxu0
        %v1059 = vadd.f32 %v845, %v1058
        %1060 = vmatmul.f32.gmra.mxu0 %v756
        %v1061 = vpop.f32.mrf.mxu0
        %v1062 = vadd.f32 %v845, %v1061
        %1063 = vmatmul.f32.gmra.mxu0 %v757
        %v1064 = vpop.f32.mrf.mxu0
        %v1065 = vadd.f32 %v845, %v1064
        %1066 = vmatmul.f32.gmra.mxu0 %v758
        %v1067 = vpop.f32.mrf.mxu0
        %v1068 = vadd.f32 %v845, %v1067
        %1069 = vmatmul.f32.gmra.mxu0 %v759
        %v1070 = vpop.f32.mrf.mxu0
        %v1071 = vadd.f32 %v845, %v1070
        %1072 = vmatmul.f32.gmra.mxu0 %v760
        %v1073 = vpop.f32.mrf.mxu0
        %v1074 = vadd.f32 %v845, %v1073
        %1075 = vmatmul.f32.gmra.mxu0 %v761
        %v1076 = vpop.f32.mrf.mxu0
        %v1077 = vadd.f32 %v845, %v1076
        %1078 = vmatmul.f32.gmra.mxu0 %v762
        %v1079 = vpop.f32.mrf.mxu0
        %v1080 = vadd.f32 %v845, %v1079
        %1081 = vdwg.mxu0
        %1082 = vmatpush.msra.mxu0 %v826
        %1083 = vmatpush.msra.mxu0 %v825
        %1084 = vmatpush.msra.mxu0 %v824
        %1085 = vmatpush.msra.mxu0 %v823
        %1086 = vmatpush.msra.mxu0 %v822
        %1087 = vmatpush.msra.mxu0 %v821
        %1088 = vmatpush.msra.mxu0 %v820
        %1089 = vmatpush.msra.mxu0 %v819
        %1090 = vmatpush.msra.mxu0 %v818
        %1091 = vmatpush.msra.mxu0 %v817
        %1092 = vmatpush.msra.mxu0 %v816
        %1093 = vmatpush.msra.mxu0 %v815
        %1094 = vmatpush.msra.mxu0 %v814
        %1095 = vmatpush.msra.mxu0 %v813
        %1096 = vmatpush.msra.mxu0 %v812
        %1097 = vmatpush.msra.mxu0 %v811
        %1098 = vmatmul.f32.gmra.mxu0 %v985
        %v1099 = vpop.f32.mrf.mxu0
        %v1100 = vadd.f32 0.0, %v1099
        %1101 = vmatmul.f32.gmra.mxu0 %v986
        %v1102 = vpop.f32.mrf.mxu0
        %v1103 = vadd.f32 0.0, %v1102
        %1104 = vmatmul.f32.gmra.mxu0 %v987
        %v1105 = vpop.f32.mrf.mxu0
        %v1106 = vadd.f32 0.0, %v1105
        %1107 = vmatmul.f32.gmra.mxu0 %v988
        %v1108 = vpop.f32.mrf.mxu0
        %v1109 = vadd.f32 0.0, %v1108
        %1110 = vmatmul.f32.gmra.mxu0 %v989
        %v1111 = vpop.f32.mrf.mxu0
        %v1112 = vadd.f32 0.0, %v1111
        %1113 = vmatmul.f32.gmra.mxu0 %v990
        %v1114 = vpop.f32.mrf.mxu0
        %v1115 = vadd.f32 0.0, %v1114
        %1116 = vmatmul.f32.gmra.mxu0 %v991
        %v1117 = vpop.f32.mrf.mxu0
        %v1118 = vadd.f32 0.0, %v1117
        %1119 = vmatmul.f32.gmra.mxu0 %v992
        %v1120 = vpop.f32.mrf.mxu0
        %v1121 = vadd.f32 0.0, %v1120
        %1122 = vmatmul.f32.gmra.mxu0 %v993
        %v1123 = vpop.f32.mrf.mxu0
        %v1124 = vadd.f32 0.0, %v1123
        %1125 = vmatmul.f32.gmra.mxu0 %v994
        %v1126 = vpop.f32.mrf.mxu0
        %v1127 = vadd.f32 0.0, %v1126
        %1128 = vmatmul.f32.gmra.mxu0 %v995
        %v1129 = vpop.f32.mrf.mxu0
        %v1130 = vadd.f32 0.0, %v1129
        %1131 = vmatmul.f32.gmra.mxu0 %v996
        %v1132 = vpop.f32.mrf.mxu0
        %v1133 = vadd.f32 0.0, %v1132
        %1134 = vmatmul.f32.gmra.mxu0 %v997
        %v1135 = vpop.f32.mrf.mxu0
        %v1136 = vadd.f32 0.0, %v1135
        %1137 = vmatmul.f32.gmra.mxu0 %v998
        %v1138 = vpop.f32.mrf.mxu0
        %v1139 = vadd.f32 0.0, %v1138
        %1140 = vmatmul.f32.gmra.mxu0 %v999
        %v1141 = vpop.f32.mrf.mxu0
        %v1142 = vadd.f32 0.0, %v1141
        %1143 = vmatmul.f32.gmra.mxu0 %v1000
        %v1144 = vpop.f32.mrf.mxu0
        %v1145 = vadd.f32 0.0, %v1144
        %1146 = vdwg.mxu0
        %v1147 = vadd.f32 %v1035, %v1100
        %v1148 = vadd.f32 %v1038, %v1103
        %v1149 = vadd.f32 %v1041, %v1106
        %v1150 = vadd.f32 %v1044, %v1109
        %v1151 = vadd.f32 %v1047, %v1112
        %v1152 = vadd.f32 %v1050, %v1115
        %v1153 = vadd.f32 %v1053, %v1118
        %v1154 = vadd.f32 %v1056, %v1121
        %v1155 = vadd.f32 %v1059, %v1124
        %v1156 = vadd.f32 %v1062, %v1127
        %v1157 = vadd.f32 %v1065, %v1130
        %v1158 = vadd.f32 %v1068, %v1133
        %v1159 = vadd.f32 %v1071, %v1136
        %v1160 = vadd.f32 %v1074, %v1139
        %v1161 = vadd.f32 %v1077, %v1142
        %v1162 = vadd.f32 %v1080, %v1145
        %v1163 = vtanh.pop %v1147
        %v1164 = vtanh.pop %v1148
        %v1165 = vtanh.pop %v1149
        %v1166 = vtanh.pop %v1150
        %v1167 = vtanh.pop %v1151
        %v1168 = vtanh.pop %v1152
        %v1169 = vtanh.pop %v1153
        %v1170 = vtanh.pop %v1154
        %v1171 = vtanh.pop %v1155
        %v1172 = vtanh.pop %v1156
        %v1173 = vtanh.pop %v1157
        %v1174 = vtanh.pop %v1158
        %v1175 = vtanh.pop %v1159
        %v1176 = vtanh.pop %v1160
        %v1177 = vtanh.pop %v1161
        %v1178 = vtanh.pop %v1162
        %1179 = vmatpush.msra.mxu0 %v794
        %1180 = vmatpush.msra.mxu0 %v793
        %1181 = vmatpush.msra.mxu0 %v792
        %1182 = vmatpush.msra.mxu0 %v791
        %1183 = vmatpush.msra.mxu0 %v790
        %1184 = vmatpush.msra.mxu0 %v789
        %1185 = vmatpush.msra.mxu0 %v788
        %1186 = vmatpush.msra.mxu0 %v787
        %1187 = vmatpush.msra.mxu0 %v786
        %1188 = vmatpush.msra.mxu0 %v785
        %1189 = vmatpush.msra.mxu0 %v784
        %1190 = vmatpush.msra.mxu0 %v783
        %1191 = vmatpush.msra.mxu0 %v782
        %1192 = vmatpush.msra.mxu0 %v781
        %1193 = vmatpush.msra.mxu0 %v780
        %1194 = vmatpush.msra.mxu0 %v779
        %1195 = vmatmul.f32.gmra.mxu0 %v969
        %v1196 = vpop.f32.mrf.mxu0
        %v1197 = vadd.f32 %v849, %v1196
        %1198 = vmatmul.f32.gmra.mxu0 %v970
        %v1199 = vpop.f32.mrf.mxu0
        %v1200 = vadd.f32 %v849, %v1199
        %1201 = vmatmul.f32.gmra.mxu0 %v971
        %v1202 = vpop.f32.mrf.mxu0
        %v1203 = vadd.f32 %v849, %v1202
        %1204 = vmatmul.f32.gmra.mxu0 %v972
        %v1205 = vpop.f32.mrf.mxu0
        %v1206 = vadd.f32 %v849, %v1205
        %1207 = vmatmul.f32.gmra.mxu0 %v973
        %v1208 = vpop.f32.mrf.mxu0
        %v1209 = vadd.f32 %v849, %v1208
        %1210 = vmatmul.f32.gmra.mxu0 %v974
        %v1211 = vpop.f32.mrf.mxu0
        %v1212 = vadd.f32 %v849, %v1211
        %1213 = vmatmul.f32.gmra.mxu0 %v975
        %v1214 = vpop.f32.mrf.mxu0
        %v1215 = vadd.f32 %v849, %v1214
        %1216 = vmatmul.f32.gmra.mxu0 %v976
        %v1217 = vpop.f32.mrf.mxu0
        %v1218 = vadd.f32 %v849, %v1217
        %1219 = vmatmul.f32.gmra.mxu0 %v977
        %v1220 = vpop.f32.mrf.mxu0
        %v1221 = vadd.f32 %v849, %v1220
        %1222 = vmatmul.f32.gmra.mxu0 %v978
        %v1223 = vpop.f32.mrf.mxu0
        %v1224 = vadd.f32 %v849, %v1223
        %1225 = vmatmul.f32.gmra.mxu0 %v979
        %v1226 = vpop.f32.mrf.mxu0
        %v1227 = vadd.f32 %v849, %v1226
        %1228 = vmatmul.f32.gmra.mxu0 %v980
        %v1229 = vpop.f32.mrf.mxu0
        %v1230 = vadd.f32 %v849, %v1229
        %1231 = vmatmul.f32.gmra.mxu0 %v981
        %v1232 = vpop.f32.mrf.mxu0
        %v1233 = vadd.f32 %v849, %v1232
        %1234 = vmatmul.f32.gmra.mxu0 %v982
        %v1235 = vpop.f32.mrf.mxu0
        %v1236 = vadd.f32 %v849, %v1235
        %1237 = vmatmul.f32.gmra.mxu0 %v983
        %v1238 = vpop.f32.mrf.mxu0
        %v1239 = vadd.f32 %v849, %v1238
        %1240 = vmatmul.f32.gmra.mxu0 %v984
        %v1241 = vpop.f32.mrf.mxu0
        %v1242 = vadd.f32 %v849, %v1241
        %1243 = vdwg.mxu0
        %1244 = vmatpush.msra.mxu0 %v842
        %1245 = vmatpush.msra.mxu0 %v841
        %1246 = vmatpush.msra.mxu0 %v840
        %1247 = vmatpush.msra.mxu0 %v839
        %1248 = vmatpush.msra.mxu0 %v838
        %1249 = vmatpush.msra.mxu0 %v837
        %1250 = vmatpush.msra.mxu0 %v836
        %1251 = vmatpush.msra.mxu0 %v835
        %1252 = vmatpush.msra.mxu0 %v834
        %1253 = vmatpush.msra.mxu0 %v833
        %1254 = vmatpush.msra.mxu0 %v832
        %1255 = vmatpush.msra.mxu0 %v831
        %1256 = vmatpush.msra.mxu0 %v830
        %1257 = vmatpush.msra.mxu0 %v829
        %1258 = vmatpush.msra.mxu0 %v828
        %1259 = vmatpush.msra.mxu0 %v827
        %1260 = vmatmul.f32.gmra.mxu0 %v1001
        %v1261 = vpop.f32.mrf.mxu0
        %v1262 = vadd.f32 0.0, %v1261
        %1263 = vmatmul.f32.gmra.mxu0 %v1002
        %v1264 = vpop.f32.mrf.mxu0
        %v1265 = vadd.f32 0.0, %v1264
        %1266 = vmatmul.f32.gmra.mxu0 %v1003
        %v1267 = vpop.f32.mrf.mxu0
        %v1268 = vadd.f32 0.0, %v1267
        %1269 = vmatmul.f32.gmra.mxu0 %v1004
        %v1270 = vpop.f32.mrf.mxu0
        %v1271 = vadd.f32 0.0, %v1270
        %1272 = vmatmul.f32.gmra.mxu0 %v1005
        %v1273 = vpop.f32.mrf.mxu0
        %v1274 = vadd.f32 0.0, %v1273
        %1275 = vmatmul.f32.gmra.mxu0 %v1006
        %v1276 = vpop.f32.mrf.mxu0
        %v1277 = vadd.f32 0.0, %v1276
        %1278 = vmatmul.f32.gmra.mxu0 %v1007
        %v1279 = vpop.f32.mrf.mxu0
        %v1280 = vadd.f32 0.0, %v1279
        %1281 = vmatmul.f32.gmra.mxu0 %v1008
        %v1282 = vpop.f32.mrf.mxu0
        %v1283 = vadd.f32 0.0, %v1282
        %1284 = vmatmul.f32.gmra.mxu0 %v1009
        %v1285 = vpop.f32.mrf.mxu0
        %v1286 = vadd.f32 0.0, %v1285
        %1287 = vmatmul.f32.gmra.mxu0 %v1010
        %v1288 = vpop.f32.mrf.mxu0
        %v1289 = vadd.f32 0.0, %v1288
        %1290 = vmatmul.f32.gmra.mxu0 %v1011
        %v1291 = vpop.f32.mrf.mxu0
        %v1292 = vadd.f32 0.0, %v1291
        %1293 = vmatmul.f32.gmra.mxu0 %v1012
        %v1294 = vpop.f32.mrf.mxu0
        %v1295 = vadd.f32 0.0, %v1294
        %1296 = vmatmul.f32.gmra.mxu0 %v1013
        %v1297 = vpop.f32.mrf.mxu0
        %v1298 = vadd.f32 0.0, %v1297
        %1299 = vmatmul.f32.gmra.mxu0 %v1014
        %v1300 = vpop.f32.mrf.mxu0
        %v1301 = vadd.f32 0.0, %v1300
        %1302 = vmatmul.f32.gmra.mxu0 %v1015
        %v1303 = vpop.f32.mrf.mxu0
        %v1304 = vadd.f32 0.0, %v1303
        %1305 = vmatmul.f32.gmra.mxu0 %v1016
        %v1306 = vpop.f32.mrf.mxu0
        %v1307 = vadd.f32 0.0, %v1306
        %1308 = vdwg.mxu0
        %v1309 = vadd.f32 %v1197, %v1262
        %v1310 = vadd.f32 %v1200, %v1265
        %v1311 = vadd.f32 %v1203, %v1268
        %v1312 = vadd.f32 %v1206, %v1271
        %v1313 = vadd.f32 %v1209, %v1274
        %v1314 = vadd.f32 %v1212, %v1277
        %v1315 = vadd.f32 %v1215, %v1280
        %v1316 = vadd.f32 %v1218, %v1283
        %v1317 = vadd.f32 %v1221, %v1286
        %v1318 = vadd.f32 %v1224, %v1289
        %v1319 = vadd.f32 %v1227, %v1292
        %v1320 = vadd.f32 %v1230, %v1295
        %v1321 = vadd.f32 %v1233, %v1298
        %v1322 = vadd.f32 %v1236, %v1301
        %v1323 = vadd.f32 %v1239, %v1304
        %v1324 = vadd.f32 %v1242, %v1307
        %v1325 = vtanh.pop %v1309
        %v1326 = vtanh.pop %v1310
        %v1327 = vtanh.pop %v1311
        %v1328 = vtanh.pop %v1312
        %v1329 = vtanh.pop %v1313
        %v1330 = vtanh.pop %v1314
        %v1331 = vtanh.pop %v1315
        %v1332 = vtanh.pop %v1316
        %v1333 = vtanh.pop %v1317
        %v1334 = vtanh.pop %v1318
        %v1335 = vtanh.pop %v1319
        %v1336 = vtanh.pop %v1320
        %v1337 = vtanh.pop %v1321
        %v1338 = vtanh.pop %v1322
        %v1339 = vtanh.pop %v1323
        %v1340 = vtanh.pop %v1324
        %1341 = vmatpush.msra.mxu0 %v810
        %1342 = vmatpush.msra.mxu0 %v809
        %1343 = vmatpush.msra.mxu0 %v808
        %1344 = vmatpush.msra.mxu0 %v807
        %1345 = vmatpush.msra.mxu0 %v806
        %1346 = vmatpush.msra.mxu0 %v805
        %1347 = vmatpush.msra.mxu0 %v804
        %1348 = vmatpush.msra.mxu0 %v803
        %1349 = vmatpush.msra.mxu0 %v802
        %1350 = vmatpush.msra.mxu0 %v801
        %1351 = vmatpush.msra.mxu0 %v800
        %1352 = vmatpush.msra.mxu0 %v799
        %1353 = vmatpush.msra.mxu0 %v798
        %1354 = vmatpush.msra.mxu0 %v797
        %1355 = vmatpush.msra.mxu0 %v796
        %1356 = vmatpush.msra.mxu0 %v795
        %1357 = vmatmul.f32.gmra.mxu0 %v985
        %v1358 = vpop.f32.mrf.mxu0
        %v1359 = vadd.f32 %v853, %v1358
        %1360 = vmatmul.f32.gmra.mxu0 %v986
        %v1361 = vpop.f32.mrf.mxu0
        %v1362 = vadd.f32 %v853, %v1361
        %1363 = vmatmul.f32.gmra.mxu0 %v987
        %v1364 = vpop.f32.mrf.mxu0
        %v1365 = vadd.f32 %v853, %v1364
        %1366 = vmatmul.f32.gmra.mxu0 %v988
        %v1367 = vpop.f32.mrf.mxu0
        %v1368 = vadd.f32 %v853, %v1367
        %1369 = vmatmul.f32.gmra.mxu0 %v989
        %v1370 = vpop.f32.mrf.mxu0
        %v1371 = vadd.f32 %v853, %v1370
        %1372 = vmatmul.f32.gmra.mxu0 %v990
        %v1373 = vpop.f32.mrf.mxu0
        %v1374 = vadd.f32 %v853, %v1373
        %1375 = vmatmul.f32.gmra.mxu0 %v991
        %v1376 = vpop.f32.mrf.mxu0
        %v1377 = vadd.f32 %v853, %v1376
        %1378 = vmatmul.f32.gmra.mxu0 %v992
        %v1379 = vpop.f32.mrf.mxu0
        %v1380 = vadd.f32 %v853, %v1379
        %1381 = vmatmul.f32.gmra.mxu0 %v993
        %v1382 = vpop.f32.mrf.mxu0
        %v1383 = vadd.f32 %v853, %v1382
        %1384 = vmatmul.f32.gmra.mxu0 %v994
        %v1385 = vpop.f32.mrf.mxu0
        %v1386 = vadd.f32 %v853, %v1385
        %1387 = vmatmul.f32.gmra.mxu0 %v995
        %v1388 = vpop.f32.mrf.mxu0
        %v1389 = vadd.f32 %v853, %v1388
        %1390 = vmatmul.f32.gmra.mxu0 %v996
        %v1391 = vpop.f32.mrf.mxu0
        %v1392 = vadd.f32 %v853, %v1391
        %1393 = vmatmul.f32.gmra.mxu0 %v997
        %v1394 = vpop.f32.mrf.mxu0
        %v1395 = vadd.f32 %v853, %v1394
        %1396 = vmatmul.f32.gmra.mxu0 %v998
        %v1397 = vpop.f32.mrf.mxu0
        %v1398 = vadd.f32 %v853, %v1397
        %1399 = vmatmul.f32.gmra.mxu0 %v999
        %v1400 = vpop.f32.mrf.mxu0
        %v1401 = vadd.f32 %v853, %v1400
        %1402 = vmatmul.f32.gmra.mxu0 %v1000
        %v1403 = vpop.f32.mrf.mxu0
        %v1404 = vadd.f32 %v853, %v1403
        %1405 = vdwg.mxu0
        %v1406 = vsub.f32 %v1001, %v953
        %v1407 = vsub.f32 %v1002, %v954
        %v1408 = vsub.f32 %v1003, %v955
        %v1409 = vsub.f32 %v1004, %v956
        %v1410 = vsub.f32 %v1005, %v957
        %v1411 = vsub.f32 %v1006, %v958
        %v1412 = vsub.f32 %v1007, %v959
        %v1413 = vsub.f32 %v1008, %v960
        %v1414 = vsub.f32 %v1009, %v961
        %v1415 = vsub.f32 %v1010, %v962
        %v1416 = vsub.f32 %v1011, %v963
        %v1417 = vsub.f32 %v1012, %v964
        %v1418 = vsub.f32 %v1013, %v965
        %v1419 = vsub.f32 %v1014, %v966
        %v1420 = vsub.f32 %v1015, %v967
        %v1421 = vsub.f32 %v1016, %v968
        %v1422 = vmul.f32 %v1406, 0.5
        %v1423 = vmul.f32 %v1407, 0.5
        %v1424 = vmul.f32 %v1408, 0.5
        %v1425 = vmul.f32 %v1409, 0.5
        %v1426 = vmul.f32 %v1410, 0.5
        %v1427 = vmul.f32 %v1411, 0.5
        %v1428 = vmul.f32 %v1412, 0.5
        %v1429 = vmul.f32 %v1413, 0.5
        %v1430 = vmul.f32 %v1414, 0.5
        %v1431 = vmul.f32 %v1415, 0.5
        %v1432 = vmul.f32 %v1416, 0.5
        %v1433 = vmul.f32 %v1417, 0.5
        %v1434 = vmul.f32 %v1418, 0.5
        %v1435 = vmul.f32 %v1419, 0.5
        %v1436 = vmul.f32 %v1420, 0.5
        %v1437 = vmul.f32 %v1421, 0.5
        %v1438 = vsub.f32 %v1359, %v1422
        %v1439 = vsub.f32 %v1362, %v1423
        %v1440 = vsub.f32 %v1365, %v1424
        %v1441 = vsub.f32 %v1368, %v1425
        %v1442 = vsub.f32 %v1371, %v1426
        %v1443 = vsub.f32 %v1374, %v1427
        %v1444 = vsub.f32 %v1377, %v1428
        %v1445 = vsub.f32 %v1380, %v1429
        %v1446 = vsub.f32 %v1383, %v1430
        %v1447 = vsub.f32 %v1386, %v1431
        %v1448 = vsub.f32 %v1389, %v1432
        %v1449 = vsub.f32 %v1392, %v1433
        %v1450 = vsub.f32 %v1395, %v1434
        %v1451 = vsub.f32 %v1398, %v1435
        %v1452 = vsub.f32 %v1401, %v1436
        %v1453 = vsub.f32 %v1404, %v1437
        %v1454 = vtanh.pop %v1438
        %v1455 = vtanh.pop %v1439
        %v1456 = vtanh.pop %v1440
        %v1457 = vtanh.pop %v1441
        %v1458 = vtanh.pop %v1442
        %v1459 = vtanh.pop %v1443
        %v1460 = vtanh.pop %v1444
        %v1461 = vtanh.pop %v1445
        %v1462 = vtanh.pop %v1446
        %v1463 = vtanh.pop %v1447
        %v1464 = vtanh.pop %v1448
        %v1465 = vtanh.pop %v1449
        %v1466 = vtanh.pop %v1450
        %v1467 = vtanh.pop %v1451
        %v1468 = vtanh.pop %v1452
        %v1469 = vtanh.pop %v1453
        %1470 = vmatpush.msra.mxu0 %v826
        %1471 = vmatpush.msra.mxu0 %v825
        %1472 = vmatpush.msra.mxu0 %v824
        %1473 = vmatpush.msra.mxu0 %v823
        %1474 = vmatpush.msra.mxu0 %v822
        %1475 = vmatpush.msra.mxu0 %v821
        %1476 = vmatpush.msra.mxu0 %v820
        %1477 = vmatpush.msra.mxu0 %v819
        %1478 = vmatpush.msra.mxu0 %v818
        %1479 = vmatpush.msra.mxu0 %v817
        %1480 = vmatpush.msra.mxu0 %v816
        %1481 = vmatpush.msra.mxu0 %v815
        %1482 = vmatpush.msra.mxu0 %v814
        %1483 = vmatpush.msra.mxu0 %v813
        %1484 = vmatpush.msra.mxu0 %v812
        %1485 = vmatpush.msra.mxu0 %v811
        %1486 = vmatmul.f32.gmra.mxu0 %v1325
        %v1487 = vpop.f32.mrf.mxu0
        %v1488 = vadd.f32 0.0, %v1487
        %1489 = vmatmul.f32.gmra.mxu0 %v1326
        %v1490 = vpop.f32.mrf.mxu0
        %v1491 = vadd.f32 0.0, %v1490
        %1492 = vmatmul.f32.gmra.mxu0 %v1327
        %v1493 = vpop.f32.mrf.mxu0
        %v1494 = vadd.f32 0.0, %v1493
        %1495 = vmatmul.f32.gmra.mxu0 %v1328
        %v1496 = vpop.f32.mrf.mxu0
        %v1497 = vadd.f32 0.0, %v1496
        %1498 = vmatmul.f32.gmra.mxu0 %v1329
        %v1499 = vpop.f32.mrf.mxu0
        %v1500 = vadd.f32 0.0, %v1499
        %1501 = vmatmul.f32.gmra.mxu0 %v1330
        %v1502 = vpop.f32.mrf.mxu0
        %v1503 = vadd.f32 0.0, %v1502
        %1504 = vmatmul.f32.gmra.mxu0 %v1331
        %v1505 = vpop.f32.mrf.mxu0
        %v1506 = vadd.f32 0.0, %v1505
        %1507 = vmatmul.f32.gmra.mxu0 %v1332
        %v1508 = vpop.f32.mrf.mxu0
        %v1509 = vadd.f32 0.0, %v1508
        %1510 = vmatmul.f32.gmra.mxu0 %v1333
        %v1511 = vpop.f32.mrf.mxu0
        %v1512 = vadd.f32 0.0, %v1511
        %1513 = vmatmul.f32.gmra.mxu0 %v1334
        %v1514 = vpop.f32.mrf.mxu0
        %v1515 = vadd.f32 0.0, %v1514
        %1516 = vmatmul.f32.gmra.mxu0 %v1335
        %v1517 = vpop.f32.mrf.mxu0
        %v1518 = vadd.f32 0.0, %v1517
        %1519 = vmatmul.f32.gmra.mxu0 %v1336
        %v1520 = vpop.f32.mrf.mxu0
        %v1521 = vadd.f32 0.0, %v1520
        %1522 = vmatmul.f32.gmra.mxu0 %v1337
        %v1523 = vpop.f32.mrf.mxu0
        %v1524 = vadd.f32 0.0, %v1523
        %1525 = vmatmul.f32.gmra.mxu0 %v1338
        %v1526 = vpop.f32.mrf.mxu0
        %v1527 = vadd.f32 0.0, %v1526
        %1528 = vmatmul.f32.gmra.mxu0 %v1339
        %v1529 = vpop.f32.mrf.mxu0
        %v1530 = vadd.f32 0.0, %v1529
        %1531 = vmatmul.f32.gmra.mxu0 %v1340
        %v1532 = vpop.f32.mrf.mxu0
        %v1533 = vadd.f32 0.0, %v1532
        %1534 = vdwg.mxu0
        %v1535 = vadd.f32 %v1035, %v1488
        %v1536 = vadd.f32 %v1038, %v1491
        %v1537 = vadd.f32 %v1041, %v1494
        %v1538 = vadd.f32 %v1044, %v1497
        %v1539 = vadd.f32 %v1047, %v1500
        %v1540 = vadd.f32 %v1050, %v1503
        %v1541 = vadd.f32 %v1053, %v1506
        %v1542 = vadd.f32 %v1056, %v1509
        %v1543 = vadd.f32 %v1059, %v1512
        %v1544 = vadd.f32 %v1062, %v1515
        %v1545 = vadd.f32 %v1065, %v1518
        %v1546 = vadd.f32 %v1068, %v1521
        %v1547 = vadd.f32 %v1071, %v1524
        %v1548 = vadd.f32 %v1074, %v1527
        %v1549 = vadd.f32 %v1077, %v1530
        %v1550 = vadd.f32 %v1080, %v1533
        %v1551 = vtanh.pop %v1535
        %v1552 = vtanh.pop %v1536
        %v1553 = vtanh.pop %v1537
        %v1554 = vtanh.pop %v1538
        %v1555 = vtanh.pop %v1539
        %v1556 = vtanh.pop %v1540
        %v1557 = vtanh.pop %v1541
        %v1558 = vtanh.pop %v1542
        %v1559 = vtanh.pop %v1543
        %v1560 = vtanh.pop %v1544
        %v1561 = vtanh.pop %v1545
        %v1562 = vtanh.pop %v1546
        %v1563 = vtanh.pop %v1547
        %v1564 = vtanh.pop %v1548
        %v1565 = vtanh.pop %v1549
        %v1566 = vtanh.pop %v1550
        %1567 = vmatpush.msra.mxu0 %v794
        %1568 = vmatpush.msra.mxu0 %v793
        %1569 = vmatpush.msra.mxu0 %v792
        %1570 = vmatpush.msra.mxu0 %v791
        %1571 = vmatpush.msra.mxu0 %v790
        %1572 = vmatpush.msra.mxu0 %v789
        %1573 = vmatpush.msra.mxu0 %v788
        %1574 = vmatpush.msra.mxu0 %v787
        %1575 = vmatpush.msra.mxu0 %v786
        %1576 = vmatpush.msra.mxu0 %v785
        %1577 = vmatpush.msra.mxu0 %v784
        %1578 = vmatpush.msra.mxu0 %v783
        %1579 = vmatpush.msra.mxu0 %v782
        %1580 = vmatpush.msra.mxu0 %v781
        %1581 = vmatpush.msra.mxu0 %v780
        %1582 = vmatpush.msra.mxu0 %v779
        %1583 = vmatmul.f32.gmra.mxu0 %v1163
        %v1584 = vpop.f32.mrf.mxu0
        %v1585 = vadd.f32 %v849, %v1584
        %1586 = vmatmul.f32.gmra.mxu0 %v1164
        %v1587 = vpop.f32.mrf.mxu0
        %v1588 = vadd.f32 %v849, %v1587
        %1589 = vmatmul.f32.gmra.mxu0 %v1165
        %v1590 = vpop.f32.mrf.mxu0
        %v1591 = vadd.f32 %v849, %v1590
        %1592 = vmatmul.f32.gmra.mxu0 %v1166
        %v1593 = vpop.f32.mrf.mxu0
        %v1594 = vadd.f32 %v849, %v1593
        %1595 = vmatmul.f32.gmra.mxu0 %v1167
        %v1596 = vpop.f32.mrf.mxu0
        %v1597 = vadd.f32 %v849, %v1596
        %1598 = vmatmul.f32.gmra.mxu0 %v1168
        %v1599 = vpop.f32.mrf.mxu0
        %v1600 = vadd.f32 %v849, %v1599
        %1601 = vmatmul.f32.gmra.mxu0 %v1169
        %v1602 = vpop.f32.mrf.mxu0
        %v1603 = vadd.f32 %v849, %v1602
        %1604 = vmatmul.f32.gmra.mxu0 %v1170
        %v1605 = vpop.f32.mrf.mxu0
        %v1606 = vadd.f32 %v849, %v1605
        %1607 = vmatmul.f32.gmra.mxu0 %v1171
        %v1608 = vpop.f32.mrf.mxu0
        %v1609 = vadd.f32 %v849, %v1608
        %1610 = vmatmul.f32.gmra.mxu0 %v1172
        %v1611 = vpop.f32.mrf.mxu0
        %v1612 = vadd.f32 %v849, %v1611
        %1613 = vmatmul.f32.gmra.mxu0 %v1173
        %v1614 = vpop.f32.mrf.mxu0
        %v1615 = vadd.f32 %v849, %v1614
        %1616 = vmatmul.f32.gmra.mxu0 %v1174
        %v1617 = vpop.f32.mrf.mxu0
        %v1618 = vadd.f32 %v849, %v1617
        %1619 = vmatmul.f32.gmra.mxu0 %v1175
        %v1620 = vpop.f32.mrf.mxu0
        %v1621 = vadd.f32 %v849, %v1620
        %1622 = vmatmul.f32.gmra.mxu0 %v1176
        %v1623 = vpop.f32.mrf.mxu0
        %v1624 = vadd.f32 %v849, %v1623
        %1625 = vmatmul.f32.gmra.mxu0 %v1177
        %v1626 = vpop.f32.mrf.mxu0
        %v1627 = vadd.f32 %v849, %v1626
        %1628 = vmatmul.f32.gmra.mxu0 %v1178
        %v1629 = vpop.f32.mrf.mxu0
        %v1630 = vadd.f32 %v849, %v1629
        %1631 = vdwg.mxu0
        %1632 = vmatpush.msra.mxu0 %v842
        %1633 = vmatpush.msra.mxu0 %v841
        %1634 = vmatpush.msra.mxu0 %v840
        %1635 = vmatpush.msra.mxu0 %v839
        %1636 = vmatpush.msra.mxu0 %v838
        %1637 = vmatpush.msra.mxu0 %v837
        %1638 = vmatpush.msra.mxu0 %v836
        %1639 = vmatpush.msra.mxu0 %v835
        %1640 = vmatpush.msra.mxu0 %v834
        %1641 = vmatpush.msra.mxu0 %v833
        %1642 = vmatpush.msra.mxu0 %v832
        %1643 = vmatpush.msra.mxu0 %v831
        %1644 = vmatpush.msra.mxu0 %v830
        %1645 = vmatpush.msra.mxu0 %v829
        %1646 = vmatpush.msra.mxu0 %v828
        %1647 = vmatpush.msra.mxu0 %v827
        %1648 = vmatmul.f32.gmra.mxu0 %v1454
        %v1649 = vpop.f32.mrf.mxu0
        %v1650 = vadd.f32 0.0, %v1649
        %1651 = vmatmul.f32.gmra.mxu0 %v1455
        %v1652 = vpop.f32.mrf.mxu0
        %v1653 = vadd.f32 0.0, %v1652
        %1654 = vmatmul.f32.gmra.mxu0 %v1456
        %v1655 = vpop.f32.mrf.mxu0
        %v1656 = vadd.f32 0.0, %v1655
        %1657 = vmatmul.f32.gmra.mxu0 %v1457
        %v1658 = vpop.f32.mrf.mxu0
        %v1659 = vadd.f32 0.0, %v1658
        %1660 = vmatmul.f32.gmra.mxu0 %v1458
        %v1661 = vpop.f32.mrf.mxu0
        %v1662 = vadd.f32 0.0, %v1661
        %1663 = vmatmul.f32.gmra.mxu0 %v1459
        %v1664 = vpop.f32.mrf.mxu0
        %v1665 = vadd.f32 0.0, %v1664
        %1666 = vmatmul.f32.gmra.mxu0 %v1460
        %v1667 = vpop.f32.mrf.mxu0
        %v1668 = vadd.f32 0.0, %v1667
        %1669 = vmatmul.f32.gmra.mxu0 %v1461
        %v1670 = vpop.f32.mrf.mxu0
        %v1671 = vadd.f32 0.0, %v1670
        %1672 = vmatmul.f32.gmra.mxu0 %v1462
        %v1673 = vpop.f32.mrf.mxu0
        %v1674 = vadd.f32 0.0, %v1673
        %1675 = vmatmul.f32.gmra.mxu0 %v1463
        %v1676 = vpop.f32.mrf.mxu0
        %v1677 = vadd.f32 0.0, %v1676
        %1678 = vmatmul.f32.gmra.mxu0 %v1464
        %v1679 = vpop.f32.mrf.mxu0
        %v1680 = vadd.f32 0.0, %v1679
        %1681 = vmatmul.f32.gmra.mxu0 %v1465
        %v1682 = vpop.f32.mrf.mxu0
        %v1683 = vadd.f32 0.0, %v1682
        %1684 = vmatmul.f32.gmra.mxu0 %v1466
        %v1685 = vpop.f32.mrf.mxu0
        %v1686 = vadd.f32 0.0, %v1685
        %1687 = vmatmul.f32.gmra.mxu0 %v1467
        %v1688 = vpop.f32.mrf.mxu0
        %v1689 = vadd.f32 0.0, %v1688
        %1690 = vmatmul.f32.gmra.mxu0 %v1468
        %v1691 = vpop.f32.mrf.mxu0
        %v1692 = vadd.f32 0.0, %v1691
        %1693 = vmatmul.f32.gmra.mxu0 %v1469
        %v1694 = vpop.f32.mrf.mxu0
        %v1695 = vadd.f32 0.0, %v1694
        %1696 = vdwg.mxu0
        %v1697 = vadd.f32 %v1585, %v1650
        %v1698 = vadd.f32 %v1588, %v1653
        %v1699 = vadd.f32 %v1591, %v1656
        %v1700 = vadd.f32 %v1594, %v1659
        %v1701 = vadd.f32 %v1597, %v1662
        %v1702 = vadd.f32 %v1600, %v1665
        %v1703 = vadd.f32 %v1603, %v1668
        %v1704 = vadd.f32 %v1606, %v1671
        %v1705 = vadd.f32 %v1609, %v1674
        %v1706 = vadd.f32 %v1612, %v1677
        %v1707 = vadd.f32 %v1615, %v1680
        %v1708 = vadd.f32 %v1618, %v1683
        %v1709 = vadd.f32 %v1621, %v1686
        %v1710 = vadd.f32 %v1624, %v1689
        %v1711 = vadd.f32 %v1627, %v1692
        %v1712 = vadd.f32 %v1630, %v1695
        %v1713 = vtanh.pop %v1697
        %v1714 = vtanh.pop %v1698
        %v1715 = vtanh.pop %v1699
        %v1716 = vtanh.pop %v1700
        %v1717 = vtanh.pop %v1701
        %v1718 = vtanh.pop %v1702
        %v1719 = vtanh.pop %v1703
        %v1720 = vtanh.pop %v1704
        %v1721 = vtanh.pop %v1705
        %v1722 = vtanh.pop %v1706
        %v1723 = vtanh.pop %v1707
        %v1724 = vtanh.pop %v1708
        %v1725 = vtanh.pop %v1709
        %v1726 = vtanh.pop %v1710
        %v1727 = vtanh.pop %v1711
        %v1728 = vtanh.pop %v1712
        %1729 = vmatpush.msra.mxu0 %v810
        %1730 = vmatpush.msra.mxu0 %v809
        %1731 = vmatpush.msra.mxu0 %v808
        %1732 = vmatpush.msra.mxu0 %v807
        %1733 = vmatpush.msra.mxu0 %v806
        %1734 = vmatpush.msra.mxu0 %v805
        %1735 = vmatpush.msra.mxu0 %v804
        %1736 = vmatpush.msra.mxu0 %v803
        %1737 = vmatpush.msra.mxu0 %v802
        %1738 = vmatpush.msra.mxu0 %v801
        %1739 = vmatpush.msra.mxu0 %v800
        %1740 = vmatpush.msra.mxu0 %v799
        %1741 = vmatpush.msra.mxu0 %v798
        %1742 = vmatpush.msra.mxu0 %v797
        %1743 = vmatpush.msra.mxu0 %v796
        %1744 = vmatpush.msra.mxu0 %v795
        %1745 = vmatmul.f32.gmra.mxu0 %v1325
        %v1746 = vpop.f32.mrf.mxu0
        %v1747 = vadd.f32 %v853, %v1746
        %1748 = vmatmul.f32.gmra.mxu0 %v1326
        %v1749 = vpop.f32.mrf.mxu0
        %v1750 = vadd.f32 %v853, %v1749
        %1751 = vmatmul.f32.gmra.mxu0 %v1327
        %v1752 = vpop.f32.mrf.mxu0
        %v1753 = vadd.f32 %v853, %v1752
        %1754 = vmatmul.f32.gmra.mxu0 %v1328
        %v1755 = vpop.f32.mrf.mxu0
        %v1756 = vadd.f32 %v853, %v1755
        %1757 = vmatmul.f32.gmra.mxu0 %v1329
        %v1758 = vpop.f32.mrf.mxu0
        %v1759 = vadd.f32 %v853, %v1758
        %1760 = vmatmul.f32.gmra.mxu0 %v1330
        %v1761 = vpop.f32.mrf.mxu0
        %v1762 = vadd.f32 %v853, %v1761
        %1763 = vmatmul.f32.gmra.mxu0 %v1331
        %v1764 = vpop.f32.mrf.mxu0
        %v1765 = vadd.f32 %v853, %v1764
        %1766 = vmatmul.f32.gmra.mxu0 %v1332
        %v1767 = vpop.f32.mrf.mxu0
        %v1768 = vadd.f32 %v853, %v1767
        %1769 = vmatmul.f32.gmra.mxu0 %v1333
        %v1770 = vpop.f32.mrf.mxu0
        %v1771 = vadd.f32 %v853, %v1770
        %1772 = vmatmul.f32.gmra.mxu0 %v1334
        %v1773 = vpop.f32.mrf.mxu0
        %v1774 = vadd.f32 %v853, %v1773
        %1775 = vmatmul.f32.gmra.mxu0 %v1335
        %v1776 = vpop.f32.mrf.mxu0
        %v1777 = vadd.f32 %v853, %v1776
        %1778 = vmatmul.f32.gmra.mxu0 %v1336
        %v1779 = vpop.f32.mrf.mxu0
        %v1780 = vadd.f32 %v853, %v1779
        %1781 = vmatmul.f32.gmra.mxu0 %v1337
        %v1782 = vpop.f32.mrf.mxu0
        %v1783 = vadd.f32 %v853, %v1782
        %1784 = vmatmul.f32.gmra.mxu0 %v1338
        %v1785 = vpop.f32.mrf.mxu0
        %v1786 = vadd.f32 %v853, %v1785
        %1787 = vmatmul.f32.gmra.mxu0 %v1339
        %v1788 = vpop.f32.mrf.mxu0
        %v1789 = vadd.f32 %v853, %v1788
        %1790 = vmatmul.f32.gmra.mxu0 %v1340
        %v1791 = vpop.f32.mrf.mxu0
        %v1792 = vadd.f32 %v853, %v1791
        %1793 = vdwg.mxu0
        %v1794 = vsub.f32 %v1454, %v953
        %v1795 = vsub.f32 %v1455, %v954
        %v1796 = vsub.f32 %v1456, %v955
        %v1797 = vsub.f32 %v1457, %v956
        %v1798 = vsub.f32 %v1458, %v957
        %v1799 = vsub.f32 %v1459, %v958
        %v1800 = vsub.f32 %v1460, %v959
        %v1801 = vsub.f32 %v1461, %v960
        %v1802 = vsub.f32 %v1462, %v961
        %v1803 = vsub.f32 %v1463, %v962
        %v1804 = vsub.f32 %v1464, %v963
        %v1805 = vsub.f32 %v1465, %v964
        %v1806 = vsub.f32 %v1466, %v965
        %v1807 = vsub.f32 %v1467, %v966
        %v1808 = vsub.f32 %v1468, %v967
        %v1809 = vsub.f32 %v1469, %v968
        %v1810 = vmul.f32 %v1794, 0.5
        %v1811 = vmul.f32 %v1795, 0.5
        %v1812 = vmul.f32 %v1796, 0.5
        %v1813 = vmul.f32 %v1797, 0.5
        %v1814 = vmul.f32 %v1798, 0.5
        %v1815 = vmul.f32 %v1799, 0.5
        %v1816 = vmul.f32 %v1800, 0.5
        %v1817 = vmul.f32 %v1801, 0.5
        %v1818 = vmul.f32 %v1802, 0.5
        %v1819 = vmul.f32 %v1803, 0.5
        %v1820 = vmul.f32 %v1804, 0.5
        %v1821 = vmul.f32 %v1805, 0.5
        %v1822 = vmul.f32 %v1806, 0.5
        %v1823 = vmul.f32 %v1807, 0.5
        %v1824 = vmul.f32 %v1808, 0.5
        %v1825 = vmul.f32 %v1809, 0.5
        %v1826 = vsub.f32 %v1747, %v1810
        %v1827 = vsub.f32 %v1750, %v1811
        %v1828 = vsub.f32 %v1753, %v1812
        %v1829 = vsub.f32 %v1756, %v1813
        %v1830 = vsub.f32 %v1759, %v1814
        %v1831 = vsub.f32 %v1762, %v1815
        %v1832 = vsub.f32 %v1765, %v1816
        %v1833 = vsub.f32 %v1768, %v1817
        %v1834 = vsub.f32 %v1771, %v1818
        %v1835 = vsub.f32 %v1774, %v1819
        %v1836 = vsub.f32 %v1777, %v1820
        %v1837 = vsub.f32 %v1780, %v1821
        %v1838 = vsub.f32 %v1783, %v1822
        %v1839 = vsub.f32 %v1786, %v1823
        %v1840 = vsub.f32 %v1789, %v1824
        %v1841 = vsub.f32 %v1792, %v1825
        %v1842 = vtanh.pop %v1826
        %v1843 = vtanh.pop %v1827
        %v1844 = vtanh.pop %v1828
        %v1845 = vtanh.pop %v1829
        %v1846 = vtanh.pop %v1830
        %v1847 = vtanh.pop %v1831
        %v1848 = vtanh.pop %v1832
        %v1849 = vtanh.pop %v1833
        %v1850 = vtanh.pop %v1834
        %v1851 = vtanh.pop %v1835
        %v1852 = vtanh.pop %v1836
        %v1853 = vtanh.pop %v1837
        %v1854 = vtanh.pop %v1838
        %v1855 = vtanh.pop %v1839
        %v1856 = vtanh.pop %v1840
        %v1857 = vtanh.pop %v1841
        %1858 = vmatpush.msra.mxu0 %v826
        %1859 = vmatpush.msra.mxu0 %v825
        %1860 = vmatpush.msra.mxu0 %v824
        %1861 = vmatpush.msra.mxu0 %v823
        %1862 = vmatpush.msra.mxu0 %v822
        %1863 = vmatpush.msra.mxu0 %v821
        %1864 = vmatpush.msra.mxu0 %v820
        %1865 = vmatpush.msra.mxu0 %v819
        %1866 = vmatpush.msra.mxu0 %v818
        %1867 = vmatpush.msra.mxu0 %v817
        %1868 = vmatpush.msra.mxu0 %v816
        %1869 = vmatpush.msra.mxu0 %v815
        %1870 = vmatpush.msra.mxu0 %v814
        %1871 = vmatpush.msra.mxu0 %v813
        %1872 = vmatpush.msra.mxu0 %v812
        %1873 = vmatpush.msra.mxu0 %v811
        %1874 = vmatmul.f32.gmra.mxu0 %v1713
        %v1875 = vpop.f32.mrf.mxu0
        %v1876 = vadd.f32 0.0, %v1875
        %1877 = vmatmul.f32.gmra.mxu0 %v1714
        %v1878 = vpop.f32.mrf.mxu0
        %v1879 = vadd.f32 0.0, %v1878
        %1880 = vmatmul.f32.gmra.mxu0 %v1715
        %v1881 = vpop.f32.mrf.mxu0
        %v1882 = vadd.f32 0.0, %v1881
        %1883 = vmatmul.f32.gmra.mxu0 %v1716
        %v1884 = vpop.f32.mrf.mxu0
        %v1885 = vadd.f32 0.0, %v1884
        %1886 = vmatmul.f32.gmra.mxu0 %v1717
        %v1887 = vpop.f32.mrf.mxu0
        %v1888 = vadd.f32 0.0, %v1887
        %1889 = vmatmul.f32.gmra.mxu0 %v1718
        %v1890 = vpop.f32.mrf.mxu0
        %v1891 = vadd.f32 0.0, %v1890
        %1892 = vmatmul.f32.gmra.mxu0 %v1719
        %v1893 = vpop.f32.mrf.mxu0
        %v1894 = vadd.f32 0.0, %v1893
        %1895 = vmatmul.f32.gmra.mxu0 %v1720
        %v1896 = vpop.f32.mrf.mxu0
        %v1897 = vadd.f32 0.0, %v1896
        %1898 = vmatmul.f32.gmra.mxu0 %v1721
        %v1899 = vpop.f32.mrf.mxu0
        %v1900 = vadd.f32 0.0, %v1899
        %1901 = vmatmul.f32.gmra.mxu0 %v1722
        %v1902 = vpop.f32.mrf.mxu0
        %v1903 = vadd.f32 0.0, %v1902
        %1904 = vmatmul.f32.gmra.mxu0 %v1723
        %v1905 = vpop.f32.mrf.mxu0
        %v1906 = vadd.f32 0.0, %v1905
        %1907 = vmatmul.f32.gmra.mxu0 %v1724
        %v1908 = vpop.f32.mrf.mxu0
        %v1909 = vadd.f32 0.0, %v1908
        %1910 = vmatmul.f32.gmra.mxu0 %v1725
        %v1911 = vpop.f32.mrf.mxu0
        %v1912 = vadd.f32 0.0, %v1911
        %1913 = vmatmul.f32.gmra.mxu0 %v1726
        %v1914 = vpop.f32.mrf.mxu0
        %v1915 = vadd.f32 0.0, %v1914
        %1916 = vmatmul.f32.gmra.mxu0 %v1727
        %v1917 = vpop.f32.mrf.mxu0
        %v1918 = vadd.f32 0.0, %v1917
        %1919 = vmatmul.f32.gmra.mxu0 %v1728
        %v1920 = vpop.f32.mrf.mxu0
        %v1921 = vadd.f32 0.0, %v1920
        %1922 = vdwg.mxu0
        %v1923 = vadd.f32 %v1035, %v1876
        %v1924 = vadd.f32 %v1038, %v1879
        %v1925 = vadd.f32 %v1041, %v1882
        %v1926 = vadd.f32 %v1044, %v1885
        %v1927 = vadd.f32 %v1047, %v1888
        %v1928 = vadd.f32 %v1050, %v1891
        %v1929 = vadd.f32 %v1053, %v1894
        %v1930 = vadd.f32 %v1056, %v1897
        %v1931 = vadd.f32 %v1059, %v1900
        %v1932 = vadd.f32 %v1062, %v1903
        %v1933 = vadd.f32 %v1065, %v1906
        %v1934 = vadd.f32 %v1068, %v1909
        %v1935 = vadd.f32 %v1071, %v1912
        %v1936 = vadd.f32 %v1074, %v1915
        %v1937 = vadd.f32 %v1077, %v1918
        %v1938 = vadd.f32 %v1080, %v1921
        %v1939 = vtanh.pop %v1923
        %v1940 = vtanh.pop %v1924
        %v1941 = vtanh.pop %v1925
        %v1942 = vtanh.pop %v1926
        %v1943 = vtanh.pop %v1927
        %v1944 = vtanh.pop %v1928
        %v1945 = vtanh.pop %v1929
        %v1946 = vtanh.pop %v1930
        %v1947 = vtanh.pop %v1931
        %v1948 = vtanh.pop %v1932
        %v1949 = vtanh.pop %v1933
        %v1950 = vtanh.pop %v1934
        %v1951 = vtanh.pop %v1935
        %v1952 = vtanh.pop %v1936
        %v1953 = vtanh.pop %v1937
        %v1954 = vtanh.pop %v1938
        %1955 = vmatpush.msra.mxu0 %v794
        %1956 = vmatpush.msra.mxu0 %v793
        %1957 = vmatpush.msra.mxu0 %v792
        %1958 = vmatpush.msra.mxu0 %v791
        %1959 = vmatpush.msra.mxu0 %v790
        %1960 = vmatpush.msra.mxu0 %v789
        %1961 = vmatpush.msra.mxu0 %v788
        %1962 = vmatpush.msra.mxu0 %v787
        %1963 = vmatpush.msra.mxu0 %v786
        %1964 = vmatpush.msra.mxu0 %v785
        %1965 = vmatpush.msra.mxu0 %v784
        %1966 = vmatpush.msra.mxu0 %v783
        %1967 = vmatpush.msra.mxu0 %v782
        %1968 = vmatpush.msra.mxu0 %v781
        %1969 = vmatpush.msra.mxu0 %v780
        %1970 = vmatpush.msra.mxu0 %v779
        %1971 = vmatmul.f32.gmra.mxu0 %v1551
        %v1972 = vpop.f32.mrf.mxu0
        %v1973 = vadd.f32 %v849, %v1972
        %1974 = vmatmul.f32.gmra.mxu0 %v1552
        %v1975 = vpop.f32.mrf.mxu0
        %v1976 = vadd.f32 %v849, %v1975
        %1977 = vmatmul.f32.gmra.mxu0 %v1553
        %v1978 = vpop.f32.mrf.mxu0
        %v1979 = vadd.f32 %v849, %v1978
        %1980 = vmatmul.f32.gmra.mxu0 %v1554
        %v1981 = vpop.f32.mrf.mxu0
        %v1982 = vadd.f32 %v849, %v1981
        %1983 = vmatmul.f32.gmra.mxu0 %v1555
        %v1984 = vpop.f32.mrf.mxu0
        %v1985 = vadd.f32 %v849, %v1984
        %1986 = vmatmul.f32.gmra.mxu0 %v1556
        %v1987 = vpop.f32.mrf.mxu0
        %v1988 = vadd.f32 %v849, %v1987
        %1989 = vmatmul.f32.gmra.mxu0 %v1557
        %v1990 = vpop.f32.mrf.mxu0
        %v1991 = vadd.f32 %v849, %v1990
        %1992 = vmatmul.f32.gmra.mxu0 %v1558
        %v1993 = vpop.f32.mrf.mxu0
        %v1994 = vadd.f32 %v849, %v1993
        %1995 = vmatmul.f32.gmra.mxu0 %v1559
        %v1996 = vpop.f32.mrf.mxu0
        %v1997 = vadd.f32 %v849, %v1996
        %1998 = vmatmul.f32.gmra.mxu0 %v1560
        %v1999 = vpop.f32.mrf.mxu0
        %v2000 = vadd.f32 %v849, %v1999
        %2001 = vmatmul.f32.gmra.mxu0 %v1561
        %v2002 = vpop.f32.mrf.mxu0
        %v2003 = vadd.f32 %v849, %v2002
        %2004 = vmatmul.f32.gmra.mxu0 %v1562
        %v2005 = vpop.f32.mrf.mxu0
        %v2006 = vadd.f32 %v849, %v2005
        %2007 = vmatmul.f32.gmra.mxu0 %v1563
        %v2008 = vpop.f32.mrf.mxu0
        %v2009 = vadd.f32 %v849, %v2008
        %2010 = vmatmul.f32.gmra.mxu0 %v1564
        %v2011 = vpop.f32.mrf.mxu0
        %v2012 = vadd.f32 %v849, %v2011
        %2013 = vmatmul.f32.gmra.mxu0 %v1565
        %v2014 = vpop.f32.mrf.mxu0
        %v2015 = vadd.f32 %v849, %v2014
        %2016 = vmatmul.f32.gmra.mxu0 %v1566
        %v2017 = vpop.f32.mrf.mxu0
        %v2018 = vadd.f32 %v849, %v2017
        %2019 = vdwg.mxu0
        %2020 = vmatpush.msra.mxu0 %v842
        %2021 = vmatpush.msra.mxu0 %v841
        %2022 = vmatpush.msra.mxu0 %v840
        %2023 = vmatpush.msra.mxu0 %v839
        %2024 = vmatpush.msra.mxu0 %v838
        %2025 = vmatpush.msra.mxu0 %v837
        %2026 = vmatpush.msra.mxu0 %v836
        %2027 = vmatpush.msra.mxu0 %v835
        %2028 = vmatpush.msra.mxu0 %v834
        %2029 = vmatpush.msra.mxu0 %v833
        %2030 = vmatpush.msra.mxu0 %v832
        %2031 = vmatpush.msra.mxu0 %v831
        %2032 = vmatpush.msra.mxu0 %v830
        %2033 = vmatpush.msra.mxu0 %v829
        %2034 = vmatpush.msra.mxu0 %v828
        %2035 = vmatpush.msra.mxu0 %v827
        %2036 = vmatmul.f32.gmra.mxu0 %v1842
        %v2037 = vpop.f32.mrf.mxu0
        %v2038 = vadd.f32 0.0, %v2037
        %2039 = vmatmul.f32.gmra.mxu0 %v1843
        %v2040 = vpop.f32.mrf.mxu0
        %v2041 = vadd.f32 0.0, %v2040
        %2042 = vmatmul.f32.gmra.mxu0 %v1844
        %v2043 = vpop.f32.mrf.mxu0
        %v2044 = vadd.f32 0.0, %v2043
        %2045 = vmatmul.f32.gmra.mxu0 %v1845
        %v2046 = vpop.f32.mrf.mxu0
        %v2047 = vadd.f32 0.0, %v2046
        %2048 = vmatmul.f32.gmra.mxu0 %v1846
        %v2049 = vpop.f32.mrf.mxu0
        %v2050 = vadd.f32 0.0, %v2049
        %2051 = vmatmul.f32.gmra.mxu0 %v1847
        %v2052 = vpop.f32.mrf.mxu0
        %v2053 = vadd.f32 0.0, %v2052
        %2054 = vmatmul.f32.gmra.mxu0 %v1848
        %v2055 = vpop.f32.mrf.mxu0
        %v2056 = vadd.f32 0.0, %v2055
        %2057 = vmatmul.f32.gmra.mxu0 %v1849
        %v2058 = vpop.f32.mrf.mxu0
        %v2059 = vadd.f32 0.0, %v2058
        %2060 = vmatmul.f32.gmra.mxu0 %v1850
        %v2061 = vpop.f32.mrf.mxu0
        %v2062 = vadd.f32 0.0, %v2061
        %2063 = vmatmul.f32.gmra.mxu0 %v1851
        %v2064 = vpop.f32.mrf.mxu0
        %v2065 = vadd.f32 0.0, %v2064
        %2066 = vmatmul.f32.gmra.mxu0 %v1852
        %v2067 = vpop.f32.mrf.mxu0
        %v2068 = vadd.f32 0.0, %v2067
        %2069 = vmatmul.f32.gmra.mxu0 %v1853
        %v2070 = vpop.f32.mrf.mxu0
        %v2071 = vadd.f32 0.0, %v2070
        %2072 = vmatmul.f32.gmra.mxu0 %v1854
        %v2073 = vpop.f32.mrf.mxu0
        %v2074 = vadd.f32 0.0, %v2073
        %2075 = vmatmul.f32.gmra.mxu0 %v1855
        %v2076 = vpop.f32.mrf.mxu0
        %v2077 = vadd.f32 0.0, %v2076
        %2078 = vmatmul.f32.gmra.mxu0 %v1856
        %v2079 = vpop.f32.mrf.mxu0
        %v2080 = vadd.f32 0.0, %v2079
        %2081 = vmatmul.f32.gmra.mxu0 %v1857
        %v2082 = vpop.f32.mrf.mxu0
        %v2083 = vadd.f32 0.0, %v2082
        %2084 = vdwg.mxu0
        %v2085 = vadd.f32 %v1973, %v2038
        %v2086 = vadd.f32 %v1976, %v2041
        %v2087 = vadd.f32 %v1979, %v2044
        %v2088 = vadd.f32 %v1982, %v2047
        %v2089 = vadd.f32 %v1985, %v2050
        %v2090 = vadd.f32 %v1988, %v2053
        %v2091 = vadd.f32 %v1991, %v2056
        %v2092 = vadd.f32 %v1994, %v2059
        %v2093 = vadd.f32 %v1997, %v2062
        %v2094 = vadd.f32 %v2000, %v2065
        %v2095 = vadd.f32 %v2003, %v2068
        %v2096 = vadd.f32 %v2006, %v2071
        %v2097 = vadd.f32 %v2009, %v2074
        %v2098 = vadd.f32 %v2012, %v2077
        %v2099 = vadd.f32 %v2015, %v2080
        %v2100 = vadd.f32 %v2018, %v2083
        %v2101 = vtanh.pop %v2085
        %v2102 = vtanh.pop %v2086
        %v2103 = vtanh.pop %v2087
        %v2104 = vtanh.pop %v2088
        %v2105 = vtanh.pop %v2089
        %v2106 = vtanh.pop %v2090
        %v2107 = vtanh.pop %v2091
        %v2108 = vtanh.pop %v2092
        %v2109 = vtanh.pop %v2093
        %v2110 = vtanh.pop %v2094
        %v2111 = vtanh.pop %v2095
        %v2112 = vtanh.pop %v2096
        %v2113 = vtanh.pop %v2097
        %v2114 = vtanh.pop %v2098
        %v2115 = vtanh.pop %v2099
        %v2116 = vtanh.pop %v2100
        %2117 = vmatpush.msra.mxu0 %v810
        %2118 = vmatpush.msra.mxu0 %v809
        %2119 = vmatpush.msra.mxu0 %v808
        %2120 = vmatpush.msra.mxu0 %v807
        %2121 = vmatpush.msra.mxu0 %v806
        %2122 = vmatpush.msra.mxu0 %v805
        %2123 = vmatpush.msra.mxu0 %v804
        %2124 = vmatpush.msra.mxu0 %v803
        %2125 = vmatpush.msra.mxu0 %v802
        %2126 = vmatpush.msra.mxu0 %v801
        %2127 = vmatpush.msra.mxu0 %v800
        %2128 = vmatpush.msra.mxu0 %v799
        %2129 = vmatpush.msra.mxu0 %v798
        %2130 = vmatpush.msra.mxu0 %v797
        %2131 = vmatpush.msra.mxu0 %v796
        %2132 = vmatpush.msra.mxu0 %v795
        %2133 = vmatmul.f32.gmra.mxu0 %v1713
        %v2134 = vpop.f32.mrf.mxu0
        %v2135 = vadd.f32 %v853, %v2134
        %2136 = vmatmul.f32.gmra.mxu0 %v1714
        %v2137 = vpop.f32.mrf.mxu0
        %v2138 = vadd.f32 %v853, %v2137
        %2139 = vmatmul.f32.gmra.mxu0 %v1715
        %v2140 = vpop.f32.mrf.mxu0
        %v2141 = vadd.f32 %v853, %v2140
        %2142 = vmatmul.f32.gmra.mxu0 %v1716
        %v2143 = vpop.f32.mrf.mxu0
        %v2144 = vadd.f32 %v853, %v2143
        %2145 = vmatmul.f32.gmra.mxu0 %v1717
        %v2146 = vpop.f32.mrf.mxu0
        %v2147 = vadd.f32 %v853, %v2146
        %2148 = vmatmul.f32.gmra.mxu0 %v1718
        %v2149 = vpop.f32.mrf.mxu0
        %v2150 = vadd.f32 %v853, %v2149
        %2151 = vmatmul.f32.gmra.mxu0 %v1719
        %v2152 = vpop.f32.mrf.mxu0
        %v2153 = vadd.f32 %v853, %v2152
        %2154 = vmatmul.f32.gmra.mxu0 %v1720
        %v2155 = vpop.f32.mrf.mxu0
        %v2156 = vadd.f32 %v853, %v2155
        %2157 = vmatmul.f32.gmra.mxu0 %v1721
        %v2158 = vpop.f32.mrf.mxu0
        %v2159 = vadd.f32 %v853, %v2158
        %2160 = vmatmul.f32.gmra.mxu0 %v1722
        %v2161 = vpop.f32.mrf.mxu0
        %v2162 = vadd.f32 %v853, %v2161
        %2163 = vmatmul.f32.gmra.mxu0 %v1723
        %v2164 = vpop.f32.mrf.mxu0
        %v2165 = vadd.f32 %v853, %v2164
        %2166 = vmatmul.f32.gmra.mxu0 %v1724
        %v2167 = vpop.f32.mrf.mxu0
        %v2168 = vadd.f32 %v853, %v2167
        %2169 = vmatmul.f32.gmra.mxu0 %v1725
        %v2170 = vpop.f32.mrf.mxu0
        %v2171 = vadd.f32 %v853, %v2170
        %2172 = vmatmul.f32.gmra.mxu0 %v1726
        %v2173 = vpop.f32.mrf.mxu0
        %v2174 = vadd.f32 %v853, %v2173
        %2175 = vmatmul.f32.gmra.mxu0 %v1727
        %v2176 = vpop.f32.mrf.mxu0
        %v2177 = vadd.f32 %v853, %v2176
        %2178 = vmatmul.f32.gmra.mxu0 %v1728
        %v2179 = vpop.f32.mrf.mxu0
        %v2180 = vadd.f32 %v853, %v2179
        %2181 = vdwg.mxu0
        %v2182 = vsub.f32 %v1842, %v953
        %v2183 = vsub.f32 %v1843, %v954
        %v2184 = vsub.f32 %v1844, %v955
        %v2185 = vsub.f32 %v1845, %v956
        %v2186 = vsub.f32 %v1846, %v957
        %v2187 = vsub.f32 %v1847, %v958
        %v2188 = vsub.f32 %v1848, %v959
        %v2189 = vsub.f32 %v1849, %v960
        %v2190 = vsub.f32 %v1850, %v961
        %v2191 = vsub.f32 %v1851, %v962
        %v2192 = vsub.f32 %v1852, %v963
        %v2193 = vsub.f32 %v1853, %v964
        %v2194 = vsub.f32 %v1854, %v965
        %v2195 = vsub.f32 %v1855, %v966
        %v2196 = vsub.f32 %v1856, %v967
        %v2197 = vsub.f32 %v1857, %v968
        %v2198 = vmul.f32 %v2182, 0.5
        %v2199 = vmul.f32 %v2183, 0.5
        %v2200 = vmul.f32 %v2184, 0.5
        %v2201 = vmul.f32 %v2185, 0.5
        %v2202 = vmul.f32 %v2186, 0.5
        %v2203 = vmul.f32 %v2187, 0.5
        %v2204 = vmul.f32 %v2188, 0.5
        %v2205 = vmul.f32 %v2189, 0.5
        %v2206 = vmul.f32 %v2190, 0.5
        %v2207 = vmul.f32 %v2191, 0.5
        %v2208 = vmul.f32 %v2192, 0.5
        %v2209 = vmul.f32 %v2193, 0.5
        %v2210 = vmul.f32 %v2194, 0.5
        %v2211 = vmul.f32 %v2195, 0.5
        %v2212 = vmul.f32 %v2196, 0.5
        %v2213 = vmul.f32 %v2197, 0.5
        %v2214 = vsub.f32 %v2135, %v2198
        %v2215 = vsub.f32 %v2138, %v2199
        %v2216 = vsub.f32 %v2141, %v2200
        %v2217 = vsub.f32 %v2144, %v2201
        %v2218 = vsub.f32 %v2147, %v2202
        %v2219 = vsub.f32 %v2150, %v2203
        %v2220 = vsub.f32 %v2153, %v2204
        %v2221 = vsub.f32 %v2156, %v2205
        %v2222 = vsub.f32 %v2159, %v2206
        %v2223 = vsub.f32 %v2162, %v2207
        %v2224 = vsub.f32 %v2165, %v2208
        %v2225 = vsub.f32 %v2168, %v2209
        %v2226 = vsub.f32 %v2171, %v2210
        %v2227 = vsub.f32 %v2174, %v2211
        %v2228 = vsub.f32 %v2177, %v2212
        %v2229 = vsub.f32 %v2180, %v2213
        %v2230 = vtanh.pop %v2214
        %v2231 = vtanh.pop %v2215
        %v2232 = vtanh.pop %v2216
        %v2233 = vtanh.pop %v2217
        %v2234 = vtanh.pop %v2218
        %v2235 = vtanh.pop %v2219
        %v2236 = vtanh.pop %v2220
        %v2237 = vtanh.pop %v2221
        %v2238 = vtanh.pop %v2222
        %v2239 = vtanh.pop %v2223
        %v2240 = vtanh.pop %v2224
        %v2241 = vtanh.pop %v2225
        %v2242 = vtanh.pop %v2226
        %v2243 = vtanh.pop %v2227
        %v2244 = vtanh.pop %v2228
        %v2245 = vtanh.pop %v2229
        %2246 = vmatpush.msra.mxu0 %v826
        %2247 = vmatpush.msra.mxu0 %v825
        %2248 = vmatpush.msra.mxu0 %v824
        %2249 = vmatpush.msra.mxu0 %v823
        %2250 = vmatpush.msra.mxu0 %v822
        %2251 = vmatpush.msra.mxu0 %v821
        %2252 = vmatpush.msra.mxu0 %v820
        %2253 = vmatpush.msra.mxu0 %v819
        %2254 = vmatpush.msra.mxu0 %v818
        %2255 = vmatpush.msra.mxu0 %v817
        %2256 = vmatpush.msra.mxu0 %v816
        %2257 = vmatpush.msra.mxu0 %v815
        %2258 = vmatpush.msra.mxu0 %v814
        %2259 = vmatpush.msra.mxu0 %v813
        %2260 = vmatpush.msra.mxu0 %v812
        %2261 = vmatpush.msra.mxu0 %v811
        %2262 = vmatmul.f32.gmra.mxu0 %v2101
        %v2263 = vpop.f32.mrf.mxu0
        %v2264 = vadd.f32 0.0, %v2263
        %2265 = vmatmul.f32.gmra.mxu0 %v2102
        %v2266 = vpop.f32.mrf.mxu0
        %v2267 = vadd.f32 0.0, %v2266
        %2268 = vmatmul.f32.gmra.mxu0 %v2103
        %v2269 = vpop.f32.mrf.mxu0
        %v2270 = vadd.f32 0.0, %v2269
        %2271 = vmatmul.f32.gmra.mxu0 %v2104
        %v2272 = vpop.f32.mrf.mxu0
        %v2273 = vadd.f32 0.0, %v2272
        %2274 = vmatmul.f32.gmra.mxu0 %v2105
        %v2275 = vpop.f32.mrf.mxu0
        %v2276 = vadd.f32 0.0, %v2275
        %2277 = vmatmul.f32.gmra.mxu0 %v2106
        %v2278 = vpop.f32.mrf.mxu0
        %v2279 = vadd.f32 0.0, %v2278
        %2280 = vmatmul.f32.gmra.mxu0 %v2107
        %v2281 = vpop.f32.mrf.mxu0
        %v2282 = vadd.f32 0.0, %v2281
        %2283 = vmatmul.f32.gmra.mxu0 %v2108
        %v2284 = vpop.f32.mrf.mxu0
        %v2285 = vadd.f32 0.0, %v2284
        %2286 = vmatmul.f32.gmra.mxu0 %v2109
        %v2287 = vpop.f32.mrf.mxu0
        %v2288 = vadd.f32 0.0, %v2287
        %2289 = vmatmul.f32.gmra.mxu0 %v2110
        %v2290 = vpop.f32.mrf.mxu0
        %v2291 = vadd.f32 0.0, %v2290
        %2292 = vmatmul.f32.gmra.mxu0 %v2111
        %v2293 = vpop.f32.mrf.mxu0
        %v2294 = vadd.f32 0.0, %v2293
        %2295 = vmatmul.f32.gmra.mxu0 %v2112
        %v2296 = vpop.f32.mrf.mxu0
        %v2297 = vadd.f32 0.0, %v2296
        %2298 = vmatmul.f32.gmra.mxu0 %v2113
        %v2299 = vpop.f32.mrf.mxu0
        %v2300 = vadd.f32 0.0, %v2299
        %2301 = vmatmul.f32.gmra.mxu0 %v2114
        %v2302 = vpop.f32.mrf.mxu0
        %v2303 = vadd.f32 0.0, %v2302
        %2304 = vmatmul.f32.gmra.mxu0 %v2115
        %v2305 = vpop.f32.mrf.mxu0
        %v2306 = vadd.f32 0.0, %v2305
        %2307 = vmatmul.f32.gmra.mxu0 %v2116
        %v2308 = vpop.f32.mrf.mxu0
        %v2309 = vadd.f32 0.0, %v2308
        %2310 = vdwg.mxu0
        %v2311 = vadd.f32 %v1035, %v2264
        %v2312 = vadd.f32 %v1038, %v2267
        %v2313 = vadd.f32 %v1041, %v2270
        %v2314 = vadd.f32 %v1044, %v2273
        %v2315 = vadd.f32 %v1047, %v2276
        %v2316 = vadd.f32 %v1050, %v2279
        %v2317 = vadd.f32 %v1053, %v2282
        %v2318 = vadd.f32 %v1056, %v2285
        %v2319 = vadd.f32 %v1059, %v2288
        %v2320 = vadd.f32 %v1062, %v2291
        %v2321 = vadd.f32 %v1065, %v2294
        %v2322 = vadd.f32 %v1068, %v2297
        %v2323 = vadd.f32 %v1071, %v2300
        %v2324 = vadd.f32 %v1074, %v2303
        %v2325 = vadd.f32 %v1077, %v2306
        %v2326 = vadd.f32 %v1080, %v2309
        %v2327 = vtanh.pop %v2311
        %v2328 = vtanh.pop %v2312
        %v2329 = vtanh.pop %v2313
        %v2330 = vtanh.pop %v2314
        %v2331 = vtanh.pop %v2315
        %v2332 = vtanh.pop %v2316
        %v2333 = vtanh.pop %v2317
        %v2334 = vtanh.pop %v2318
        %v2335 = vtanh.pop %v2319
        %v2336 = vtanh.pop %v2320
        %v2337 = vtanh.pop %v2321
        %v2338 = vtanh.pop %v2322
        %v2339 = vtanh.pop %v2323
        %v2340 = vtanh.pop %v2324
        %v2341 = vtanh.pop %v2325
        %v2342 = vtanh.pop %v2326
        %2343 = vmatpush.msra.mxu0 %v794
        %2344 = vmatpush.msra.mxu0 %v793
        %2345 = vmatpush.msra.mxu0 %v792
        %2346 = vmatpush.msra.mxu0 %v791
        %2347 = vmatpush.msra.mxu0 %v790
        %2348 = vmatpush.msra.mxu0 %v789
        %2349 = vmatpush.msra.mxu0 %v788
        %2350 = vmatpush.msra.mxu0 %v787
        %2351 = vmatpush.msra.mxu0 %v786
        %2352 = vmatpush.msra.mxu0 %v785
        %2353 = vmatpush.msra.mxu0 %v784
        %2354 = vmatpush.msra.mxu0 %v783
        %2355 = vmatpush.msra.mxu0 %v782
        %2356 = vmatpush.msra.mxu0 %v781
        %2357 = vmatpush.msra.mxu0 %v780
        %2358 = vmatpush.msra.mxu0 %v779
        %2359 = vmatmul.f32.gmra.mxu0 %v1939
        %v2360 = vpop.f32.mrf.mxu0
        %v2361 = vadd.f32 %v849, %v2360
        %2362 = vmatmul.f32.gmra.mxu0 %v1940
        %v2363 = vpop.f32.mrf.mxu0
        %v2364 = vadd.f32 %v849, %v2363
        %2365 = vmatmul.f32.gmra.mxu0 %v1941
        %v2366 = vpop.f32.mrf.mxu0
        %v2367 = vadd.f32 %v849, %v2366
        %2368 = vmatmul.f32.gmra.mxu0 %v1942
        %v2369 = vpop.f32.mrf.mxu0
        %v2370 = vadd.f32 %v849, %v2369
        %2371 = vmatmul.f32.gmra.mxu0 %v1943
        %v2372 = vpop.f32.mrf.mxu0
        %v2373 = vadd.f32 %v849, %v2372
        %2374 = vmatmul.f32.gmra.mxu0 %v1944
        %v2375 = vpop.f32.mrf.mxu0
        %v2376 = vadd.f32 %v849, %v2375
        %2377 = vmatmul.f32.gmra.mxu0 %v1945
        %v2378 = vpop.f32.mrf.mxu0
        %v2379 = vadd.f32 %v849, %v2378
        %2380 = vmatmul.f32.gmra.mxu0 %v1946
        %v2381 = vpop.f32.mrf.mxu0
        %v2382 = vadd.f32 %v849, %v2381
        %2383 = vmatmul.f32.gmra.mxu0 %v1947
        %v2384 = vpop.f32.mrf.mxu0
        %v2385 = vadd.f32 %v849, %v2384
        %2386 = vmatmul.f32.gmra.mxu0 %v1948
        %v2387 = vpop.f32.mrf.mxu0
        %v2388 = vadd.f32 %v849, %v2387
        %2389 = vmatmul.f32.gmra.mxu0 %v1949
        %v2390 = vpop.f32.mrf.mxu0
        %v2391 = vadd.f32 %v849, %v2390
        %2392 = vmatmul.f32.gmra.mxu0 %v1950
        %v2393 = vpop.f32.mrf.mxu0
        %v2394 = vadd.f32 %v849, %v2393
        %2395 = vmatmul.f32.gmra.mxu0 %v1951
        %v2396 = vpop.f32.mrf.mxu0
        %v2397 = vadd.f32 %v849, %v2396
        %2398 = vmatmul.f32.gmra.mxu0 %v1952
        %v2399 = vpop.f32.mrf.mxu0
        %v2400 = vadd.f32 %v849, %v2399
        %2401 = vmatmul.f32.gmra.mxu0 %v1953
        %v2402 = vpop.f32.mrf.mxu0
        %v2403 = vadd.f32 %v849, %v2402
        %2404 = vmatmul.f32.gmra.mxu0 %v1954
        %v2405 = vpop.f32.mrf.mxu0
        %v2406 = vadd.f32 %v849, %v2405
        %2407 = vdwg.mxu0
        %2408 = vmatpush.msra.mxu0 %v842
        %2409 = vmatpush.msra.mxu0 %v841
        %2410 = vmatpush.msra.mxu0 %v840
        %2411 = vmatpush.msra.mxu0 %v839
        %2412 = vmatpush.msra.mxu0 %v838
        %2413 = vmatpush.msra.mxu0 %v837
        %2414 = vmatpush.msra.mxu0 %v836
        %2415 = vmatpush.msra.mxu0 %v835
        %2416 = vmatpush.msra.mxu0 %v834
        %2417 = vmatpush.msra.mxu0 %v833
        %2418 = vmatpush.msra.mxu0 %v832
        %2419 = vmatpush.msra.mxu0 %v831
        %2420 = vmatpush.msra.mxu0 %v830
        %2421 = vmatpush.msra.mxu0 %v829
        %2422 = vmatpush.msra.mxu0 %v828
        %2423 = vmatpush.msra.mxu0 %v827
        %2424 = vmatmul.f32.gmra.mxu0 %v2230
        %v2425 = vpop.f32.mrf.mxu0
        %v2426 = vadd.f32 0.0, %v2425
        %2427 = vmatmul.f32.gmra.mxu0 %v2231
        %v2428 = vpop.f32.mrf.mxu0
        %v2429 = vadd.f32 0.0, %v2428
        %2430 = vmatmul.f32.gmra.mxu0 %v2232
        %v2431 = vpop.f32.mrf.mxu0
        %v2432 = vadd.f32 0.0, %v2431
        %2433 = vmatmul.f32.gmra.mxu0 %v2233
        %v2434 = vpop.f32.mrf.mxu0
        %v2435 = vadd.f32 0.0, %v2434
        %2436 = vmatmul.f32.gmra.mxu0 %v2234
        %v2437 = vpop.f32.mrf.mxu0
        %v2438 = vadd.f32 0.0, %v2437
        %2439 = vmatmul.f32.gmra.mxu0 %v2235
        %v2440 = vpop.f32.mrf.mxu0
        %v2441 = vadd.f32 0.0, %v2440
        %2442 = vmatmul.f32.gmra.mxu0 %v2236
        %v2443 = vpop.f32.mrf.mxu0
        %v2444 = vadd.f32 0.0, %v2443
        %2445 = vmatmul.f32.gmra.mxu0 %v2237
        %v2446 = vpop.f32.mrf.mxu0
        %v2447 = vadd.f32 0.0, %v2446
        %2448 = vmatmul.f32.gmra.mxu0 %v2238
        %v2449 = vpop.f32.mrf.mxu0
        %v2450 = vadd.f32 0.0, %v2449
        %2451 = vmatmul.f32.gmra.mxu0 %v2239
        %v2452 = vpop.f32.mrf.mxu0
        %v2453 = vadd.f32 0.0, %v2452
        %2454 = vmatmul.f32.gmra.mxu0 %v2240
        %v2455 = vpop.f32.mrf.mxu0
        %v2456 = vadd.f32 0.0, %v2455
        %2457 = vmatmul.f32.gmra.mxu0 %v2241
        %v2458 = vpop.f32.mrf.mxu0
        %v2459 = vadd.f32 0.0, %v2458
        %2460 = vmatmul.f32.gmra.mxu0 %v2242
        %v2461 = vpop.f32.mrf.mxu0
        %v2462 = vadd.f32 0.0, %v2461
        %2463 = vmatmul.f32.gmra.mxu0 %v2243
        %v2464 = vpop.f32.mrf.mxu0
        %v2465 = vadd.f32 0.0, %v2464
        %2466 = vmatmul.f32.gmra.mxu0 %v2244
        %v2467 = vpop.f32.mrf.mxu0
        %v2468 = vadd.f32 0.0, %v2467
        %2469 = vmatmul.f32.gmra.mxu0 %v2245
        %v2470 = vpop.f32.mrf.mxu0
        %v2471 = vadd.f32 0.0, %v2470
        %2472 = vdwg.mxu0
        %v2473 = vadd.f32 %v2361, %v2426
        %v2474 = vadd.f32 %v2364, %v2429
        %v2475 = vadd.f32 %v2367, %v2432
        %v2476 = vadd.f32 %v2370, %v2435
        %v2477 = vadd.f32 %v2373, %v2438
        %v2478 = vadd.f32 %v2376, %v2441
        %v2479 = vadd.f32 %v2379, %v2444
        %v2480 = vadd.f32 %v2382, %v2447
        %v2481 = vadd.f32 %v2385, %v2450
        %v2482 = vadd.f32 %v2388, %v2453
        %v2483 = vadd.f32 %v2391, %v2456
        %v2484 = vadd.f32 %v2394, %v2459
        %v2485 = vadd.f32 %v2397, %v2462
        %v2486 = vadd.f32 %v2400, %v2465
        %v2487 = vadd.f32 %v2403, %v2468
        %v2488 = vadd.f32 %v2406, %v2471
        %v2489 = vtanh.pop %v2473
        %v2490 = vtanh.pop %v2474
        %v2491 = vtanh.pop %v2475
        %v2492 = vtanh.pop %v2476
        %v2493 = vtanh.pop %v2477
        %v2494 = vtanh.pop %v2478
        %v2495 = vtanh.pop %v2479
        %v2496 = vtanh.pop %v2480
        %v2497 = vtanh.pop %v2481
        %v2498 = vtanh.pop %v2482
        %v2499 = vtanh.pop %v2483
        %v2500 = vtanh.pop %v2484
        %v2501 = vtanh.pop %v2485
        %v2502 = vtanh.pop %v2486
        %v2503 = vtanh.pop %v2487
        %v2504 = vtanh.pop %v2488
        %2505 = vmatpush.msra.mxu0 %v810
        %2506 = vmatpush.msra.mxu0 %v809
        %2507 = vmatpush.msra.mxu0 %v808
        %2508 = vmatpush.msra.mxu0 %v807
        %2509 = vmatpush.msra.mxu0 %v806
        %2510 = vmatpush.msra.mxu0 %v805
        %2511 = vmatpush.msra.mxu0 %v804
        %2512 = vmatpush.msra.mxu0 %v803
        %2513 = vmatpush.msra.mxu0 %v802
        %2514 = vmatpush.msra.mxu0 %v801
        %2515 = vmatpush.msra.mxu0 %v800
        %2516 = vmatpush.msra.mxu0 %v799
        %2517 = vmatpush.msra.mxu0 %v798
        %2518 = vmatpush.msra.mxu0 %v797
        %2519 = vmatpush.msra.mxu0 %v796
        %2520 = vmatpush.msra.mxu0 %v795
        %2521 = vmatmul.f32.gmra.mxu0 %v2101
        %v2522 = vpop.f32.mrf.mxu0
        %v2523 = vadd.f32 %v853, %v2522
        %2524 = vmatmul.f32.gmra.mxu0 %v2102
        %v2525 = vpop.f32.mrf.mxu0
        %v2526 = vadd.f32 %v853, %v2525
        %2527 = vmatmul.f32.gmra.mxu0 %v2103
        %v2528 = vpop.f32.mrf.mxu0
        %v2529 = vadd.f32 %v853, %v2528
        %2530 = vmatmul.f32.gmra.mxu0 %v2104
        %v2531 = vpop.f32.mrf.mxu0
        %v2532 = vadd.f32 %v853, %v2531
        %2533 = vmatmul.f32.gmra.mxu0 %v2105
        %v2534 = vpop.f32.mrf.mxu0
        %v2535 = vadd.f32 %v853, %v2534
        %2536 = vmatmul.f32.gmra.mxu0 %v2106
        %v2537 = vpop.f32.mrf.mxu0
        %v2538 = vadd.f32 %v853, %v2537
        %2539 = vmatmul.f32.gmra.mxu0 %v2107
        %v2540 = vpop.f32.mrf.mxu0
        %v2541 = vadd.f32 %v853, %v2540
        %2542 = vmatmul.f32.gmra.mxu0 %v2108
        %v2543 = vpop.f32.mrf.mxu0
        %v2544 = vadd.f32 %v853, %v2543
        %2545 = vmatmul.f32.gmra.mxu0 %v2109
        %v2546 = vpop.f32.mrf.mxu0
        %v2547 = vadd.f32 %v853, %v2546
        %2548 = vmatmul.f32.gmra.mxu0 %v2110
        %v2549 = vpop.f32.mrf.mxu0
        %v2550 = vadd.f32 %v853, %v2549
        %2551 = vmatmul.f32.gmra.mxu0 %v2111
        %v2552 = vpop.f32.mrf.mxu0
        %v2553 = vadd.f32 %v853, %v2552
        %2554 = vmatmul.f32.gmra.mxu0 %v2112
        %v2555 = vpop.f32.mrf.mxu0
        %v2556 = vadd.f32 %v853, %v2555
        %2557 = vmatmul.f32.gmra.mxu0 %v2113
        %v2558 = vpop.f32.mrf.mxu0
        %v2559 = vadd.f32 %v853, %v2558
        %2560 = vmatmul.f32.gmra.mxu0 %v2114
        %v2561 = vpop.f32.mrf.mxu0
        %v2562 = vadd.f32 %v853, %v2561
        %2563 = vmatmul.f32.gmra.mxu0 %v2115
        %v2564 = vpop.f32.mrf.mxu0
        %v2565 = vadd.f32 %v853, %v2564
        %2566 = vmatmul.f32.gmra.mxu0 %v2116
        %v2567 = vpop.f32.mrf.mxu0
        %v2568 = vadd.f32 %v853, %v2567
        %2569 = vdwg.mxu0
        %v2570 = vsub.f32 %v2230, %v953
        %v2571 = vsub.f32 %v2231, %v954
        %v2572 = vsub.f32 %v2232, %v955
        %v2573 = vsub.f32 %v2233, %v956
        %v2574 = vsub.f32 %v2234, %v957
        %v2575 = vsub.f32 %v2235, %v958
        %v2576 = vsub.f32 %v2236, %v959
        %v2577 = vsub.f32 %v2237, %v960
        %v2578 = vsub.f32 %v2238, %v961
        %v2579 = vsub.f32 %v2239, %v962
        %v2580 = vsub.f32 %v2240, %v963
        %v2581 = vsub.f32 %v2241, %v964
        %v2582 = vsub.f32 %v2242, %v965
        %v2583 = vsub.f32 %v2243, %v966
        %v2584 = vsub.f32 %v2244, %v967
        %v2585 = vsub.f32 %v2245, %v968
        %v2586 = vmul.f32 %v2570, 0.5
        %v2587 = vmul.f32 %v2571, 0.5
        %v2588 = vmul.f32 %v2572, 0.5
        %v2589 = vmul.f32 %v2573, 0.5
        %v2590 = vmul.f32 %v2574, 0.5
        %v2591 = vmul.f32 %v2575, 0.5
        %v2592 = vmul.f32 %v2576, 0.5
        %v2593 = vmul.f32 %v2577, 0.5
        %v2594 = vmul.f32 %v2578, 0.5
        %v2595 = vmul.f32 %v2579, 0.5
        %v2596 = vmul.f32 %v2580, 0.5
        %v2597 = vmul.f32 %v2581, 0.5
        %v2598 = vmul.f32 %v2582, 0.5
        %v2599 = vmul.f32 %v2583, 0.5
        %v2600 = vmul.f32 %v2584, 0.5
        %v2601 = vmul.f32 %v2585, 0.5
        %v2602 = vsub.f32 %v2523, %v2586
        %v2603 = vsub.f32 %v2526, %v2587
        %v2604 = vsub.f32 %v2529, %v2588
        %v2605 = vsub.f32 %v2532, %v2589
        %v2606 = vsub.f32 %v2535, %v2590
        %v2607 = vsub.f32 %v2538, %v2591
        %v2608 = vsub.f32 %v2541, %v2592
        %v2609 = vsub.f32 %v2544, %v2593
        %v2610 = vsub.f32 %v2547, %v2594
        %v2611 = vsub.f32 %v2550, %v2595
        %v2612 = vsub.f32 %v2553, %v2596
        %v2613 = vsub.f32 %v2556, %v2597
        %v2614 = vsub.f32 %v2559, %v2598
        %v2615 = vsub.f32 %v2562, %v2599
        %v2616 = vsub.f32 %v2565, %v2600
        %v2617 = vsub.f32 %v2568, %v2601
        %v2618 = vtanh.pop %v2602
        %v2619 = vtanh.pop %v2603
        %v2620 = vtanh.pop %v2604
        %v2621 = vtanh.pop %v2605
        %v2622 = vtanh.pop %v2606
        %v2623 = vtanh.pop %v2607
        %v2624 = vtanh.pop %v2608
        %v2625 = vtanh.pop %v2609
        %v2626 = vtanh.pop %v2610
        %v2627 = vtanh.pop %v2611
        %v2628 = vtanh.pop %v2612
        %v2629 = vtanh.pop %v2613
        %v2630 = vtanh.pop %v2614
        %v2631 = vtanh.pop %v2615
        %v2632 = vtanh.pop %v2616
        %v2633 = vtanh.pop %v2617
        %2634 = vmatpush.msra.mxu0 %v826
        %2635 = vmatpush.msra.mxu0 %v825
        %2636 = vmatpush.msra.mxu0 %v824
        %2637 = vmatpush.msra.mxu0 %v823
        %2638 = vmatpush.msra.mxu0 %v822
        %2639 = vmatpush.msra.mxu0 %v821
        %2640 = vmatpush.msra.mxu0 %v820
        %2641 = vmatpush.msra.mxu0 %v819
        %2642 = vmatpush.msra.mxu0 %v818
        %2643 = vmatpush.msra.mxu0 %v817
        %2644 = vmatpush.msra.mxu0 %v816
        %2645 = vmatpush.msra.mxu0 %v815
        %2646 = vmatpush.msra.mxu0 %v814
        %2647 = vmatpush.msra.mxu0 %v813
        %2648 = vmatpush.msra.mxu0 %v812
        %2649 = vmatpush.msra.mxu0 %v811
        %2650 = vmatmul.f32.gmra.mxu0 %v2489
        %v2651 = vpop.f32.mrf.mxu0
        %v2652 = vadd.f32 0.0, %v2651
        %2653 = vmatmul.f32.gmra.mxu0 %v2490
        %v2654 = vpop.f32.mrf.mxu0
        %v2655 = vadd.f32 0.0, %v2654
        %2656 = vmatmul.f32.gmra.mxu0 %v2491
        %v2657 = vpop.f32.mrf.mxu0
        %v2658 = vadd.f32 0.0, %v2657
        %2659 = vmatmul.f32.gmra.mxu0 %v2492
        %v2660 = vpop.f32.mrf.mxu0
        %v2661 = vadd.f32 0.0, %v2660
        %2662 = vmatmul.f32.gmra.mxu0 %v2493
        %v2663 = vpop.f32.mrf.mxu0
        %v2664 = vadd.f32 0.0, %v2663
        %2665 = vmatmul.f32.gmra.mxu0 %v2494
        %v2666 = vpop.f32.mrf.mxu0
        %v2667 = vadd.f32 0.0, %v2666
        %2668 = vmatmul.f32.gmra.mxu0 %v2495
        %v2669 = vpop.f32.mrf.mxu0
        %v2670 = vadd.f32 0.0, %v2669
        %2671 = vmatmul.f32.gmra.mxu0 %v2496
        %v2672 = vpop.f32.mrf.mxu0
        %v2673 = vadd.f32 0.0, %v2672
        %2674 = vmatmul.f32.gmra.mxu0 %v2497
        %v2675 = vpop.f32.mrf.mxu0
        %v2676 = vadd.f32 0.0, %v2675
        %2677 = vmatmul.f32.gmra.mxu0 %v2498
        %v2678 = vpop.f32.mrf.mxu0
        %v2679 = vadd.f32 0.0, %v2678
        %2680 = vmatmul.f32.gmra.mxu0 %v2499
        %v2681 = vpop.f32.mrf.mxu0
        %v2682 = vadd.f32 0.0, %v2681
        %2683 = vmatmul.f32.gmra.mxu0 %v2500
        %v2684 = vpop.f32.mrf.mxu0
        %v2685 = vadd.f32 0.0, %v2684
        %2686 = vmatmul.f32.gmra.mxu0 %v2501
        %v2687 = vpop.f32.mrf.mxu0
        %v2688 = vadd.f32 0.0, %v2687
        %2689 = vmatmul.f32.gmra.mxu0 %v2502
        %v2690 = vpop.f32.mrf.mxu0
        %v2691 = vadd.f32 0.0, %v2690
        %2692 = vmatmul.f32.gmra.mxu0 %v2503
        %v2693 = vpop.f32.mrf.mxu0
        %v2694 = vadd.f32 0.0, %v2693
        %2695 = vmatmul.f32.gmra.mxu0 %v2504
        %v2696 = vpop.f32.mrf.mxu0
        %v2697 = vadd.f32 0.0, %v2696
        %2698 = vdwg.mxu0
        %v2699 = vadd.f32 %v1035, %v2652
        %v2700 = vadd.f32 %v1038, %v2655
        %v2701 = vadd.f32 %v1041, %v2658
        %v2702 = vadd.f32 %v1044, %v2661
        %v2703 = vadd.f32 %v1047, %v2664
        %v2704 = vadd.f32 %v1050, %v2667
        %v2705 = vadd.f32 %v1053, %v2670
        %v2706 = vadd.f32 %v1056, %v2673
        %v2707 = vadd.f32 %v1059, %v2676
        %v2708 = vadd.f32 %v1062, %v2679
        %v2709 = vadd.f32 %v1065, %v2682
        %v2710 = vadd.f32 %v1068, %v2685
        %v2711 = vadd.f32 %v1071, %v2688
        %v2712 = vadd.f32 %v1074, %v2691
        %v2713 = vadd.f32 %v1077, %v2694
        %v2714 = vadd.f32 %v1080, %v2697
        %v2715 = vtanh.pop %v2699
        %v2716 = vtanh.pop %v2700
        %v2717 = vtanh.pop %v2701
        %v2718 = vtanh.pop %v2702
        %v2719 = vtanh.pop %v2703
        %v2720 = vtanh.pop %v2704
        %v2721 = vtanh.pop %v2705
        %v2722 = vtanh.pop %v2706
        %v2723 = vtanh.pop %v2707
        %v2724 = vtanh.pop %v2708
        %v2725 = vtanh.pop %v2709
        %v2726 = vtanh.pop %v2710
        %v2727 = vtanh.pop %v2711
        %v2728 = vtanh.pop %v2712
        %v2729 = vtanh.pop %v2713
        %v2730 = vtanh.pop %v2714
        %2731 = vmatpush.msra.mxu0 %v794
        %2732 = vmatpush.msra.mxu0 %v793
        %2733 = vmatpush.msra.mxu0 %v792
        %2734 = vmatpush.msra.mxu0 %v791
        %2735 = vmatpush.msra.mxu0 %v790
        %2736 = vmatpush.msra.mxu0 %v789
        %2737 = vmatpush.msra.mxu0 %v788
        %2738 = vmatpush.msra.mxu0 %v787
        %2739 = vmatpush.msra.mxu0 %v786
        %2740 = vmatpush.msra.mxu0 %v785
        %2741 = vmatpush.msra.mxu0 %v784
        %2742 = vmatpush.msra.mxu0 %v783
        %2743 = vmatpush.msra.mxu0 %v782
        %2744 = vmatpush.msra.mxu0 %v781
        %2745 = vmatpush.msra.mxu0 %v780
        %2746 = vmatpush.msra.mxu0 %v779
        %2747 = vmatmul.f32.gmra.mxu0 %v2327
        %v2748 = vpop.f32.mrf.mxu0
        %v2749 = vadd.f32 %v849, %v2748
        %2750 = vmatmul.f32.gmra.mxu0 %v2328
        %v2751 = vpop.f32.mrf.mxu0
        %v2752 = vadd.f32 %v849, %v2751
        %2753 = vmatmul.f32.gmra.mxu0 %v2329
        %v2754 = vpop.f32.mrf.mxu0
        %v2755 = vadd.f32 %v849, %v2754
        %2756 = vmatmul.f32.gmra.mxu0 %v2330
        %v2757 = vpop.f32.mrf.mxu0
        %v2758 = vadd.f32 %v849, %v2757
        %2759 = vmatmul.f32.gmra.mxu0 %v2331
        %v2760 = vpop.f32.mrf.mxu0
        %v2761 = vadd.f32 %v849, %v2760
        %2762 = vmatmul.f32.gmra.mxu0 %v2332
        %v2763 = vpop.f32.mrf.mxu0
        %v2764 = vadd.f32 %v849, %v2763
        %2765 = vmatmul.f32.gmra.mxu0 %v2333
        %v2766 = vpop.f32.mrf.mxu0
        %v2767 = vadd.f32 %v849, %v2766
        %2768 = vmatmul.f32.gmra.mxu0 %v2334
        %v2769 = vpop.f32.mrf.mxu0
        %v2770 = vadd.f32 %v849, %v2769
        %2771 = vmatmul.f32.gmra.mxu0 %v2335
        %v2772 = vpop.f32.mrf.mxu0
        %v2773 = vadd.f32 %v849, %v2772
        %2774 = vmatmul.f32.gmra.mxu0 %v2336
        %v2775 = vpop.f32.mrf.mxu0
        %v2776 = vadd.f32 %v849, %v2775
        %2777 = vmatmul.f32.gmra.mxu0 %v2337
        %v2778 = vpop.f32.mrf.mxu0
        %v2779 = vadd.f32 %v849, %v2778
        %2780 = vmatmul.f32.gmra.mxu0 %v2338
        %v2781 = vpop.f32.mrf.mxu0
        %v2782 = vadd.f32 %v849, %v2781
        %2783 = vmatmul.f32.gmra.mxu0 %v2339
        %v2784 = vpop.f32.mrf.mxu0
        %v2785 = vadd.f32 %v849, %v2784
        %2786 = vmatmul.f32.gmra.mxu0 %v2340
        %v2787 = vpop.f32.mrf.mxu0
        %v2788 = vadd.f32 %v849, %v2787
        %2789 = vmatmul.f32.gmra.mxu0 %v2341
        %v2790 = vpop.f32.mrf.mxu0
        %v2791 = vadd.f32 %v849, %v2790
        %2792 = vmatmul.f32.gmra.mxu0 %v2342
        %v2793 = vpop.f32.mrf.mxu0
        %v2794 = vadd.f32 %v849, %v2793
        %2795 = vdwg.mxu0
        %2796 = vmatpush.msra.mxu0 %v842
        %2797 = vmatpush.msra.mxu0 %v841
        %2798 = vmatpush.msra.mxu0 %v840
        %2799 = vmatpush.msra.mxu0 %v839
        %2800 = vmatpush.msra.mxu0 %v838
        %2801 = vmatpush.msra.mxu0 %v837
        %2802 = vmatpush.msra.mxu0 %v836
        %2803 = vmatpush.msra.mxu0 %v835
        %2804 = vmatpush.msra.mxu0 %v834
        %2805 = vmatpush.msra.mxu0 %v833
        %2806 = vmatpush.msra.mxu0 %v832
        %2807 = vmatpush.msra.mxu0 %v831
        %2808 = vmatpush.msra.mxu0 %v830
        %2809 = vmatpush.msra.mxu0 %v829
        %2810 = vmatpush.msra.mxu0 %v828
        %2811 = vmatpush.msra.mxu0 %v827
        %2812 = vmatmul.f32.gmra.mxu0 %v2618
        %v2813 = vpop.f32.mrf.mxu0
        %v2814 = vadd.f32 0.0, %v2813
        %2815 = vmatmul.f32.gmra.mxu0 %v2619
        %v2816 = vpop.f32.mrf.mxu0
        %v2817 = vadd.f32 0.0, %v2816
        %2818 = vmatmul.f32.gmra.mxu0 %v2620
        %v2819 = vpop.f32.mrf.mxu0
        %v2820 = vadd.f32 0.0, %v2819
        %2821 = vmatmul.f32.gmra.mxu0 %v2621
        %v2822 = vpop.f32.mrf.mxu0
        %v2823 = vadd.f32 0.0, %v2822
        %2824 = vmatmul.f32.gmra.mxu0 %v2622
        %v2825 = vpop.f32.mrf.mxu0
        %v2826 = vadd.f32 0.0, %v2825
        %2827 = vmatmul.f32.gmra.mxu0 %v2623
        %v2828 = vpop.f32.mrf.mxu0
        %v2829 = vadd.f32 0.0, %v2828
        %2830 = vmatmul.f32.gmra.mxu0 %v2624
        %v2831 = vpop.f32.mrf.mxu0
        %v2832 = vadd.f32 0.0, %v2831
        %2833 = vmatmul.f32.gmra.mxu0 %v2625
        %v2834 = vpop.f32.mrf.mxu0
        %v2835 = vadd.f32 0.0, %v2834
        %2836 = vmatmul.f32.gmra.mxu0 %v2626
        %v2837 = vpop.f32.mrf.mxu0
        %v2838 = vadd.f32 0.0, %v2837
        %2839 = vmatmul.f32.gmra.mxu0 %v2627
        %v2840 = vpop.f32.mrf.mxu0
        %v2841 = vadd.f32 0.0, %v2840
        %2842 = vmatmul.f32.gmra.mxu0 %v2628
        %v2843 = vpop.f32.mrf.mxu0
        %v2844 = vadd.f32 0.0, %v2843
        %2845 = vmatmul.f32.gmra.mxu0 %v2629
        %v2846 = vpop.f32.mrf.mxu0
        %v2847 = vadd.f32 0.0, %v2846
        %2848 = vmatmul.f32.gmra.mxu0 %v2630
        %v2849 = vpop.f32.mrf.mxu0
        %v2850 = vadd.f32 0.0, %v2849
        %2851 = vmatmul.f32.gmra.mxu0 %v2631
        %v2852 = vpop.f32.mrf.mxu0
        %v2853 = vadd.f32 0.0, %v2852
        %2854 = vmatmul.f32.gmra.mxu0 %v2632
        %v2855 = vpop.f32.mrf.mxu0
        %v2856 = vadd.f32 0.0, %v2855
        %2857 = vmatmul.f32.gmra.mxu0 %v2633
        %v2858 = vpop.f32.mrf.mxu0
        %v2859 = vadd.f32 0.0, %v2858
        %2860 = vdwg.mxu0
        %v2861 = vadd.f32 %v2749, %v2814
        %v2862 = vadd.f32 %v2752, %v2817
        %v2863 = vadd.f32 %v2755, %v2820
        %v2864 = vadd.f32 %v2758, %v2823
        %v2865 = vadd.f32 %v2761, %v2826
        %v2866 = vadd.f32 %v2764, %v2829
        %v2867 = vadd.f32 %v2767, %v2832
        %v2868 = vadd.f32 %v2770, %v2835
        %v2869 = vadd.f32 %v2773, %v2838
        %v2870 = vadd.f32 %v2776, %v2841
        %v2871 = vadd.f32 %v2779, %v2844
        %v2872 = vadd.f32 %v2782, %v2847
        %v2873 = vadd.f32 %v2785, %v2850
        %v2874 = vadd.f32 %v2788, %v2853
        %v2875 = vadd.f32 %v2791, %v2856
        %v2876 = vadd.f32 %v2794, %v2859
        %v2877 = vtanh.pop %v2861
        %v2878 = vtanh.pop %v2862
        %v2879 = vtanh.pop %v2863
        %v2880 = vtanh.pop %v2864
        %v2881 = vtanh.pop %v2865
        %v2882 = vtanh.pop %v2866
        %v2883 = vtanh.pop %v2867
        %v2884 = vtanh.pop %v2868
        %v2885 = vtanh.pop %v2869
        %v2886 = vtanh.pop %v2870
        %v2887 = vtanh.pop %v2871
        %v2888 = vtanh.pop %v2872
        %v2889 = vtanh.pop %v2873
        %v2890 = vtanh.pop %v2874
        %v2891 = vtanh.pop %v2875
        %v2892 = vtanh.pop %v2876
        %2893 = vmatpush.msra.mxu0 %v810
        %2894 = vmatpush.msra.mxu0 %v809
        %2895 = vmatpush.msra.mxu0 %v808
        %2896 = vmatpush.msra.mxu0 %v807
        %2897 = vmatpush.msra.mxu0 %v806
        %2898 = vmatpush.msra.mxu0 %v805
        %2899 = vmatpush.msra.mxu0 %v804
        %2900 = vmatpush.msra.mxu0 %v803
        %2901 = vmatpush.msra.mxu0 %v802
        %2902 = vmatpush.msra.mxu0 %v801
        %2903 = vmatpush.msra.mxu0 %v800
        %2904 = vmatpush.msra.mxu0 %v799
        %2905 = vmatpush.msra.mxu0 %v798
        %2906 = vmatpush.msra.mxu0 %v797
        %2907 = vmatpush.msra.mxu0 %v796
        %2908 = vmatpush.msra.mxu0 %v795
        %2909 = vmatmul.f32.gmra.mxu0 %v2489
        %v2910 = vpop.f32.mrf.mxu0
        %v2911 = vadd.f32 %v853, %v2910
        %2912 = vmatmul.f32.gmra.mxu0 %v2490
        %v2913 = vpop.f32.mrf.mxu0
        %v2914 = vadd.f32 %v853, %v2913
        %2915 = vmatmul.f32.gmra.mxu0 %v2491
        %v2916 = vpop.f32.mrf.mxu0
        %v2917 = vadd.f32 %v853, %v2916
        %2918 = vmatmul.f32.gmra.mxu0 %v2492
        %v2919 = vpop.f32.mrf.mxu0
        %v2920 = vadd.f32 %v853, %v2919
        %2921 = vmatmul.f32.gmra.mxu0 %v2493
        %v2922 = vpop.f32.mrf.mxu0
        %v2923 = vadd.f32 %v853, %v2922
        %2924 = vmatmul.f32.gmra.mxu0 %v2494
        %v2925 = vpop.f32.mrf.mxu0
        %v2926 = vadd.f32 %v853, %v2925
        %2927 = vmatmul.f32.gmra.mxu0 %v2495
        %v2928 = vpop.f32.mrf.mxu0
        %v2929 = vadd.f32 %v853, %v2928
        %2930 = vmatmul.f32.gmra.mxu0 %v2496
        %v2931 = vpop.f32.mrf.mxu0
        %v2932 = vadd.f32 %v853, %v2931
        %2933 = vmatmul.f32.gmra.mxu0 %v2497
        %v2934 = vpop.f32.mrf.mxu0
        %v2935 = vadd.f32 %v853, %v2934
        %2936 = vmatmul.f32.gmra.mxu0 %v2498
        %v2937 = vpop.f32.mrf.mxu0
        %v2938 = vadd.f32 %v853, %v2937
        %2939 = vmatmul.f32.gmra.mxu0 %v2499
        %v2940 = vpop.f32.mrf.mxu0
        %v2941 = vadd.f32 %v853, %v2940
        %2942 = vmatmul.f32.gmra.mxu0 %v2500
        %v2943 = vpop.f32.mrf.mxu0
        %v2944 = vadd.f32 %v853, %v2943
        %2945 = vmatmul.f32.gmra.mxu0 %v2501
        %v2946 = vpop.f32.mrf.mxu0
        %v2947 = vadd.f32 %v853, %v2946
        %2948 = vmatmul.f32.gmra.mxu0 %v2502
        %v2949 = vpop.f32.mrf.mxu0
        %v2950 = vadd.f32 %v853, %v2949
        %2951 = vmatmul.f32.gmra.mxu0 %v2503
        %v2952 = vpop.f32.mrf.mxu0
        %v2953 = vadd.f32 %v853, %v2952
        %2954 = vmatmul.f32.gmra.mxu0 %v2504
        %v2955 = vpop.f32.mrf.mxu0
        %v2956 = vadd.f32 %v853, %v2955
        %2957 = vdwg.mxu0
        %v2958 = vsub.f32 %v2618, %v953
        %v2959 = vsub.f32 %v2619, %v954
        %v2960 = vsub.f32 %v2620, %v955
        %v2961 = vsub.f32 %v2621, %v956
        %v2962 = vsub.f32 %v2622, %v957
        %v2963 = vsub.f32 %v2623, %v958
        %v2964 = vsub.f32 %v2624, %v959
        %v2965 = vsub.f32 %v2625, %v960
        %v2966 = vsub.f32 %v2626, %v961
        %v2967 = vsub.f32 %v2627, %v962
        %v2968 = vsub.f32 %v2628, %v963
        %v2969 = vsub.f32 %v2629, %v964
        %v2970 = vsub.f32 %v2630, %v965
        %v2971 = vsub.f32 %v2631, %v966
        %v2972 = vsub.f32 %v2632, %v967
        %v2973 = vsub.f32 %v2633, %v968
        %v2974 = vmul.f32 %v2958, 0.5
        %v2975 = vmul.f32 %v2959, 0.5
        %v2976 = vmul.f32 %v2960, 0.5
        %v2977 = vmul.f32 %v2961, 0.5
        %v2978 = vmul.f32 %v2962, 0.5
        %v2979 = vmul.f32 %v2963, 0.5
        %v2980 = vmul.f32 %v2964, 0.5
        %v2981 = vmul.f32 %v2965, 0.5
        %v2982 = vmul.f32 %v2966, 0.5
        %v2983 = vmul.f32 %v2967, 0.5
        %v2984 = vmul.f32 %v2968, 0.5
        %v2985 = vmul.f32 %v2969, 0.5
        %v2986 = vmul.f32 %v2970, 0.5
        %v2987 = vmul.f32 %v2971, 0.5
        %v2988 = vmul.f32 %v2972, 0.5
        %v2989 = vmul.f32 %v2973, 0.5
        %v2990 = vsub.f32 %v2911, %v2974
        %v2991 = vsub.f32 %v2914, %v2975
        %v2992 = vsub.f32 %v2917, %v2976
        %v2993 = vsub.f32 %v2920, %v2977
        %v2994 = vsub.f32 %v2923, %v2978
        %v2995 = vsub.f32 %v2926, %v2979
        %v2996 = vsub.f32 %v2929, %v2980
        %v2997 = vsub.f32 %v2932, %v2981
        %v2998 = vsub.f32 %v2935, %v2982
        %v2999 = vsub.f32 %v2938, %v2983
        %v3000 = vsub.f32 %v2941, %v2984
        %v3001 = vsub.f32 %v2944, %v2985
        %v3002 = vsub.f32 %v2947, %v2986
        %v3003 = vsub.f32 %v2950, %v2987
        %v3004 = vsub.f32 %v2953, %v2988
        %v3005 = vsub.f32 %v2956, %v2989
        %v3006 = vtanh.pop %v2990
        %v3007 = vtanh.pop %v2991
        %v3008 = vtanh.pop %v2992
        %v3009 = vtanh.pop %v2993
        %v3010 = vtanh.pop %v2994
        %v3011 = vtanh.pop %v2995
        %v3012 = vtanh.pop %v2996
        %v3013 = vtanh.pop %v2997
        %v3014 = vtanh.pop %v2998
        %v3015 = vtanh.pop %v2999
        %v3016 = vtanh.pop %v3000
        %v3017 = vtanh.pop %v3001
        %v3018 = vtanh.pop %v3002
        %v3019 = vtanh.pop %v3003
        %v3020 = vtanh.pop %v3004
        %v3021 = vtanh.pop %v3005
        %3022 = vst [vmem:[%s714] sm:$0xff] %v2715
        %3023 = vst [vmem:[%s714 + $0x8] sm:$0xff] %v2716
        %3024 = vst [vmem:[%s714 + $0x10] sm:$0xff] %v2717
        %3025 = vst [vmem:[%s714 + $0x18] sm:$0xff] %v2718
        %3026 = vst [vmem:[%s714 + $0x20] sm:$0xff] %v2719
        %3027 = vst [vmem:[%s714 + $0x28] sm:$0xff] %v2720
        %3028 = vst [vmem:[%s714 + $0x30] sm:$0xff] %v2721
        %3029 = vst [vmem:[%s714 + $0x38] sm:$0xff] %v2722
        %3030 = vst [vmem:[%s714 + $0x40] sm:$0xff] %v2723
        %3031 = vst [vmem:[%s714 + $0x48] sm:$0xff] %v2724
        %3032 = vst [vmem:[%s714 + $0x50] sm:$0xff] %v2725
        %3033 = vst [vmem:[%s714 + $0x58] sm:$0xff] %v2726
        %3034 = vst [vmem:[%s714 + $0x60] sm:$0xff] %v2727
        %3035 = vst [vmem:[%s714 + $0x68] sm:$0xff] %v2728
        %3036 = vst [vmem:[%s714 + $0x70] sm:$0xff] %v2729
        %3037 = vst [vmem:[%s714 + $0x78] sm:$0xff] %v2730
        %3038 = vst [vmem:[%s721] sm:$0xff] %v2877
        %3039 = vst [vmem:[%s721 + $0x8] sm:$0xff] %v2878
        %3040 = vst [vmem:[%s721 + $0x10] sm:$0xff] %v2879
        %3041 = vst [vmem:[%s721 + $0x18] sm:$0xff] %v2880
        %3042 = vst [vmem:[%s721 + $0x20] sm:$0xff] %v2881
        %3043 = vst [vmem:[%s721 + $0x28] sm:$0xff] %v2882
        %3044 = vst [vmem:[%s721 + $0x30] sm:$0xff] %v2883
        %3045 = vst [vmem:[%s721 + $0x38] sm:$0xff] %v2884
        %3046 = vst [vmem:[%s721 + $0x40] sm:$0xff] %v2885
        %3047 = vst [vmem:[%s721 + $0x48] sm:$0xff] %v2886
        %3048 = vst [vmem:[%s721 + $0x50] sm:$0xff] %v2887
        %3049 = vst [vmem:[%s721 + $0x58] sm:$0xff] %v2888
        %3050 = vst [vmem:[%s721 + $0x60] sm:$0xff] %v2889
        %3051 = vst [vmem:[%s721 + $0x68] sm:$0xff] %v2890
        %3052 = vst [vmem:[%s721 + $0x70] sm:$0xff] %v2891
        %3053 = vst [vmem:[%s721 + $0x78] sm:$0xff] %v2892
        %3054 = vst [vmem:[%s728] sm:$0xff] %v3006
        %3055 = vst [vmem:[%s728 + $0x8] sm:$0xff] %v3007
        %3056 = vst [vmem:[%s728 + $0x10] sm:$0xff] %v3008
        %3057 = vst [vmem:[%s728 + $0x18] sm:$0xff] %v3009
        %3058 = vst [vmem:[%s728 + $0x20] sm:$0xff] %v3010
        %3059 = vst [vmem:[%s728 + $0x28] sm:$0xff] %v3011
        %3060 = vst [vmem:[%s728 + $0x30] sm:$0xff] %v3012
        %3061 = vst [vmem:[%s728 + $0x38] sm:$0xff] %v3013
        %3062 = vst [vmem:[%s728 + $0x40] sm:$0xff] %v3014
        %3063 = vst [vmem:[%s728 + $0x48] sm:$0xff] %v3015
        %3064 = vst [vmem:[%s728 + $0x50] sm:$0xff] %v3016
        %3065 = vst [vmem:[%s728 + $0x58] sm:$0xff] %v3017
        %3066 = vst [vmem:[%s728 + $0x60] sm:$0xff] %v3018
        %3067 = vst [vmem:[%s728 + $0x68] sm:$0xff] %v3019
        %3068 = vst [vmem:[%s728 + $0x70] sm:$0xff] %v3020
        %3069 = vst [vmem:[%s728 + $0x78] sm:$0xff] %v3021
        %s3070 = sand.u32 %s348, 1
        %s3071 = scalar_lea.sflag [#allocation4], %s3070
        %s3072 = sand.u32 %s348, 1
        %s3073 = smul.addr %s3072, 128
        %s3074 = scalar_lea.vmem [#allocation16], %s3073
        %s3075 = sand.u32 %s42, 1
        %s3076 = scalar_lea.sflag [#allocation18], %s3075
        %s3077 = sand.u32 %s374, 1
        %s3078 = smul.addr %s3077, 128
        %s3079 = scalar_lea.vmem [#allocation17], %s3078
        %s3080 = sand.u32 %s42, 1
        %s3081 = scalar_lea.sflag [#allocation18], %s3080
        %s3082 = sand.u32 %s400, 1
        %s3083 = smul.addr %s3082, 128
        %s3084 = scalar_lea.vmem [#allocation19], %s3083
        // Predicated region
        $region105: #{tpu_custom_call.1} parent=71 // pred_check
          %p3085 = pneg %p358
        $region106: #{tpu_custom_call.1} parent=71 // pred_check_branch
          %3087 = sbr.rel (%p3085) target = $region108
        $region107: #{tpu_custom_call.1} parent=71 // pred_region
          %s3088 = smul.u32 16, %s42
          %3090 = vsyncadd %s3071, 0
          %s3091 = smul.addr %s3088, 8
          %s3092 = scalar_lea.hbm %s13, %s3091
          %s3093 = sshll.u32 %s3074, 4
          %s3094 = int_to_ptr.vmem [resolvable:$true] %s3093
          %s3095 = sshll.u32 %s3092, 4
          %s3096 = int_to_ptr.hbm [resolvable:$true] %s3095
          %3101 = dma.vmem_to_hbm [thread:$0]  %s3094, 2048, %s3096, %s3071, 128, 128, 8
        $region108: #{tpu_custom_call.1} parent=71 // pred_fallthru
          _
        // Predicated region
        $region109: #{tpu_custom_call.1} parent=71 // pred_check
          %p3102 = pneg %p384
        $region110: #{tpu_custom_call.1} parent=71 // pred_check_branch
          %3104 = sbr.rel (%p3102) target = $region112
        $region111: #{tpu_custom_call.1} parent=71 // pred_region
          %s3105 = smul.u32 16, %s42
          %3107 = vsyncadd %s3076, 0
          %s3108 = smul.addr %s3105, 8
          %s3109 = scalar_lea.hbm %s14, %s3108
          %s3110 = sshll.u32 %s3079, 4
          %s3111 = int_to_ptr.vmem [resolvable:$true] %s3110
          %s3112 = sshll.u32 %s3109, 4
          %s3113 = int_to_ptr.hbm [resolvable:$true] %s3112
          %3118 = dma.vmem_to_hbm [thread:$0]  %s3111, 2048, %s3113, %s3076, 128, 128, 8
        $region112: #{tpu_custom_call.1} parent=71 // pred_fallthru
          _
        // Predicated region
        $region113: #{tpu_custom_call.1} parent=71 // pred_check
          %p3119 = pneg %p410
        $region114: #{tpu_custom_call.1} parent=71 // pred_check_branch
          %3121 = sbr.rel (%p3119) target = $region116
        $region115: #{tpu_custom_call.1} parent=71 // pred_region
          %s3122 = smul.u32 16, %s42
          %3124 = vsyncadd %s3081, 0
          %s3125 = smul.addr %s3122, 8
          %s3126 = scalar_lea.hbm %s15, %s3125
          %s3127 = sshll.u32 %s3084, 4
          %s3128 = int_to_ptr.vmem [resolvable:$true] %s3127
          %s3129 = sshll.u32 %s3126, 4
          %s3130 = int_to_ptr.hbm [resolvable:$true] %s3129
          %3135 = dma.vmem_to_hbm [thread:$0]  %s3128, 2048, %s3130, %s3081, 128, 128, 8
        $region116: #{tpu_custom_call.1} parent=71 // pred_fallthru
          _
      $region72: #{tpu_custom_call.1} parent=5 // pred_fallthru
        _
      %p3136 = scmp.le.s32.totalorder 2, %s37
      // Predicated region
      $region117: #{tpu_custom_call.1} parent=5 // pred_check
        %p3137 = pneg %p3136
      $region118: #{tpu_custom_call.1} parent=5 // pred_check_branch
        %3139 = sbr.rel (%p3137) target = $region120
      $region119: #{tpu_custom_call.1} parent=5 // pred_region
        %s3140 = ssub.s32 %s37, 2
        // Predicated region
        $region121: #{tpu_custom_call.1} parent=119 // pred_check
          %p3141 = pneg %p364
        $region122: #{tpu_custom_call.1} parent=119 // pred_check_branch
          %3143 = sbr.rel (%p3141) target = $region124
        $region123: #{tpu_custom_call.1} parent=119 // pred_region
          %s3144 = sand.u32 %s349, 1
          %s3145 = scalar_lea.sflag [#allocation4], %s3144
          %s3146 = sand.u32 %s349, 1
          %s3147 = smul.addr %s3146, 128
          %s3148 = scalar_lea.vmem [#allocation16], %s3147
          %3150 = dma.done %s3145, 2048
        $region124: #{tpu_custom_call.1} parent=119 // pred_fallthru
          _
        // Predicated region
        $region125: #{tpu_custom_call.1} parent=119 // pred_check
          %p3151 = pneg %p390
        $region126: #{tpu_custom_call.1} parent=119 // pred_check_branch
          %3153 = sbr.rel (%p3151) target = $region128
        $region127: #{tpu_custom_call.1} parent=119 // pred_region
          %s3154 = sand.u32 %s43, 1
          %s3155 = scalar_lea.sflag [#allocation18], %s3154
          %s3156 = sand.u32 %s375, 1
          %s3157 = smul.addr %s3156, 128
          %s3158 = scalar_lea.vmem [#allocation17], %s3157
          %3160 = dma.done %s3155, 2048
        $region128: #{tpu_custom_call.1} parent=119 // pred_fallthru
          _
        // Predicated region
        $region129: #{tpu_custom_call.1} parent=119 // pred_check
          %p3161 = pneg %p416
        $region130: #{tpu_custom_call.1} parent=119 // pred_check_branch
          %3163 = sbr.rel (%p3161) target = $region132
        $region131: #{tpu_custom_call.1} parent=119 // pred_region
          %s3164 = sand.u32 %s43, 1
          %s3165 = scalar_lea.sflag [#allocation18], %s3164
          %s3166 = sand.u32 %s401, 1
          %s3167 = smul.addr %s3166, 128
          %s3168 = scalar_lea.vmem [#allocation19], %s3167
          %3170 = dma.done %s3165, 2048
        $region132: #{tpu_custom_call.1} parent=119 // pred_fallthru
          _
      $region120: #{tpu_custom_call.1} parent=5 // pred_fallthru
        _
    $region6: #{tpu_custom_call.1} parent=1 // loop_footer
      %s41 = sadd.s32 1, %s37
    $region7: #{tpu_custom_call.1} parent=1 // loop_footer_branch
      %36 = sbr.rel target = $region3
    $region8: #{tpu_custom_call.1} parent=1 // loop_exit
      _
    %3171 = vsyncpa [#allocation3], 1
    %s3172 = scalar_lea.sflag [#allocation3], 1
    %3173 = vsyncpa %s3172, 1
    %3174 = vsyncpa [#allocation6], 1
    %s3175 = scalar_lea.sflag [#allocation6], 1
    %3176 = vsyncpa %s3175, 1
    %3177 = vsyncpa [#allocation9], 1
    %3178 = vsyncpa [#allocation12], 1
    %3179 = vsyncpa [#allocation15], 1
    %3180 = vsyncpa [#allocation4], 1
    %s3181 = scalar_lea.sflag [#allocation4], 1
    %3182 = vsyncpa %s3181, 1
    %3183 = vsyncpa [#allocation18], 1
    %s3184 = scalar_lea.sflag [#allocation18], 1
    %3185 = vsyncpa %s3184, 1

</llo_original>
